<compile_context>
chip_gen: v6e
topology: v6e:2x2x1
jax: 0.10.0
libtpu: 0.0.40
codegen_flags: <defaults>
</compile_context>

<pallas_src>
import functools

import jax
import jax.numpy as jnp
from jax.experimental import pallas as pl
from jax.experimental.pallas import tpu as pltpu

LN_EPS = 1e-5   # PyTorch nn.LayerNorm default


def _cdiv(a, b):
    return (a + b - 1) // b


def _round_up(x, m):
    return _cdiv(x, m) * m


def _layernorm(v, gamma, beta):
    mu = jnp.mean(v, axis=-1, keepdims=True)
    d = v - mu
    var = jnp.mean(d * d, axis=-1, keepdims=True)
    return d * jax.lax.rsqrt(var + LN_EPS) * gamma + beta


def gail_discrim_kernel(s_ref, ns_ref,
                        ln0s_ref, ln0n_ref,
                        w1s_ref, w1n_ref, w2_ref, vec_ref,
                        o_ref):
    # Block loads; upcast to f32 in-kernel (inputs may arrive bf16/f16).
    s = s_ref[...].astype(jnp.float32)               # [tb, obs]
    ns = ns_ref[...].astype(jnp.float32)             # [tb, pri]
    din = s.shape[-1] + ns.shape[-1]
    inv_din = 1.0 / din

    # Packed constants (all static slices of tiny VMEM tiles).
    g0s, b0s = ln0s_ref[0:1, :], ln0s_ref[1:2, :]     # (1, obs) each
    g0n, b0n = ln0n_ref[0:1, :], ln0n_ref[1:2, :]     # (1, pri) each
    b1, g1, be1 = vec_ref[0:1, :], vec_ref[1:2, :], vec_ref[2:3, :]
    b2, g2, be2 = vec_ref[3:4, :], vec_ref[4:5, :], vec_ref[5:6, :]
    wd_row = vec_ref[6:7, :]                          # (1, H)
    bd_row = vec_ref[7:8, :]                          # (1, H): [bd, 0, ..., 0]

    # ---- MLPBase.feature_norm: LayerNorm over the *virtual* concat [s, ns] ----
    total = (jnp.sum(s, axis=-1, keepdims=True) +
             jnp.sum(ns, axis=-1, keepdims=True))
    mu = total * inv_din
    ds = s - mu
    dn = ns - mu
    var = (jnp.sum(ds * ds, axis=-1, keepdims=True) +
           jnp.sum(dn * dn, axis=-1, keepdims=True)) * inv_din
    inv = jax.lax.rsqrt(var + LN_EPS)
    xs = ds * inv * g0s + b0s
    xn = dn * inv * g0n + b0n

    # ---- fc1: Linear (K split across the two concat pieces) -> ReLU -> LN ----
    h = (jnp.dot(xs, w1s_ref[...], preferred_element_type=jnp.float32) +
         jnp.dot(xn, w1n_ref[...], preferred_element_type=jnp.float32) + b1)
    h = jnp.maximum(h, 0.0)
    h = _layernorm(h, g1, be1)

    # ---- fc2 (layer_N = 1): Linear -> ReLU -> LayerNorm ----
    h = jnp.dot(h, w2_ref[...], preferred_element_type=jnp.float32) + b2
    h = jnp.maximum(h, 0.0)
    h = _layernorm(h, g2, be2)

    # ---- D_out head: VPU multiply + cross-lane reduce (an N=1 matmul would
    #      waste the MXU).  bd is folded in as a one-hot row so no extra
    #      operand / SMEM scalar is needed.  Lane-dense store: batch on lanes.
    logits = jnp.sum(h * wd_row + bd_row, axis=-1)    # [tb]
    o_ref[0, 0, :] = logits


@functools.partial(jax.jit, static_argnames=("batch_tile",))
def gail_discrim_forward(state, next_state, params, batch_tile=2048):
    """state: [B, obs_dim], next_state: [B, pri_obs_dim] -> logits [B, 1]."""
    assert batch_tile % 128 == 0, "batch_tile must be a multiple of 128"

    # Keep bf16/f16 inputs at native width (DMA'd as-is, upcast in-kernel);
    # only non-float inputs are cast here.
    if not jnp.issubdtype(state.dtype, jnp.floating):
        state = state.astype(jnp.float32)
    if not jnp.issubdtype(next_state.dtype, jnp.floating):
        next_state = next_state.astype(jnp.float32)

    B, obs = state.shape
    pri = next_state.shape[1]
    H = params["w1"].shape[1]

    # Batch tile: large (amortize the ~600-cycle per-step overhead), multiple of
    # 128 (lane-dense unmasked output stores), capped at ceil(B/2) rounded up so
    # B > 128 always yields >= 2 grid steps (both v7x TensorCores busy).  No
    # padding: the ragged last tile's out-of-range rows are unspecified garbage
    # that the final [:B] slice drops (rows are fully independent).
    tb = max(128, min(batch_tile, _round_up(_cdiv(B, 2), 128)))
    num_tiles = _cdiv(B, tb)

    # Pack the 13 tiny per-row constants into 3 operands (trace-time, once).
    f32 = jnp.float32
    ln0s = jnp.concatenate([params["ln0_g"][:, :obs], params["ln0_b"][:, :obs]],
                           axis=0).astype(f32)                       # (2, obs)
    ln0n = jnp.concatenate([params["ln0_g"][:, obs:], params["ln0_b"][:, obs:]],
                           axis=0).astype(f32)                       # (2, pri)
    bd_row = jnp.zeros((1, H), f32).at[0, 0].set(params["bd"].reshape(())[...])
    vecH = jnp.concatenate([params["b1"], params["ln1_g"], params["ln1_b"],
                            params["b2"], params["ln2_g"], params["ln2_b"],
                            params["wd"].T, bd_row], axis=0).astype(f32)  # (8,H)
    w1s = params["w1"][:obs, :].astype(f32)                          # (obs, H)
    w1n = params["w1"][obs:, :].astype(f32)                          # (pri, H)
    w2 = params["w2"].astype(f32)                                    # (H, H)

    row_spec = lambda cols: pl.BlockSpec((tb, cols), lambda i: (i, 0))
    const_spec = lambda shape: pl.BlockSpec(shape, lambda i: (0, 0))

    out = pl.pallas_call(
        gail_discrim_kernel,
        out_shape=jax.ShapeDtypeStruct((num_tiles, 1, tb), jnp.float32),
        grid_spec=pltpu.PrefetchScalarGridSpec(
            num_scalar_prefetch=0,
            grid=(num_tiles,),
            in_specs=[
                row_spec(obs),               # state tile
                row_spec(pri),               # next_state tile
                const_spec((2, obs)),        # ln0 [gamma; beta] (state part)
                const_spec((2, pri)),        # ln0 [gamma; beta] (next_state part)
                const_spec((obs, H)),        # W1[:obs]
                const_spec((pri, H)),        # W1[obs:]
                const_spec((H, H)),          # W2
                const_spec((8, H)),          # b1,g1,be1,b2,g2,be2,wd,bd-row
            ],
            out_specs=pl.BlockSpec((1, 1, tb), lambda i: (i, 0, 0)),
        ),
        compiler_params=pltpu.CompilerParams(
            dimension_semantics=("parallel",),     # shard grid across v7x TCs
            vmem_limit_bytes=48 * 1024 * 1024,     # > 16/32 MiB scoped defaults,
        ),                                         # < 64 MiB v7x physical
    )(state, next_state, ln0s, ln0n, w1s, w1n, w2, vecH)

    # (num_tiles, 1, tb) -> (num_tiles*tb, 1); row i*tb+j is element (i, 0, j).
    return out.reshape(num_tiles * tb, 1)[:B]


def init_params(key, in_dim, hidden):
    """Deterministic xavier-uniform-like init (use_orthogonal treated as 0)."""
    ks = jax.random.split(key, 3)

    def xavier(k, fan_in, fan_out):
        limit = jnp.sqrt(6.0 / (fan_in + fan_out))
        return jax.random.uniform(k, (fan_in, fan_out), jnp.float32,
                                  minval=-limit, maxval=limit)

    return {
        "ln0_g": jnp.ones((1, in_dim), jnp.float32),
        "ln0_b": jnp.zeros((1, in_dim), jnp.float32),
        "w1": xavier(ks[0], in_dim, hidden),
        "b1": jnp.zeros((1, hidden), jnp.float32),
        "ln1_g": jnp.ones((1, hidden), jnp.float32),
        "ln1_b": jnp.zeros((1, hidden), jnp.float32),
        "w2": xavier(ks[1], hidden, hidden),
        "b2": jnp.zeros((1, hidden), jnp.float32),
        "ln2_g": jnp.ones((1, hidden), jnp.float32),
        "ln2_b": jnp.zeros((1, hidden), jnp.float32),
        "wd": xavier(ks[2], hidden, 1),
        "bd": jnp.zeros((1, 1), jnp.float32),
    }


def _reference(state, next_state, p):
    x = jnp.concatenate([state.astype(jnp.float32),
                         next_state.astype(jnp.float32)], axis=-1)

    def ln(v, g, b):
        mu = v.mean(-1, keepdims=True)
        var = ((v - mu) ** 2).mean(-1, keepdims=True)
        return (v - mu) / jnp.sqrt(var + LN_EPS) * g + b

    h = ln(x, p["ln0_g"], p["ln0_b"])
    h = ln(jnp.maximum(h @ p["w1"] + p["b1"], 0.0), p["ln1_g"], p["ln1_b"])
    h = ln(jnp.maximum(h @ p["w2"] + p["b2"], 0.0), p["ln2_g"], p["ln2_b"])
    return h @ p["wd"] + p["bd"]


if __name__ == "__main__":
    key = jax.random.PRNGKey(0)
    k_p, k_s, k_ns = jax.random.split(key, 3)

    obs_dim = 24          # obs_space feature size
    pri_obs_dim = 8       # private_obs_space feature size
    hidden = 32           # g_args('hidden_size')
    in_dim = obs_dim + pri_obs_dim
    params = init_params(k_p, in_dim, hidden)

    # Case 1: B=300 -> 2 grid tiles of 256 with a ragged (44-valid-row) tail:
    # exercises the no-pad ragged path and the 2-tile parallel axis.
    batch = 300
    state = jax.random.normal(k_s, (batch, obs_dim), jnp.float32)
    next_state = jax.random.normal(k_ns, (batch, pri_obs_dim), jnp.float32)
    out = jax.block_until_ready(gail_discrim_forward(state, next_state, params))
    ref = _reference(state, next_state, params)
    assert out.shape == (batch, 1), out.shape
    assert jnp.allclose(out, ref, atol=1e-4, rtol=1e-4), \
        float(jnp.max(jnp.abs(out - ref)))

    # Case 2: small B=64 (single ragged tile) with bf16 inputs (native-width DMA).
    b2 = 64
    s2 = jax.random.normal(k_s, (b2, obs_dim), jnp.float32).astype(jnp.bfloat16)
    n2 = jax.random.normal(k_ns, (b2, pri_obs_dim), jnp.float32).astype(jnp.bfloat16)
    out2 = jax.block_until_ready(gail_discrim_forward(s2, n2, params))
    ref2 = _reference(s2, n2, params)
    assert out2.shape == (b2, 1), out2.shape
    assert jnp.allclose(out2, ref2, atol=5e-2, rtol=5e-2), \
        float(jnp.max(jnp.abs(out2 - ref2)))

    print("KERNEL_OK")
</pallas_src>

<mosaic_0001>
module attributes {stable_mosaic.version = 11 : i64} {
  func.func @gail_discrim_kernel(%arg0: i32, %arg1: memref<256x24xf32, #tpu.memory_space<vmem>>, %arg2: memref<256x8xf32, #tpu.memory_space<vmem>>, %arg3: memref<2x24xf32, #tpu.memory_space<vmem>>, %arg4: memref<2x8xf32, #tpu.memory_space<vmem>>, %arg5: memref<24x32xf32, #tpu.memory_space<vmem>>, %arg6: memref<8x32xf32, #tpu.memory_space<vmem>>, %arg7: memref<32x32xf32, #tpu.memory_space<vmem>>, %arg8: memref<8x32xf32, #tpu.memory_space<vmem>>, %arg9: memref<1x1x256xf32, #tpu.memory_space<vmem>>) attributes {dimension_semantics = [#tpu.dimension_semantics<parallel>], iteration_bounds = array<i64: 2>, scalar_prefetch = 0 : i64, scratch_operands = 0 : i64, tpu.core_type = #tpu.core_type<tc>, window_params = [{transform_indices = @transform_0, window_bounds = array<i64: 256, 24>}, {transform_indices = @transform_1, window_bounds = array<i64: 256, 8>}, {pipeline_mode = #tpu.pipeline_mode<synchronous>, transform_indices = @transform_2, window_bounds = array<i64: 2, 24>}, {pipeline_mode = #tpu.pipeline_mode<synchronous>, transform_indices = @transform_3, window_bounds = array<i64: 2, 8>}, {pipeline_mode = #tpu.pipeline_mode<synchronous>, transform_indices = @transform_4, window_bounds = array<i64: 24, 32>}, {pipeline_mode = #tpu.pipeline_mode<synchronous>, transform_indices = @transform_5, window_bounds = array<i64: 8, 32>}, {pipeline_mode = #tpu.pipeline_mode<synchronous>, transform_indices = @transform_6, window_bounds = array<i64: 32, 32>}, {pipeline_mode = #tpu.pipeline_mode<synchronous>, transform_indices = @transform_7, window_bounds = array<i64: 8, 32>}, {transform_indices = @transform_8, window_bounds = array<i64: 1, 1, 256>}]} {
    %c0 = arith.constant 0 : index
    %c0_0 = arith.constant 0 : index
    %0 = vector.load %arg1[%c0, %c0_0] : memref<256x24xf32, #tpu.memory_space<vmem>>, vector<256x24xf32>
    %c0_1 = arith.constant 0 : index
    %c0_2 = arith.constant 0 : index
    %1 = vector.load %arg2[%c0_1, %c0_2] : memref<256x8xf32, #tpu.memory_space<vmem>>, vector<256x8xf32>
    %c0_3 = arith.constant 0 : index
    %c0_4 = arith.constant 0 : index
    %2 = vector.load %arg3[%c0_3, %c0_4] : memref<2x24xf32, #tpu.memory_space<vmem>>, vector<1x24xf32>
    %c1 = arith.constant 1 : index
    %c0_5 = arith.constant 0 : index
    %3 = vector.load %arg3[%c1, %c0_5] : memref<2x24xf32, #tpu.memory_space<vmem>>, vector<1x24xf32>
    %c0_6 = arith.constant 0 : index
    %c0_7 = arith.constant 0 : index
    %4 = vector.load %arg4[%c0_6, %c0_7] : memref<2x8xf32, #tpu.memory_space<vmem>>, vector<1x8xf32>
    %c1_8 = arith.constant 1 : index
    %c0_9 = arith.constant 0 : index
    %5 = vector.load %arg4[%c1_8, %c0_9] : memref<2x8xf32, #tpu.memory_space<vmem>>, vector<1x8xf32>
    %c0_10 = arith.constant 0 : index
    %c0_11 = arith.constant 0 : index
    %6 = vector.load %arg8[%c0_10, %c0_11] : memref<8x32xf32, #tpu.memory_space<vmem>>, vector<1x32xf32>
    %c1_12 = arith.constant 1 : index
    %c0_13 = arith.constant 0 : index
    %7 = vector.load %arg8[%c1_12, %c0_13] : memref<8x32xf32, #tpu.memory_space<vmem>>, vector<1x32xf32>
    %c2 = arith.constant 2 : index
    %c0_14 = arith.constant 0 : index
    %8 = vector.load %arg8[%c2, %c0_14] : memref<8x32xf32, #tpu.memory_space<vmem>>, vector<1x32xf32>
    %c3 = arith.constant 3 : index
    %c0_15 = arith.constant 0 : index
    %9 = vector.load %arg8[%c3, %c0_15] : memref<8x32xf32, #tpu.memory_space<vmem>>, vector<1x32xf32>
    %c4 = arith.constant 4 : index
    %c0_16 = arith.constant 0 : index
    %10 = vector.load %arg8[%c4, %c0_16] : memref<8x32xf32, #tpu.memory_space<vmem>>, vector<1x32xf32>
    %c5 = arith.constant 5 : index
    %c0_17 = arith.constant 0 : index
    %11 = vector.load %arg8[%c5, %c0_17] : memref<8x32xf32, #tpu.memory_space<vmem>>, vector<1x32xf32>
    %c6 = arith.constant 6 : index
    %c0_18 = arith.constant 0 : index
    %12 = vector.load %arg8[%c6, %c0_18] : memref<8x32xf32, #tpu.memory_space<vmem>>, vector<1x32xf32>
    %c7 = arith.constant 7 : index
    %c0_19 = arith.constant 0 : index
    %13 = vector.load %arg8[%c7, %c0_19] : memref<8x32xf32, #tpu.memory_space<vmem>>, vector<1x32xf32>
    %cst = arith.constant dense<0.000000e+00> : vector<256xf32>
    %14 = vector.multi_reduction <add>, %0, %cst [1] : vector<256x24xf32> to vector<256xf32>
    %15 = vector.shape_cast %14 : vector<256xf32> to vector<256x1xf32>
    %cst_20 = arith.constant dense<0.000000e+00> : vector<256xf32>
    %16 = vector.multi_reduction <add>, %1, %cst_20 [1] : vector<256x8xf32> to vector<256xf32>
    %17 = vector.shape_cast %16 : vector<256xf32> to vector<256x1xf32>
    %18 = arith.addf %15, %17 : vector<256x1xf32>
    %cst_21 = arith.constant 3.125000e-02 : f32
    %19 = vector.broadcast %cst_21 : f32 to vector<256x1xf32>
    %20 = arith.mulf %18, %19 : vector<256x1xf32>
    %21 = vector.broadcast %20 : vector<256x1xf32> to vector<256x24xf32>
    %22 = arith.subf %0, %21 : vector<256x24xf32>
    %23 = vector.broadcast %20 : vector<256x1xf32> to vector<256x8xf32>
    %24 = arith.subf %1, %23 : vector<256x8xf32>
    %25 = arith.mulf %22, %22 : vector<256x24xf32>
    %cst_22 = arith.constant dense<0.000000e+00> : vector<256xf32>
    %26 = vector.multi_reduction <add>, %25, %cst_22 [1] : vector<256x24xf32> to vector<256xf32>
    %27 = vector.shape_cast %26 : vector<256xf32> to vector<256x1xf32>
    %28 = arith.mulf %24, %24 : vector<256x8xf32>
    %cst_23 = arith.constant dense<0.000000e+00> : vector<256xf32>
    %29 = vector.multi_reduction <add>, %28, %cst_23 [1] : vector<256x8xf32> to vector<256xf32>
    %30 = vector.shape_cast %29 : vector<256xf32> to vector<256x1xf32>
    %31 = arith.addf %27, %30 : vector<256x1xf32>
    %cst_24 = arith.constant 3.125000e-02 : f32
    %32 = vector.broadcast %cst_24 : f32 to vector<256x1xf32>
    %33 = arith.mulf %31, %32 : vector<256x1xf32>
    %cst_25 = arith.constant 9.99999974E-6 : f32
    %34 = vector.broadcast %cst_25 : f32 to vector<256x1xf32>
    %35 = arith.addf %33, %34 : vector<256x1xf32>
    %36 = math.rsqrt %35 : vector<256x1xf32>
    %37 = vector.broadcast %36 : vector<256x1xf32> to vector<256x24xf32>
    %38 = arith.mulf %22, %37 : vector<256x24xf32>
    %39 = vector.broadcast %2 : vector<1x24xf32> to vector<256x24xf32>
    %40 = arith.mulf %38, %39 : vector<256x24xf32>
    %41 = vector.broadcast %3 : vector<1x24xf32> to vector<256x24xf32>
    %42 = arith.addf %40, %41 : vector<256x24xf32>
    %43 = vector.broadcast %36 : vector<256x1xf32> to vector<256x8xf32>
    %44 = arith.mulf %24, %43 : vector<256x8xf32>
    %45 = vector.broadcast %4 : vector<1x8xf32> to vector<256x8xf32>
    %46 = arith.mulf %44, %45 : vector<256x8xf32>
    %47 = vector.broadcast %5 : vector<1x8xf32> to vector<256x8xf32>
    %48 = arith.addf %46, %47 : vector<256x8xf32>
    %c0_26 = arith.constant 0 : index
    %c0_27 = arith.constant 0 : index
    %49 = vector.load %arg5[%c0_26, %c0_27] : memref<24x32xf32, #tpu.memory_space<vmem>>, vector<24x32xf32>
    %cst_28 = arith.constant dense<0.000000e+00> : vector<256x32xf32>
    %50 = tpu.matmul %42, %49, %cst_28 {dimension_numbers = #tpu.dot_dimension_numbers<[1], [0], [0], [1], [0, 0, 1, 1], [], []>} : vector<256x24xf32>, vector<24x32xf32>, vector<256x32xf32> -> vector<256x32xf32>
    %c0_29 = arith.constant 0 : index
    %c0_30 = arith.constant 0 : index
    %51 = vector.load %arg6[%c0_29, %c0_30] : memref<8x32xf32, #tpu.memory_space<vmem>>, vector<8x32xf32>
    %cst_31 = arith.constant dense<0.000000e+00> : vector<256x32xf32>
    %52 = tpu.matmul %48, %51, %cst_31 {dimension_numbers = #tpu.dot_dimension_numbers<[1], [0], [0], [1], [0, 0, 1, 1], [], []>} : vector<256x8xf32>, vector<8x32xf32>, vector<256x32xf32> -> vector<256x32xf32>
    %53 = arith.addf %50, %52 : vector<256x32xf32>
    %54 = vector.broadcast %6 : vector<1x32xf32> to vector<256x32xf32>
    %55 = arith.addf %53, %54 : vector<256x32xf32>
    %cst_32 = arith.constant 0.000000e+00 : f32
    %56 = vector.broadcast %cst_32 : f32 to vector<256x32xf32>
    %57 = arith.maximumf %55, %56 : vector<256x32xf32>
    %cst_33 = arith.constant dense<0.000000e+00> : vector<256xf32>
    %58 = vector.multi_reduction <add>, %57, %cst_33 [1] : vector<256x32xf32> to vector<256xf32>
    %59 = vector.shape_cast %58 : vector<256xf32> to vector<256x1xf32>
    %cst_34 = arith.constant 3.200000e+01 : f32
    %60 = vector.broadcast %cst_34 : f32 to vector<256x1xf32>
    %61 = arith.divf %59, %60 : vector<256x1xf32>
    %62 = vector.broadcast %61 : vector<256x1xf32> to vector<256x32xf32>
    %63 = arith.subf %57, %62 : vector<256x32xf32>
    %64 = arith.mulf %63, %63 : vector<256x32xf32>
    %cst_35 = arith.constant dense<0.000000e+00> : vector<256xf32>
    %65 = vector.multi_reduction <add>, %64, %cst_35 [1] : vector<256x32xf32> to vector<256xf32>
    %66 = vector.shape_cast %65 : vector<256xf32> to vector<256x1xf32>
    %cst_36 = arith.constant 3.200000e+01 : f32
    %67 = vector.broadcast %cst_36 : f32 to vector<256x1xf32>
    %68 = arith.divf %66, %67 : vector<256x1xf32>
    %cst_37 = arith.constant 9.99999974E-6 : f32
    %69 = vector.broadcast %cst_37 : f32 to vector<256x1xf32>
    %70 = arith.addf %68, %69 : vector<256x1xf32>
    %71 = math.rsqrt %70 : vector<256x1xf32>
    %72 = vector.broadcast %71 : vector<256x1xf32> to vector<256x32xf32>
    %73 = arith.mulf %63, %72 : vector<256x32xf32>
    %74 = vector.broadcast %7 : vector<1x32xf32> to vector<256x32xf32>
    %75 = arith.mulf %73, %74 : vector<256x32xf32>
    %76 = vector.broadcast %8 : vector<1x32xf32> to vector<256x32xf32>
    %77 = arith.addf %75, %76 : vector<256x32xf32>
    %c0_38 = arith.constant 0 : index
    %c0_39 = arith.constant 0 : index
    %78 = vector.load %arg7[%c0_38, %c0_39] : memref<32x32xf32, #tpu.memory_space<vmem>>, vector<32x32xf32>
    %cst_40 = arith.constant dense<0.000000e+00> : vector<256x32xf32>
    %79 = tpu.matmul %77, %78, %cst_40 {dimension_numbers = #tpu.dot_dimension_numbers<[1], [0], [0], [1], [0, 0, 1, 1], [], []>} : vector<256x32xf32>, vector<32x32xf32>, vector<256x32xf32> -> vector<256x32xf32>
    %80 = vector.broadcast %9 : vector<1x32xf32> to vector<256x32xf32>
    %81 = arith.addf %79, %80 : vector<256x32xf32>
    %cst_41 = arith.constant 0.000000e+00 : f32
    %82 = vector.broadcast %cst_41 : f32 to vector<256x32xf32>
    %83 = arith.maximumf %81, %82 : vector<256x32xf32>
    %cst_42 = arith.constant dense<0.000000e+00> : vector<256xf32>
    %84 = vector.multi_reduction <add>, %83, %cst_42 [1] : vector<256x32xf32> to vector<256xf32>
    %85 = vector.shape_cast %84 : vector<256xf32> to vector<256x1xf32>
    %cst_43 = arith.constant 3.200000e+01 : f32
    %86 = vector.broadcast %cst_43 : f32 to vector<256x1xf32>
    %87 = arith.divf %85, %86 : vector<256x1xf32>
    %88 = vector.broadcast %87 : vector<256x1xf32> to vector<256x32xf32>
    %89 = arith.subf %83, %88 : vector<256x32xf32>
    %90 = arith.mulf %89, %89 : vector<256x32xf32>
    %cst_44 = arith.constant dense<0.000000e+00> : vector<256xf32>
    %91 = vector.multi_reduction <add>, %90, %cst_44 [1] : vector<256x32xf32> to vector<256xf32>
    %92 = vector.shape_cast %91 : vector<256xf32> to vector<256x1xf32>
    %cst_45 = arith.constant 3.200000e+01 : f32
    %93 = vector.broadcast %cst_45 : f32 to vector<256x1xf32>
    %94 = arith.divf %92, %93 : vector<256x1xf32>
    %cst_46 = arith.constant 9.99999974E-6 : f32
    %95 = vector.broadcast %cst_46 : f32 to vector<256x1xf32>
    %96 = arith.addf %94, %95 : vector<256x1xf32>
    %97 = math.rsqrt %96 : vector<256x1xf32>
    %98 = vector.broadcast %97 : vector<256x1xf32> to vector<256x32xf32>
    %99 = arith.mulf %89, %98 : vector<256x32xf32>
    %100 = vector.broadcast %10 : vector<1x32xf32> to vector<256x32xf32>
    %101 = arith.mulf %99, %100 : vector<256x32xf32>
    %102 = vector.broadcast %11 : vector<1x32xf32> to vector<256x32xf32>
    %103 = arith.addf %101, %102 : vector<256x32xf32>
    %104 = vector.broadcast %12 : vector<1x32xf32> to vector<256x32xf32>
    %105 = arith.mulf %103, %104 : vector<256x32xf32>
    %106 = vector.broadcast %13 : vector<1x32xf32> to vector<256x32xf32>
    %107 = arith.addf %105, %106 : vector<256x32xf32>
    %cst_47 = arith.constant dense<0.000000e+00> : vector<256xf32>
    %108 = vector.multi_reduction <add>, %107, %cst_47 [1] : vector<256x32xf32> to vector<256xf32>
    %c0_48 = arith.constant 0 : index
    %c0_49 = arith.constant 0 : index
    %c0_50 = arith.constant 0 : index
    %109 = vector.load %arg9[%c0_48, %c0_49, %c0_50] : memref<1x1x256xf32, #tpu.memory_space<vmem>>, vector<1x1x256xf32>
    %110 = vector.shape_cast %109 : vector<1x1x256xf32> to vector<256xf32>
    %111 = vector.shape_cast %108 : vector<256xf32> to vector<1x1x256xf32>
    tpu.vector_store %arg9[%c0_48, %c0_49, %c0_50], %111 {strides = array<i32>} : memref<1x1x256xf32, #tpu.memory_space<vmem>>, vector<1x1x256xf32>,
    return
  }
  func.func @transform_0(%arg0: i32) -> (i32, i32) {
    %c0_i32 = arith.constant 0 : i32
    %c0_i32_0 = arith.constant 0 : i32
    return %arg0, %c0_i32 : i32, i32
  }
  func.func @transform_1(%arg0: i32) -> (i32, i32) {
    %c0_i32 = arith.constant 0 : i32
    %c0_i32_0 = arith.constant 0 : i32
    return %arg0, %c0_i32 : i32, i32
  }
  func.func @transform_2(%arg0: i32) -> (i32, i32) {
    %c0_i32 = arith.constant 0 : i32
    %c0_i32_0 = arith.constant 0 : i32
    %c0_i32_1 = arith.constant 0 : i32
    return %c0_i32, %c0_i32_0 : i32, i32
  }
  func.func @transform_3(%arg0: i32) -> (i32, i32) {
    %c0_i32 = arith.constant 0 : i32
    %c0_i32_0 = arith.constant 0 : i32
    %c0_i32_1 = arith.constant 0 : i32
    return %c0_i32, %c0_i32_0 : i32, i32
  }
  func.func @transform_4(%arg0: i32) -> (i32, i32) {
    %c0_i32 = arith.constant 0 : i32
    %c0_i32_0 = arith.constant 0 : i32
    %c0_i32_1 = arith.constant 0 : i32
    return %c0_i32, %c0_i32_0 : i32, i32
  }
  func.func @transform_5(%arg0: i32) -> (i32, i32) {
    %c0_i32 = arith.constant 0 : i32
    %c0_i32_0 = arith.constant 0 : i32
    %c0_i32_1 = arith.constant 0 : i32
    return %c0_i32, %c0_i32_0 : i32, i32
  }
  func.func @transform_6(%arg0: i32) -> (i32, i32) {
    %c0_i32 = arith.constant 0 : i32
    %c0_i32_0 = arith.constant 0 : i32
    %c0_i32_1 = arith.constant 0 : i32
    return %c0_i32, %c0_i32_0 : i32, i32
  }
  func.func @transform_7(%arg0: i32) -> (i32, i32) {
    %c0_i32 = arith.constant 0 : i32
    %c0_i32_0 = arith.constant 0 : i32
    %c0_i32_1 = arith.constant 0 : i32
    return %c0_i32, %c0_i32_0 : i32, i32
  }
  func.func @transform_8(%arg0: i32) -> (i32, i32, i32) {
    %c0_i32 = arith.constant 0 : i32
    %c0_i32_0 = arith.constant 0 : i32
    %c0_i32_1 = arith.constant 0 : i32
    return %arg0, %c0_i32, %c0_i32_0 : i32, i32, i32
  }
}

</mosaic_0001>

<llo_original>
// kernel: gail_discrim_forward.1
$region0: #{gail_discrim_forward.1}
  #allocation0 [shape = 'u32[]', space=smem, size = 0x4, offset = 0x4, fixed_abs, tag = 'smem constant byte address 0x4 - core index']
  #allocation1 [shape = 'u32[144,128]{1,0:T(1,128)}', space=vmem, size = 0x12000, scoped, tag = 'internal scratch']
  %s0 = inlined_call_operand.vmem [shape: f32[300,24], index: 0, kind: input, shape index: {}]
  %s1 = inlined_call_operand.vmem [shape: f32[300,8], index: 1, kind: input, shape index: {}]
  %s2 = inlined_call_operand.vmem [shape: f32[2,24], index: 2, kind: input, shape index: {}]
  %s3 = inlined_call_operand.vmem [shape: f32[2,8], index: 3, kind: input, shape index: {}]
  %s4 = inlined_call_operand.vmem [shape: f32[24,32], index: 4, kind: input, shape index: {}]
  %s5 = inlined_call_operand.vmem [shape: f32[8,32], index: 5, kind: input, shape index: {}]
  %s6 = inlined_call_operand.vmem [shape: f32[32,32], index: 6, kind: input, shape index: {}]
  %s7 = inlined_call_operand.vmem [shape: f32[8,32], index: 7, kind: input, shape index: {}]
  %s8 = inlined_call_operand.vmem [shape: f32[2,1,256], index: 8, kind: output, shape index: {}]
  %s9 = sld [smem:[#allocation0]]
  $region65: #{gail_discrim_forward.1} parent=0
    _
  %s11 = ssub.s32 1, %s9
  %s12 = scalar_select 0, %s11, %s9
  loop: start=0, step=1, limit=4
  $region2: #{gail_discrim_forward.1} parent=0 // loop_pre_header
    _
  $region3: #{gail_discrim_forward.1} parent=0 // loop_header
    %s14 = sphi 0, %s18
    %p15 = scmp.ge.s32.totalorder %s14, 4
    %s24 = sphi 0, %s26
    %s27 = sphi 0, %s24
    %s28 = sphi 0, %s27
    %s44 = sphi 0, %s28
    %s50 = sphi 0, %s52
    %s53 = sphi 0, %s50
    %s54 = sphi 0, %s53
    %s70 = sphi 0, %s54
    %s74 = sphi 0, %s74
    %s76 = sphi 0, %s74
    %s77 = sphi 0, %s76
    %s91 = sphi 0, %s77
    %s95 = sphi 0, %s95
    %s97 = sphi 0, %s95
    %s98 = sphi 0, %s97
    %s112 = sphi 0, %s98
    %s116 = sphi 0, %s116
    %s118 = sphi 0, %s116
    %s119 = sphi 0, %s118
    %s133 = sphi 0, %s119
    %s137 = sphi 0, %s137
    %s139 = sphi 0, %s137
    %s140 = sphi 0, %s139
    %s154 = sphi 0, %s140
    %s158 = sphi 0, %s158
    %s160 = sphi 0, %s158
    %s161 = sphi 0, %s160
    %s175 = sphi 0, %s161
    %s179 = sphi 0, %s179
    %s181 = sphi 0, %s179
    %s182 = sphi 0, %s181
    %s196 = sphi 0, %s182
    %s202 = sphi 0, %s204
    %s205 = sphi 0, %s202
    %s206 = sphi 0, %s205
    %s222 = sphi 0, %s206
  $region4: #{gail_discrim_forward.1} parent=0 // loop_header_branch
    %17 = sbr.rel (%p15) target = $region8
  $region5: #{gail_discrim_forward.1} parent=0 // loop_body
    %s19 = ssub.s32 %s14, 1
    %s20 = ssub.s32 %s14, 2
    %s21 = sadd.s32 %s14, 1
    %s22 = ssub.s32 %s14, %s21
    %p23 = scmp.eq.s32.totalorder %s22, 0
    %s25 = sadd.s32 %s24, 1
    %s26 = scalar_select %p23, %s24, %s25
    %p29 = pneg %p23
    %p30 = scmp.eq.s32.totalorder %s14, 1
    %p31 = por %p29, %p30
    %p32 = scmp.ne.s32.totalorder %s24, %s27
    %p33 = scmp.eq.s32.totalorder %s14, 0
    %p34 = por %p32, %p33
    %p35 = scmp.ne.s32.totalorder %s24, %s27
    %p36 = scmp.eq.s32.totalorder %s19, 1
    %p37 = por %p35, %p36
    %p38 = scmp.ne.s32.totalorder %s27, %s28
    %p39 = scmp.eq.s32.totalorder %s19, 0
    %p40 = por %p38, %p39
    %p41 = scmp.ne.s32.totalorder %s27, %s28
    %p42 = scmp.eq.s32.totalorder %s20, 1
    %p43 = por %p41, %p42
    %p45 = scmp.ne.s32.totalorder %s28, %s44
    %p46 = scmp.eq.s32.totalorder %s20, 0
    %p47 = por %p45, %p46
    %s48 = ssub.s32 %s14, %s21
    %p49 = scmp.eq.s32.totalorder %s48, 0
    %s51 = sadd.s32 %s50, 1
    %s52 = scalar_select %p49, %s50, %s51
    %p55 = pneg %p49
    %p56 = scmp.eq.s32.totalorder %s14, 1
    %p57 = por %p55, %p56
    %p58 = scmp.ne.s32.totalorder %s50, %s53
    %p59 = scmp.eq.s32.totalorder %s14, 0
    %p60 = por %p58, %p59
    %p61 = scmp.ne.s32.totalorder %s50, %s53
    %p62 = scmp.eq.s32.totalorder %s19, 1
    %p63 = por %p61, %p62
    %p64 = scmp.ne.s32.totalorder %s53, %s54
    %p65 = scmp.eq.s32.totalorder %s19, 0
    %p66 = por %p64, %p65
    %p67 = scmp.ne.s32.totalorder %s53, %s54
    %p68 = scmp.eq.s32.totalorder %s20, 1
    %p69 = por %p67, %p68
    %p71 = scmp.ne.s32.totalorder %s54, %s70
    %p72 = scmp.eq.s32.totalorder %s20, 0
    %p73 = por %p71, %p72
    %s75 = sadd.s32 %s74, 1
    %p78 = scmp.eq.s32.totalorder %s14, 1
    %p79 = scmp.ne.s32.totalorder %s74, %s76
    %p80 = scmp.eq.s32.totalorder %s14, 0
    %p81 = por %p79, %p80
    %p82 = scmp.ne.s32.totalorder %s74, %s76
    %p83 = scmp.eq.s32.totalorder %s19, 1
    %p84 = por %p82, %p83
    %p85 = scmp.ne.s32.totalorder %s76, %s77
    %p86 = scmp.eq.s32.totalorder %s19, 0
    %p87 = por %p85, %p86
    %p88 = scmp.ne.s32.totalorder %s76, %s77
    %p89 = scmp.eq.s32.totalorder %s20, 1
    %p90 = por %p88, %p89
    %p92 = scmp.ne.s32.totalorder %s77, %s91
    %p93 = scmp.eq.s32.totalorder %s20, 0
    %p94 = por %p92, %p93
    %s96 = sadd.s32 %s95, 1
    %p99 = scmp.eq.s32.totalorder %s14, 1
    %p100 = scmp.ne.s32.totalorder %s95, %s97
    %p101 = scmp.eq.s32.totalorder %s14, 0
    %p102 = por %p100, %p101
    %p103 = scmp.ne.s32.totalorder %s95, %s97
    %p104 = scmp.eq.s32.totalorder %s19, 1
    %p105 = por %p103, %p104
    %p106 = scmp.ne.s32.totalorder %s97, %s98
    %p107 = scmp.eq.s32.totalorder %s19, 0
    %p108 = por %p106, %p107
    %p109 = scmp.ne.s32.totalorder %s97, %s98
    %p110 = scmp.eq.s32.totalorder %s20, 1
    %p111 = por %p109, %p110
    %p113 = scmp.ne.s32.totalorder %s98, %s112
    %p114 = scmp.eq.s32.totalorder %s20, 0
    %p115 = por %p113, %p114
    %s117 = sadd.s32 %s116, 1
    %p120 = scmp.eq.s32.totalorder %s14, 1
    %p121 = scmp.ne.s32.totalorder %s116, %s118
    %p122 = scmp.eq.s32.totalorder %s14, 0
    %p123 = por %p121, %p122
    %p124 = scmp.ne.s32.totalorder %s116, %s118
    %p125 = scmp.eq.s32.totalorder %s19, 1
    %p126 = por %p124, %p125
    %p127 = scmp.ne.s32.totalorder %s118, %s119
    %p128 = scmp.eq.s32.totalorder %s19, 0
    %p129 = por %p127, %p128
    %p130 = scmp.ne.s32.totalorder %s118, %s119
    %p131 = scmp.eq.s32.totalorder %s20, 1
    %p132 = por %p130, %p131
    %p134 = scmp.ne.s32.totalorder %s119, %s133
    %p135 = scmp.eq.s32.totalorder %s20, 0
    %p136 = por %p134, %p135
    %s138 = sadd.s32 %s137, 1
    %p141 = scmp.eq.s32.totalorder %s14, 1
    %p142 = scmp.ne.s32.totalorder %s137, %s139
    %p143 = scmp.eq.s32.totalorder %s14, 0
    %p144 = por %p142, %p143
    %p145 = scmp.ne.s32.totalorder %s137, %s139
    %p146 = scmp.eq.s32.totalorder %s19, 1
    %p147 = por %p145, %p146
    %p148 = scmp.ne.s32.totalorder %s139, %s140
    %p149 = scmp.eq.s32.totalorder %s19, 0
    %p150 = por %p148, %p149
    %p151 = scmp.ne.s32.totalorder %s139, %s140
    %p152 = scmp.eq.s32.totalorder %s20, 1
    %p153 = por %p151, %p152
    %p155 = scmp.ne.s32.totalorder %s140, %s154
    %p156 = scmp.eq.s32.totalorder %s20, 0
    %p157 = por %p155, %p156
    %s159 = sadd.s32 %s158, 1
    %p162 = scmp.eq.s32.totalorder %s14, 1
    %p163 = scmp.ne.s32.totalorder %s158, %s160
    %p164 = scmp.eq.s32.totalorder %s14, 0
    %p165 = por %p163, %p164
    %p166 = scmp.ne.s32.totalorder %s158, %s160
    %p167 = scmp.eq.s32.totalorder %s19, 1
    %p168 = por %p166, %p167
    %p169 = scmp.ne.s32.totalorder %s160, %s161
    %p170 = scmp.eq.s32.totalorder %s19, 0
    %p171 = por %p169, %p170
    %p172 = scmp.ne.s32.totalorder %s160, %s161
    %p173 = scmp.eq.s32.totalorder %s20, 1
    %p174 = por %p172, %p173
    %p176 = scmp.ne.s32.totalorder %s161, %s175
    %p177 = scmp.eq.s32.totalorder %s20, 0
    %p178 = por %p176, %p177
    %s180 = sadd.s32 %s179, 1
    %p183 = scmp.eq.s32.totalorder %s14, 1
    %p184 = scmp.ne.s32.totalorder %s179, %s181
    %p185 = scmp.eq.s32.totalorder %s14, 0
    %p186 = por %p184, %p185
    %p187 = scmp.ne.s32.totalorder %s179, %s181
    %p188 = scmp.eq.s32.totalorder %s19, 1
    %p189 = por %p187, %p188
    %p190 = scmp.ne.s32.totalorder %s181, %s182
    %p191 = scmp.eq.s32.totalorder %s19, 0
    %p192 = por %p190, %p191
    %p193 = scmp.ne.s32.totalorder %s181, %s182
    %p194 = scmp.eq.s32.totalorder %s20, 1
    %p195 = por %p193, %p194
    %p197 = scmp.ne.s32.totalorder %s182, %s196
    %p198 = scmp.eq.s32.totalorder %s20, 0
    %p199 = por %p197, %p198
    %s200 = ssub.s32 %s14, %s21
    %p201 = scmp.eq.s32.totalorder %s200, 0
    %s203 = sadd.s32 %s202, 1
    %s204 = scalar_select %p201, %s202, %s203
    %p207 = pneg %p201
    %p208 = scmp.eq.s32.totalorder %s14, 1
    %p209 = por %p207, %p208
    %p210 = scmp.ne.s32.totalorder %s202, %s205
    %p211 = scmp.eq.s32.totalorder %s14, 0
    %p212 = por %p210, %p211
    %p213 = scmp.ne.s32.totalorder %s202, %s205
    %p214 = scmp.eq.s32.totalorder %s19, 1
    %p215 = por %p213, %p214
    %p216 = scmp.ne.s32.totalorder %s205, %s206
    %p217 = scmp.eq.s32.totalorder %s19, 0
    %p218 = por %p216, %p217
    %p219 = scmp.ne.s32.totalorder %s205, %s206
    %p220 = scmp.eq.s32.totalorder %s20, 1
    %p221 = por %p219, %p220
    %p223 = scmp.ne.s32.totalorder %s206, %s222
    %p224 = scmp.eq.s32.totalorder %s20, 0
    %p225 = por %p223, %p224
    %p226 = scmp.le.s32.totalorder 1, %s14
    %p227 = scmp.lt.s32.totalorder %s14, 3
    %p228 = pnand %p226, %p227
    %p229 = pneg %p228
    // Predicated region
    $region9: #{gail_discrim_forward.1} parent=5 // pred_check
      _
    $region10: #{gail_discrim_forward.1} parent=5 // pred_check_branch
      %231 = sbr.rel (%p228) target = $region12
    $region11: #{gail_discrim_forward.1} parent=5 // pred_region
      %s232 = ssub.s32 %s14, 1
      // Predicated region
      $region13: #{gail_discrim_forward.1} parent=11 // pred_check
        %p233 = pneg %p87
      $region14: #{gail_discrim_forward.1} parent=11 // pred_check_branch
        %235 = sbr.rel (%p233) target = $region16
      $region15: #{gail_discrim_forward.1} parent=11 // pred_region
        _
      $region16: #{gail_discrim_forward.1} parent=11 // pred_fallthru
        _
      // Predicated region
      $region17: #{gail_discrim_forward.1} parent=11 // pred_check
        %p236 = pneg %p108
      $region18: #{gail_discrim_forward.1} parent=11 // pred_check_branch
        %238 = sbr.rel (%p236) target = $region20
      $region19: #{gail_discrim_forward.1} parent=11 // pred_region
        _
      $region20: #{gail_discrim_forward.1} parent=11 // pred_fallthru
        _
      // Predicated region
      $region21: #{gail_discrim_forward.1} parent=11 // pred_check
        %p239 = pneg %p129
      $region22: #{gail_discrim_forward.1} parent=11 // pred_check_branch
        %241 = sbr.rel (%p239) target = $region24
      $region23: #{gail_discrim_forward.1} parent=11 // pred_region
        _
      $region24: #{gail_discrim_forward.1} parent=11 // pred_fallthru
        _
      // Predicated region
      $region25: #{gail_discrim_forward.1} parent=11 // pred_check
        %p242 = pneg %p150
      $region26: #{gail_discrim_forward.1} parent=11 // pred_check_branch
        %244 = sbr.rel (%p242) target = $region28
      $region27: #{gail_discrim_forward.1} parent=11 // pred_region
        _
      $region28: #{gail_discrim_forward.1} parent=11 // pred_fallthru
        _
      // Predicated region
      $region29: #{gail_discrim_forward.1} parent=11 // pred_check
        %p245 = pneg %p171
      $region30: #{gail_discrim_forward.1} parent=11 // pred_check_branch
        %247 = sbr.rel (%p245) target = $region32
      $region31: #{gail_discrim_forward.1} parent=11 // pred_region
        _
      $region32: #{gail_discrim_forward.1} parent=11 // pred_fallthru
        _
      // Predicated region
      $region33: #{gail_discrim_forward.1} parent=11 // pred_check
        %p248 = pneg %p192
      $region34: #{gail_discrim_forward.1} parent=11 // pred_check_branch
        %250 = sbr.rel (%p248) target = $region36
      $region35: #{gail_discrim_forward.1} parent=11 // pred_region
        _
      $region36: #{gail_discrim_forward.1} parent=11 // pred_fallthru
        _
    $region12: #{gail_discrim_forward.1} parent=5 // pred_fallthru
      _
    %p251 = scmp.lt.s32.totalorder %s14, 2
    // Predicated region
    $region37: #{gail_discrim_forward.1} parent=5 // pred_check
      %p252 = pneg %p251
    $region38: #{gail_discrim_forward.1} parent=5 // pred_check_branch
      %254 = sbr.rel (%p252) target = $region40
    $region39: #{gail_discrim_forward.1} parent=5 // pred_region
      // Predicated region
      $region41: #{gail_discrim_forward.1} parent=39 // pred_check
        %p255 = pneg %p34
      $region42: #{gail_discrim_forward.1} parent=39 // pred_check_branch
        %257 = sbr.rel (%p255) target = $region44
      $region43: #{gail_discrim_forward.1} parent=39 // pred_region
        %s258 = smul.u32 32, %s14
        %s259 = ssub.s32 38, %s258
        %p260 = scmp.lt.s32.totalorder %s259, 32
        %s261 = scalar_select %p260, %s259, 32
        %s262 = smul.u32 128, %s261
        %p263 = scmp.lt.s32.totalorder %s258, 37
        %s264 = scalar_select %p263, %s258, 37
        %s265 = smul.addr %s264, 8
        %s266 = scalar_lea.vmem %s0, %s265
        %s267 = smul.u32 32, %s14
        %s268 = ssub.s32 38, %s267
        %p269 = scmp.lt.s32.totalorder %s268, 32
        %s270 = scalar_select %p269, %s268, 32
        %s271 = smul.u32 128, %s270
      $region44: #{gail_discrim_forward.1} parent=39 // pred_fallthru
        _
      // Predicated region
      $region45: #{gail_discrim_forward.1} parent=39 // pred_check
        %p272 = pneg %p60
      $region46: #{gail_discrim_forward.1} parent=39 // pred_check_branch
        %274 = sbr.rel (%p272) target = $region48
      $region47: #{gail_discrim_forward.1} parent=39 // pred_region
        %s275 = smul.u32 32, %s14
        %s276 = ssub.s32 38, %s275
        %p277 = scmp.lt.s32.totalorder %s276, 32
        %s278 = scalar_select %p277, %s276, 32
        %s279 = smul.u32 128, %s278
        %p280 = scmp.lt.s32.totalorder %s275, 37
        %s281 = scalar_select %p280, %s275, 37
        %s282 = smul.addr %s281, 8
        %s283 = scalar_lea.vmem %s1, %s282
        %s284 = smul.u32 32, %s14
        %s285 = ssub.s32 38, %s284
        %p286 = scmp.lt.s32.totalorder %s285, 32
        %s287 = scalar_select %p286, %s285, 32
        %s288 = smul.u32 128, %s287
      $region48: #{gail_discrim_forward.1} parent=39 // pred_fallthru
        _
    $region40: #{gail_discrim_forward.1} parent=5 // pred_fallthru
      _
    %p289 = scmp.le.s32.totalorder 1, %s14
    %p290 = scmp.lt.s32.totalorder %s14, 3
    %p291 = pnand %p289, %p290
    %p292 = pneg %p291
    // Predicated region
    $region49: #{gail_discrim_forward.1} parent=5 // pred_check
      _
    $region50: #{gail_discrim_forward.1} parent=5 // pred_check_branch
      %294 = sbr.rel (%p291) target = $region52
    $region51: #{gail_discrim_forward.1} parent=5 // pred_region
      %s295 = ssub.s32 %s14, 1
      %s296 = smul.u32 32, %s19
      %s297 = ssub.s32 38, %s296
      %p298 = scmp.lt.s32.totalorder %s297, 32
      %s299 = scalar_select %p298, %s297, 32
      %s300 = smul.u32 128, %s299
      %p301 = scmp.lt.s32.totalorder %s296, 37
      %s302 = scalar_select %p301, %s296, 37
      %s303 = smul.addr %s302, 8
      %s304 = scalar_lea.vmem %s0, %s303
      %p305 = pneg %p40
      %p306 = pneg %p37
      %s307 = smul.u32 32, %s19
      %s308 = ssub.s32 38, %s307
      %p309 = scmp.lt.s32.totalorder %s308, 32
      %s310 = scalar_select %p309, %s308, 32
      %s311 = smul.u32 128, %s310
      %p312 = scmp.lt.s32.totalorder %s307, 37
      %s313 = scalar_select %p312, %s307, 37
      %s314 = smul.addr %s313, 8
      %s315 = scalar_lea.vmem %s1, %s314
      %p316 = pneg %p66
      %p317 = pneg %p63
      %p318 = pneg %p87
      %p319 = pneg %p84
      %p320 = pneg %p108
      %p321 = pneg %p105
      %p322 = pneg %p129
      %p323 = pneg %p126
      %p324 = pneg %p150
      %p325 = pneg %p147
      %p326 = pneg %p171
      %p327 = pneg %p168
      %p328 = pneg %p192
      %p329 = pneg %p189
      %p330 = pneg %p218
      %p331 = pneg %p215
      %p332 = scmp.lt.s32.totalorder %s19, 1
      %s333 = scalar_select %p332, %s19, 1
      %s334 = smul.addr %s333, 2
      %s335 = scalar_lea.vmem %s8, %s334
      %s336 = smul.u32 32, %s19
      %s337 = ssub.s32 38, %s336
      %p338 = scmp.lt.s32.totalorder %s337, 32
      %s339 = scalar_select %p338, %s337, 32
      %s340 = smul.u32 128, %s339
      %p341 = scmp.lt.s32.totalorder %s336, 37
      %s342 = scalar_select %p341, %s336, 37
      %s343 = smul.addr %s342, 8
      %s344 = scalar_lea.vmem %s0, %s343
      %s345 = smul.u32 32, %s19
      %s346 = ssub.s32 38, %s345
      %p347 = scmp.lt.s32.totalorder %s346, 32
      %s348 = scalar_select %p347, %s346, 32
      %s349 = smul.u32 128, %s348
      %s350 = smul.u32 32, %s19
      %s351 = ssub.s32 38, %s350
      %p352 = scmp.lt.s32.totalorder %s351, 32
      %s353 = scalar_select %p352, %s351, 32
      %s354 = smul.u32 128, %s353
      %p355 = scmp.lt.s32.totalorder %s350, 37
      %s356 = scalar_select %p355, %s350, 37
      %s357 = smul.addr %s356, 8
      %s358 = scalar_lea.vmem %s1, %s357
      %s359 = smul.u32 32, %s19
      %s360 = ssub.s32 38, %s359
      %p361 = scmp.lt.s32.totalorder %s360, 32
      %s362 = scalar_select %p361, %s360, 32
      %s363 = smul.u32 128, %s362
      %p364 = scmp.lt.s32.totalorder %s19, 1
      %s365 = scalar_select %p364, %s19, 1
      %s366 = smul.addr %s365, 2
      %s367 = scalar_lea.vmem %s8, %s366
      %v368 = vld [vmem:[%s344] sm:$0xff]
      %v369 = vld [vmem:[%s344 + $0x8] sm:$0xff]
      %v370 = vld [vmem:[%s344 + $0x10] sm:$0xff]
      %v371 = vld [vmem:[%s344 + $0x18] sm:$0xff]
      %v372 = vld [vmem:[%s344 + $0x20] sm:$0xff]
      %v373 = vld [vmem:[%s344 + $0x28] sm:$0xff]
      %v374 = vld [vmem:[%s344 + $0x30] sm:$0xff]
      %v375 = vld [vmem:[%s344 + $0x38] sm:$0xff]
      %v376 = vld [vmem:[%s344 + $0x40] sm:$0xff]
      %v377 = vld [vmem:[%s344 + $0x48] sm:$0xff]
      %v378 = vld [vmem:[%s344 + $0x50] sm:$0xff]
      %v379 = vld [vmem:[%s344 + $0x58] sm:$0xff]
      %v380 = vld [vmem:[%s344 + $0x60] sm:$0xff]
      %v381 = vld [vmem:[%s344 + $0x68] sm:$0xff]
      %v382 = vld [vmem:[%s344 + $0x70] sm:$0xff]
      %v383 = vld [vmem:[%s344 + $0x78] sm:$0xff]
      %v384 = vld [vmem:[%s344 + $0x80] sm:$0xff]
      %v385 = vld [vmem:[%s344 + $0x88] sm:$0xff]
      %v386 = vld [vmem:[%s344 + $0x90] sm:$0xff]
      %v387 = vld [vmem:[%s344 + $0x98] sm:$0xff]
      %v388 = vld [vmem:[%s344 + $0xa0] sm:$0xff]
      %v389 = vld [vmem:[%s344 + $0xa8] sm:$0xff]
      %v390 = vld [vmem:[%s344 + $0xb0] sm:$0xff]
      %v391 = vld [vmem:[%s344 + $0xb8] sm:$0xff]
      %v392 = vld [vmem:[%s344 + $0xc0] sm:$0xff]
      %v393 = vld [vmem:[%s344 + $0xc8] sm:$0xff]
      %v394 = vld [vmem:[%s344 + $0xd0] sm:$0xff]
      %v395 = vld [vmem:[%s344 + $0xd8] sm:$0xff]
      %v396 = vld [vmem:[%s344 + $0xe0] sm:$0xff]
      %v397 = vld [vmem:[%s344 + $0xe8] sm:$0xff]
      %v398 = vld [vmem:[%s344 + $0xf0] sm:$0xff]
      %v399 = vld [vmem:[%s344 + $0xf8] sm:$0xff]
      %v400 = vld [vmem:[%s358] sm:$0xff]
      %v401 = vld [vmem:[%s358 + $0x8] sm:$0xff]
      %v402 = vld [vmem:[%s358 + $0x10] sm:$0xff]
      %v403 = vld [vmem:[%s358 + $0x18] sm:$0xff]
      %v404 = vld [vmem:[%s358 + $0x20] sm:$0xff]
      %v405 = vld [vmem:[%s358 + $0x28] sm:$0xff]
      %v406 = vld [vmem:[%s358 + $0x30] sm:$0xff]
      %v407 = vld [vmem:[%s358 + $0x38] sm:$0xff]
      %v408 = vld [vmem:[%s358 + $0x40] sm:$0xff]
      %v409 = vld [vmem:[%s358 + $0x48] sm:$0xff]
      %v410 = vld [vmem:[%s358 + $0x50] sm:$0xff]
      %v411 = vld [vmem:[%s358 + $0x58] sm:$0xff]
      %v412 = vld [vmem:[%s358 + $0x60] sm:$0xff]
      %v413 = vld [vmem:[%s358 + $0x68] sm:$0xff]
      %v414 = vld [vmem:[%s358 + $0x70] sm:$0xff]
      %v415 = vld [vmem:[%s358 + $0x78] sm:$0xff]
      %v416 = vld [vmem:[%s358 + $0x80] sm:$0xff]
      %v417 = vld [vmem:[%s358 + $0x88] sm:$0xff]
      %v418 = vld [vmem:[%s358 + $0x90] sm:$0xff]
      %v419 = vld [vmem:[%s358 + $0x98] sm:$0xff]
      %v420 = vld [vmem:[%s358 + $0xa0] sm:$0xff]
      %v421 = vld [vmem:[%s358 + $0xa8] sm:$0xff]
      %v422 = vld [vmem:[%s358 + $0xb0] sm:$0xff]
      %v423 = vld [vmem:[%s358 + $0xb8] sm:$0xff]
      %v424 = vld [vmem:[%s358 + $0xc0] sm:$0xff]
      %v425 = vld [vmem:[%s358 + $0xc8] sm:$0xff]
      %v426 = vld [vmem:[%s358 + $0xd0] sm:$0xff]
      %v427 = vld [vmem:[%s358 + $0xd8] sm:$0xff]
      %v428 = vld [vmem:[%s358 + $0xe0] sm:$0xff]
      %v429 = vld [vmem:[%s358 + $0xe8] sm:$0xff]
      %v430 = vld [vmem:[%s358 + $0xf0] sm:$0xff]
      %v431 = vld [vmem:[%s358 + $0xf8] sm:$0xff]
      %v432 = vld [vmem:[%s2] sm:$0x1]
      %v433 = vld [vmem:[%s2 + $0x1] sm:$0x1]
      %v434 = vld [vmem:[%s3] sm:$0x1]
      %v435 = vld [vmem:[%s3 + $0x1] sm:$0x1]
      %v436 = vld [vmem:[%s7] sm:$0x1]
      %v437 = vld [vmem:[%s7 + $0x1] sm:$0x1]
      %v438 = vld [vmem:[%s7 + $0x2] sm:$0x1]
      %v439 = vld [vmem:[%s7 + $0x3] sm:$0x1]
      %v440 = vld [vmem:[%s7 + $0x4] sm:$0x1]
      %v441 = vld [vmem:[%s7 + $0x5] sm:$0x1]
      %v442 = vld [vmem:[%s7 + $0x6] sm:$0x1]
      %v443 = vld [vmem:[%s7 + $0x7] sm:$0x1]
      %vm444 = vcmask 195584
      %v445 = vsel %vm444, %v368, 0.0
      %446 = vadd.xlane.f32.xlu0 %v445
      %v447 = vpop.xlane.xlu0 %446
      %v448 = vsel %vm444, %v369, 0.0
      %449 = vadd.xlane.f32.xlu0 %v448
      %v450 = vpop.xlane.xlu0 %449
      %v451 = vsel %vm444, %v370, 0.0
      %452 = vadd.xlane.f32.xlu0 %v451
      %v453 = vpop.xlane.xlu0 %452
      %v454 = vsel %vm444, %v371, 0.0
      %455 = vadd.xlane.f32.xlu0 %v454
      %v456 = vpop.xlane.xlu0 %455
      %v457 = vsel %vm444, %v372, 0.0
      %458 = vadd.xlane.f32.xlu0 %v457
      %v459 = vpop.xlane.xlu0 %458
      %v460 = vsel %vm444, %v373, 0.0
      %461 = vadd.xlane.f32.xlu0 %v460
      %v462 = vpop.xlane.xlu0 %461
      %v463 = vsel %vm444, %v374, 0.0
      %464 = vadd.xlane.f32.xlu0 %v463
      %v465 = vpop.xlane.xlu0 %464
      %v466 = vsel %vm444, %v375, 0.0
      %467 = vadd.xlane.f32.xlu0 %v466
      %v468 = vpop.xlane.xlu0 %467
      %v469 = vsel %vm444, %v376, 0.0
      %470 = vadd.xlane.f32.xlu0 %v469
      %v471 = vpop.xlane.xlu0 %470
      %v472 = vsel %vm444, %v377, 0.0
      %473 = vadd.xlane.f32.xlu0 %v472
      %v474 = vpop.xlane.xlu0 %473
      %v475 = vsel %vm444, %v378, 0.0
      %476 = vadd.xlane.f32.xlu0 %v475
      %v477 = vpop.xlane.xlu0 %476
      %v478 = vsel %vm444, %v379, 0.0
      %479 = vadd.xlane.f32.xlu0 %v478
      %v480 = vpop.xlane.xlu0 %479
      %v481 = vsel %vm444, %v380, 0.0
      %482 = vadd.xlane.f32.xlu0 %v481
      %v483 = vpop.xlane.xlu0 %482
      %v484 = vsel %vm444, %v381, 0.0
      %485 = vadd.xlane.f32.xlu0 %v484
      %v486 = vpop.xlane.xlu0 %485
      %v487 = vsel %vm444, %v382, 0.0
      %488 = vadd.xlane.f32.xlu0 %v487
      %v489 = vpop.xlane.xlu0 %488
      %v490 = vsel %vm444, %v383, 0.0
      %491 = vadd.xlane.f32.xlu0 %v490
      %v492 = vpop.xlane.xlu0 %491
      %v493 = vsel %vm444, %v384, 0.0
      %494 = vadd.xlane.f32.xlu0 %v493
      %v495 = vpop.xlane.xlu0 %494
      %v496 = vsel %vm444, %v385, 0.0
      %497 = vadd.xlane.f32.xlu0 %v496
      %v498 = vpop.xlane.xlu0 %497
      %v499 = vsel %vm444, %v386, 0.0
      %500 = vadd.xlane.f32.xlu0 %v499
      %v501 = vpop.xlane.xlu0 %500
      %v502 = vsel %vm444, %v387, 0.0
      %503 = vadd.xlane.f32.xlu0 %v502
      %v504 = vpop.xlane.xlu0 %503
      %v505 = vsel %vm444, %v388, 0.0
      %506 = vadd.xlane.f32.xlu0 %v505
      %v507 = vpop.xlane.xlu0 %506
      %v508 = vsel %vm444, %v389, 0.0
      %509 = vadd.xlane.f32.xlu0 %v508
      %v510 = vpop.xlane.xlu0 %509
      %v511 = vsel %vm444, %v390, 0.0
      %512 = vadd.xlane.f32.xlu0 %v511
      %v513 = vpop.xlane.xlu0 %512
      %v514 = vsel %vm444, %v391, 0.0
      %515 = vadd.xlane.f32.xlu0 %v514
      %v516 = vpop.xlane.xlu0 %515
      %v517 = vsel %vm444, %v392, 0.0
      %518 = vadd.xlane.f32.xlu0 %v517
      %v519 = vpop.xlane.xlu0 %518
      %v520 = vsel %vm444, %v393, 0.0
      %521 = vadd.xlane.f32.xlu0 %v520
      %v522 = vpop.xlane.xlu0 %521
      %v523 = vsel %vm444, %v394, 0.0
      %524 = vadd.xlane.f32.xlu0 %v523
      %v525 = vpop.xlane.xlu0 %524
      %v526 = vsel %vm444, %v395, 0.0
      %527 = vadd.xlane.f32.xlu0 %v526
      %v528 = vpop.xlane.xlu0 %527
      %v529 = vsel %vm444, %v396, 0.0
      %530 = vadd.xlane.f32.xlu0 %v529
      %v531 = vpop.xlane.xlu0 %530
      %v532 = vsel %vm444, %v397, 0.0
      %533 = vadd.xlane.f32.xlu0 %v532
      %v534 = vpop.xlane.xlu0 %533
      %v535 = vsel %vm444, %v398, 0.0
      %536 = vadd.xlane.f32.xlu0 %v535
      %v537 = vpop.xlane.xlu0 %536
      %v538 = vsel %vm444, %v399, 0.0
      %539 = vadd.xlane.f32.xlu0 %v538
      %v540 = vpop.xlane.xlu0 %539
      %vm541 = vcmask 64512
      %v542 = vsel %vm541, %v400, 0.0
      %543 = vadd.xlane.f32.xlu0 %v542
      %v544 = vpop.xlane.xlu0 %543
      %v545 = vsel %vm541, %v401, 0.0
      %546 = vadd.xlane.f32.xlu0 %v545
      %v547 = vpop.xlane.xlu0 %546
      %v548 = vsel %vm541, %v402, 0.0
      %549 = vadd.xlane.f32.xlu0 %v548
      %v550 = vpop.xlane.xlu0 %549
      %v551 = vsel %vm541, %v403, 0.0
      %552 = vadd.xlane.f32.xlu0 %v551
      %v553 = vpop.xlane.xlu0 %552
      %v554 = vsel %vm541, %v404, 0.0
      %555 = vadd.xlane.f32.xlu0 %v554
      %v556 = vpop.xlane.xlu0 %555
      %v557 = vsel %vm541, %v405, 0.0
      %558 = vadd.xlane.f32.xlu0 %v557
      %v559 = vpop.xlane.xlu0 %558
      %v560 = vsel %vm541, %v406, 0.0
      %561 = vadd.xlane.f32.xlu0 %v560
      %v562 = vpop.xlane.xlu0 %561
      %v563 = vsel %vm541, %v407, 0.0
      %564 = vadd.xlane.f32.xlu0 %v563
      %v565 = vpop.xlane.xlu0 %564
      %v566 = vsel %vm541, %v408, 0.0
      %567 = vadd.xlane.f32.xlu0 %v566
      %v568 = vpop.xlane.xlu0 %567
      %v569 = vsel %vm541, %v409, 0.0
      %570 = vadd.xlane.f32.xlu0 %v569
      %v571 = vpop.xlane.xlu0 %570
      %v572 = vsel %vm541, %v410, 0.0
      %573 = vadd.xlane.f32.xlu0 %v572
      %v574 = vpop.xlane.xlu0 %573
      %v575 = vsel %vm541, %v411, 0.0
      %576 = vadd.xlane.f32.xlu0 %v575
      %v577 = vpop.xlane.xlu0 %576
      %v578 = vsel %vm541, %v412, 0.0
      %579 = vadd.xlane.f32.xlu0 %v578
      %v580 = vpop.xlane.xlu0 %579
      %v581 = vsel %vm541, %v413, 0.0
      %582 = vadd.xlane.f32.xlu0 %v581
      %v583 = vpop.xlane.xlu0 %582
      %v584 = vsel %vm541, %v414, 0.0
      %585 = vadd.xlane.f32.xlu0 %v584
      %v586 = vpop.xlane.xlu0 %585
      %v587 = vsel %vm541, %v415, 0.0
      %588 = vadd.xlane.f32.xlu0 %v587
      %v589 = vpop.xlane.xlu0 %588
      %v590 = vsel %vm541, %v416, 0.0
      %591 = vadd.xlane.f32.xlu0 %v590
      %v592 = vpop.xlane.xlu0 %591
      %v593 = vsel %vm541, %v417, 0.0
      %594 = vadd.xlane.f32.xlu0 %v593
      %v595 = vpop.xlane.xlu0 %594
      %v596 = vsel %vm541, %v418, 0.0
      %597 = vadd.xlane.f32.xlu0 %v596
      %v598 = vpop.xlane.xlu0 %597
      %v599 = vsel %vm541, %v419, 0.0
      %600 = vadd.xlane.f32.xlu0 %v599
      %v601 = vpop.xlane.xlu0 %600
      %v602 = vsel %vm541, %v420, 0.0
      %603 = vadd.xlane.f32.xlu0 %v602
      %v604 = vpop.xlane.xlu0 %603
      %v605 = vsel %vm541, %v421, 0.0
      %606 = vadd.xlane.f32.xlu0 %v605
      %v607 = vpop.xlane.xlu0 %606
      %v608 = vsel %vm541, %v422, 0.0
      %609 = vadd.xlane.f32.xlu0 %v608
      %v610 = vpop.xlane.xlu0 %609
      %v611 = vsel %vm541, %v423, 0.0
      %612 = vadd.xlane.f32.xlu0 %v611
      %v613 = vpop.xlane.xlu0 %612
      %v614 = vsel %vm541, %v424, 0.0
      %615 = vadd.xlane.f32.xlu0 %v614
      %v616 = vpop.xlane.xlu0 %615
      %v617 = vsel %vm541, %v425, 0.0
      %618 = vadd.xlane.f32.xlu0 %v617
      %v619 = vpop.xlane.xlu0 %618
      %v620 = vsel %vm541, %v426, 0.0
      %621 = vadd.xlane.f32.xlu0 %v620
      %v622 = vpop.xlane.xlu0 %621
      %v623 = vsel %vm541, %v427, 0.0
      %624 = vadd.xlane.f32.xlu0 %v623
      %v625 = vpop.xlane.xlu0 %624
      %v626 = vsel %vm541, %v428, 0.0
      %627 = vadd.xlane.f32.xlu0 %v626
      %v628 = vpop.xlane.xlu0 %627
      %v629 = vsel %vm541, %v429, 0.0
      %630 = vadd.xlane.f32.xlu0 %v629
      %v631 = vpop.xlane.xlu0 %630
      %v632 = vsel %vm541, %v430, 0.0
      %633 = vadd.xlane.f32.xlu0 %v632
      %v634 = vpop.xlane.xlu0 %633
      %v635 = vsel %vm541, %v431, 0.0
      %636 = vadd.xlane.f32.xlu0 %v635
      %v637 = vpop.xlane.xlu0 %636
      %v638 = vadd.f32 %v447, %v544
      %v639 = vadd.f32 %v450, %v547
      %v640 = vadd.f32 %v453, %v550
      %v641 = vadd.f32 %v456, %v553
      %v642 = vadd.f32 %v459, %v556
      %v643 = vadd.f32 %v462, %v559
      %v644 = vadd.f32 %v465, %v562
      %v645 = vadd.f32 %v468, %v565
      %v646 = vadd.f32 %v471, %v568
      %v647 = vadd.f32 %v474, %v571
      %v648 = vadd.f32 %v477, %v574
      %v649 = vadd.f32 %v480, %v577
      %v650 = vadd.f32 %v483, %v580
      %v651 = vadd.f32 %v486, %v583
      %v652 = vadd.f32 %v489, %v586
      %v653 = vadd.f32 %v492, %v589
      %v654 = vadd.f32 %v495, %v592
      %v655 = vadd.f32 %v498, %v595
      %v656 = vadd.f32 %v501, %v598
      %v657 = vadd.f32 %v504, %v601
      %v658 = vadd.f32 %v507, %v604
      %v659 = vadd.f32 %v510, %v607
      %v660 = vadd.f32 %v513, %v610
      %v661 = vadd.f32 %v516, %v613
      %v662 = vadd.f32 %v519, %v616
      %v663 = vadd.f32 %v522, %v619
      %v664 = vadd.f32 %v525, %v622
      %v665 = vadd.f32 %v528, %v625
      %v666 = vadd.f32 %v531, %v628
      %v667 = vadd.f32 %v534, %v631
      %v668 = vadd.f32 %v537, %v634
      %v669 = vadd.f32 %v540, %v637
      %v670 = vmul.f32 %v638, 0.03125
      %v671 = vmul.f32 %v639, 0.03125
      %v672 = vmul.f32 %v640, 0.03125
      %v673 = vmul.f32 %v641, 0.03125
      %v674 = vmul.f32 %v642, 0.03125
      %v675 = vmul.f32 %v643, 0.03125
      %v676 = vmul.f32 %v644, 0.03125
      %v677 = vmul.f32 %v645, 0.03125
      %v678 = vmul.f32 %v646, 0.03125
      %v679 = vmul.f32 %v647, 0.03125
      %v680 = vmul.f32 %v648, 0.03125
      %v681 = vmul.f32 %v649, 0.03125
      %v682 = vmul.f32 %v650, 0.03125
      %v683 = vmul.f32 %v651, 0.03125
      %v684 = vmul.f32 %v652, 0.03125
      %v685 = vmul.f32 %v653, 0.03125
      %v686 = vmul.f32 %v654, 0.03125
      %v687 = vmul.f32 %v655, 0.03125
      %v688 = vmul.f32 %v656, 0.03125
      %v689 = vmul.f32 %v657, 0.03125
      %v690 = vmul.f32 %v658, 0.03125
      %v691 = vmul.f32 %v659, 0.03125
      %v692 = vmul.f32 %v660, 0.03125
      %v693 = vmul.f32 %v661, 0.03125
      %v694 = vmul.f32 %v662, 0.03125
      %v695 = vmul.f32 %v663, 0.03125
      %v696 = vmul.f32 %v664, 0.03125
      %v697 = vmul.f32 %v665, 0.03125
      %v698 = vmul.f32 %v666, 0.03125
      %v699 = vmul.f32 %v667, 0.03125
      %v700 = vmul.f32 %v668, 0.03125
      %v701 = vmul.f32 %v669, 0.03125
      %v702 = vsub.f32 %v368, %v670
      %v703 = vsub.f32 %v369, %v671
      %v704 = vsub.f32 %v370, %v672
      %v705 = vsub.f32 %v371, %v673
      %v706 = vsub.f32 %v372, %v674
      %v707 = vsub.f32 %v373, %v675
      %v708 = vsub.f32 %v374, %v676
      %v709 = vsub.f32 %v375, %v677
      %v710 = vsub.f32 %v376, %v678
      %v711 = vsub.f32 %v377, %v679
      %v712 = vsub.f32 %v378, %v680
      %v713 = vsub.f32 %v379, %v681
      %v714 = vsub.f32 %v380, %v682
      %v715 = vsub.f32 %v381, %v683
      %v716 = vsub.f32 %v382, %v684
      %v717 = vsub.f32 %v383, %v685
      %v718 = vsub.f32 %v384, %v686
      %v719 = vsub.f32 %v385, %v687
      %v720 = vsub.f32 %v386, %v688
      %v721 = vsub.f32 %v387, %v689
      %v722 = vsub.f32 %v388, %v690
      %v723 = vsub.f32 %v389, %v691
      %v724 = vsub.f32 %v390, %v692
      %v725 = vsub.f32 %v391, %v693
      %v726 = vsub.f32 %v392, %v694
      %v727 = vsub.f32 %v393, %v695
      %v728 = vsub.f32 %v394, %v696
      %v729 = vsub.f32 %v395, %v697
      %v730 = vsub.f32 %v396, %v698
      %v731 = vsub.f32 %v397, %v699
      %v732 = vsub.f32 %v398, %v700
      %v733 = vsub.f32 %v399, %v701
      %v734 = vsub.f32 %v400, %v670
      %v735 = vsub.f32 %v401, %v671
      %v736 = vsub.f32 %v402, %v672
      %v737 = vsub.f32 %v403, %v673
      %v738 = vsub.f32 %v404, %v674
      %v739 = vsub.f32 %v405, %v675
      %v740 = vsub.f32 %v406, %v676
      %v741 = vsub.f32 %v407, %v677
      %v742 = vsub.f32 %v408, %v678
      %v743 = vsub.f32 %v409, %v679
      %v744 = vsub.f32 %v410, %v680
      %v745 = vsub.f32 %v411, %v681
      %v746 = vsub.f32 %v412, %v682
      %v747 = vsub.f32 %v413, %v683
      %v748 = vsub.f32 %v414, %v684
      %v749 = vsub.f32 %v415, %v685
      %v750 = vsub.f32 %v416, %v686
      %v751 = vsub.f32 %v417, %v687
      %v752 = vsub.f32 %v418, %v688
      %v753 = vsub.f32 %v419, %v689
      %v754 = vsub.f32 %v420, %v690
      %v755 = vsub.f32 %v421, %v691
      %v756 = vsub.f32 %v422, %v692
      %v757 = vsub.f32 %v423, %v693
      %v758 = vsub.f32 %v424, %v694
      %v759 = vsub.f32 %v425, %v695
      %v760 = vsub.f32 %v426, %v696
      %v761 = vsub.f32 %v427, %v697
      %v762 = vsub.f32 %v428, %v698
      %v763 = vsub.f32 %v429, %v699
      %v764 = vsub.f32 %v430, %v700
      %v765 = vsub.f32 %v431, %v701
      %v766 = vmul.f32 %v702, %v702
      %v767 = vmul.f32 %v703, %v703
      %v768 = vmul.f32 %v704, %v704
      %v769 = vmul.f32 %v705, %v705
      %v770 = vmul.f32 %v706, %v706
      %v771 = vmul.f32 %v707, %v707
      %v772 = vmul.f32 %v708, %v708
      %v773 = vmul.f32 %v709, %v709
      %v774 = vmul.f32 %v710, %v710
      %v775 = vmul.f32 %v711, %v711
      %v776 = vmul.f32 %v712, %v712
      %v777 = vmul.f32 %v713, %v713
      %v778 = vmul.f32 %v714, %v714
      %v779 = vmul.f32 %v715, %v715
      %v780 = vmul.f32 %v716, %v716
      %v781 = vmul.f32 %v717, %v717
      %v782 = vmul.f32 %v718, %v718
      %v783 = vmul.f32 %v719, %v719
      %v784 = vmul.f32 %v720, %v720
      %v785 = vmul.f32 %v721, %v721
      %v786 = vmul.f32 %v722, %v722
      %v787 = vmul.f32 %v723, %v723
      %v788 = vmul.f32 %v724, %v724
      %v789 = vmul.f32 %v725, %v725
      %v790 = vmul.f32 %v726, %v726
      %v791 = vmul.f32 %v727, %v727
      %v792 = vmul.f32 %v728, %v728
      %v793 = vmul.f32 %v729, %v729
      %v794 = vmul.f32 %v730, %v730
      %v795 = vmul.f32 %v731, %v731
      %v796 = vmul.f32 %v732, %v732
      %v797 = vmul.f32 %v733, %v733
      %v798 = vsel %vm444, %v766, 0.0
      %799 = vadd.xlane.f32.xlu0 %v798
      %v800 = vpop.xlane.xlu0 %799
      %v801 = vsel %vm444, %v767, 0.0
      %802 = vadd.xlane.f32.xlu0 %v801
      %v803 = vpop.xlane.xlu0 %802
      %v804 = vsel %vm444, %v768, 0.0
      %805 = vadd.xlane.f32.xlu0 %v804
      %v806 = vpop.xlane.xlu0 %805
      %v807 = vsel %vm444, %v769, 0.0
      %808 = vadd.xlane.f32.xlu0 %v807
      %v809 = vpop.xlane.xlu0 %808
      %v810 = vsel %vm444, %v770, 0.0
      %811 = vadd.xlane.f32.xlu0 %v810
      %v812 = vpop.xlane.xlu0 %811
      %v813 = vsel %vm444, %v771, 0.0
      %814 = vadd.xlane.f32.xlu0 %v813
      %v815 = vpop.xlane.xlu0 %814
      %v816 = vsel %vm444, %v772, 0.0
      %817 = vadd.xlane.f32.xlu0 %v816
      %v818 = vpop.xlane.xlu0 %817
      %v819 = vsel %vm444, %v773, 0.0
      %820 = vadd.xlane.f32.xlu0 %v819
      %v821 = vpop.xlane.xlu0 %820
      %v822 = vsel %vm444, %v774, 0.0
      %823 = vadd.xlane.f32.xlu0 %v822
      %v824 = vpop.xlane.xlu0 %823
      %v825 = vsel %vm444, %v775, 0.0
      %826 = vadd.xlane.f32.xlu0 %v825
      %v827 = vpop.xlane.xlu0 %826
      %v828 = vsel %vm444, %v776, 0.0
      %829 = vadd.xlane.f32.xlu0 %v828
      %v830 = vpop.xlane.xlu0 %829
      %v831 = vsel %vm444, %v777, 0.0
      %832 = vadd.xlane.f32.xlu0 %v831
      %v833 = vpop.xlane.xlu0 %832
      %v834 = vsel %vm444, %v778, 0.0
      %835 = vadd.xlane.f32.xlu0 %v834
      %v836 = vpop.xlane.xlu0 %835
      %v837 = vsel %vm444, %v779, 0.0
      %838 = vadd.xlane.f32.xlu0 %v837
      %v839 = vpop.xlane.xlu0 %838
      %v840 = vsel %vm444, %v780, 0.0
      %841 = vadd.xlane.f32.xlu0 %v840
      %v842 = vpop.xlane.xlu0 %841
      %v843 = vsel %vm444, %v781, 0.0
      %844 = vadd.xlane.f32.xlu0 %v843
      %v845 = vpop.xlane.xlu0 %844
      %v846 = vsel %vm444, %v782, 0.0
      %847 = vadd.xlane.f32.xlu0 %v846
      %v848 = vpop.xlane.xlu0 %847
      %v849 = vsel %vm444, %v783, 0.0
      %850 = vadd.xlane.f32.xlu0 %v849
      %v851 = vpop.xlane.xlu0 %850
      %v852 = vsel %vm444, %v784, 0.0
      %853 = vadd.xlane.f32.xlu0 %v852
      %v854 = vpop.xlane.xlu0 %853
      %v855 = vsel %vm444, %v785, 0.0
      %856 = vadd.xlane.f32.xlu0 %v855
      %v857 = vpop.xlane.xlu0 %856
      %v858 = vsel %vm444, %v786, 0.0
      %859 = vadd.xlane.f32.xlu0 %v858
      %v860 = vpop.xlane.xlu0 %859
      %v861 = vsel %vm444, %v787, 0.0
      %862 = vadd.xlane.f32.xlu0 %v861
      %v863 = vpop.xlane.xlu0 %862
      %v864 = vsel %vm444, %v788, 0.0
      %865 = vadd.xlane.f32.xlu0 %v864
      %v866 = vpop.xlane.xlu0 %865
      %v867 = vsel %vm444, %v789, 0.0
      %868 = vadd.xlane.f32.xlu0 %v867
      %v869 = vpop.xlane.xlu0 %868
      %v870 = vsel %vm444, %v790, 0.0
      %871 = vadd.xlane.f32.xlu0 %v870
      %v872 = vpop.xlane.xlu0 %871
      %v873 = vsel %vm444, %v791, 0.0
      %874 = vadd.xlane.f32.xlu0 %v873
      %v875 = vpop.xlane.xlu0 %874
      %v876 = vsel %vm444, %v792, 0.0
      %877 = vadd.xlane.f32.xlu0 %v876
      %v878 = vpop.xlane.xlu0 %877
      %v879 = vsel %vm444, %v793, 0.0
      %880 = vadd.xlane.f32.xlu0 %v879
      %v881 = vpop.xlane.xlu0 %880
      %v882 = vsel %vm444, %v794, 0.0
      %883 = vadd.xlane.f32.xlu0 %v882
      %v884 = vpop.xlane.xlu0 %883
      %v885 = vsel %vm444, %v795, 0.0
      %886 = vadd.xlane.f32.xlu0 %v885
      %v887 = vpop.xlane.xlu0 %886
      %v888 = vsel %vm444, %v796, 0.0
      %889 = vadd.xlane.f32.xlu0 %v888
      %v890 = vpop.xlane.xlu0 %889
      %v891 = vsel %vm444, %v797, 0.0
      %892 = vadd.xlane.f32.xlu0 %v891
      %v893 = vpop.xlane.xlu0 %892
      %v894 = vmul.f32 %v734, %v734
      %v895 = vmul.f32 %v735, %v735
      %v896 = vmul.f32 %v736, %v736
      %v897 = vmul.f32 %v737, %v737
      %v898 = vmul.f32 %v738, %v738
      %v899 = vmul.f32 %v739, %v739
      %v900 = vmul.f32 %v740, %v740
      %v901 = vmul.f32 %v741, %v741
      %v902 = vmul.f32 %v742, %v742
      %v903 = vmul.f32 %v743, %v743
      %v904 = vmul.f32 %v744, %v744
      %v905 = vmul.f32 %v745, %v745
      %v906 = vmul.f32 %v746, %v746
      %v907 = vmul.f32 %v747, %v747
      %v908 = vmul.f32 %v748, %v748
      %v909 = vmul.f32 %v749, %v749
      %v910 = vmul.f32 %v750, %v750
      %v911 = vmul.f32 %v751, %v751
      %v912 = vmul.f32 %v752, %v752
      %v913 = vmul.f32 %v753, %v753
      %v914 = vmul.f32 %v754, %v754
      %v915 = vmul.f32 %v755, %v755
      %v916 = vmul.f32 %v756, %v756
      %v917 = vmul.f32 %v757, %v757
      %v918 = vmul.f32 %v758, %v758
      %v919 = vmul.f32 %v759, %v759
      %v920 = vmul.f32 %v760, %v760
      %v921 = vmul.f32 %v761, %v761
      %v922 = vmul.f32 %v762, %v762
      %v923 = vmul.f32 %v763, %v763
      %v924 = vmul.f32 %v764, %v764
      %v925 = vmul.f32 %v765, %v765
      %v926 = vsel %vm541, %v894, 0.0
      %927 = vadd.xlane.f32.xlu0 %v926
      %v928 = vpop.xlane.xlu0 %927
      %v929 = vsel %vm541, %v895, 0.0
      %930 = vadd.xlane.f32.xlu0 %v929
      %v931 = vpop.xlane.xlu0 %930
      %v932 = vsel %vm541, %v896, 0.0
      %933 = vadd.xlane.f32.xlu0 %v932
      %v934 = vpop.xlane.xlu0 %933
      %v935 = vsel %vm541, %v897, 0.0
      %936 = vadd.xlane.f32.xlu0 %v935
      %v937 = vpop.xlane.xlu0 %936
      %v938 = vsel %vm541, %v898, 0.0
      %939 = vadd.xlane.f32.xlu0 %v938
      %v940 = vpop.xlane.xlu0 %939
      %v941 = vsel %vm541, %v899, 0.0
      %942 = vadd.xlane.f32.xlu0 %v941
      %v943 = vpop.xlane.xlu0 %942
      %v944 = vsel %vm541, %v900, 0.0
      %945 = vadd.xlane.f32.xlu0 %v944
      %v946 = vpop.xlane.xlu0 %945
      %v947 = vsel %vm541, %v901, 0.0
      %948 = vadd.xlane.f32.xlu0 %v947
      %v949 = vpop.xlane.xlu0 %948
      %v950 = vsel %vm541, %v902, 0.0
      %951 = vadd.xlane.f32.xlu0 %v950
      %v952 = vpop.xlane.xlu0 %951
      %v953 = vsel %vm541, %v903, 0.0
      %954 = vadd.xlane.f32.xlu0 %v953
      %v955 = vpop.xlane.xlu0 %954
      %v956 = vsel %vm541, %v904, 0.0
      %957 = vadd.xlane.f32.xlu0 %v956
      %v958 = vpop.xlane.xlu0 %957
      %v959 = vsel %vm541, %v905, 0.0
      %960 = vadd.xlane.f32.xlu0 %v959
      %v961 = vpop.xlane.xlu0 %960
      %v962 = vsel %vm541, %v906, 0.0
      %963 = vadd.xlane.f32.xlu0 %v962
      %v964 = vpop.xlane.xlu0 %963
      %v965 = vsel %vm541, %v907, 0.0
      %966 = vadd.xlane.f32.xlu0 %v965
      %v967 = vpop.xlane.xlu0 %966
      %v968 = vsel %vm541, %v908, 0.0
      %969 = vadd.xlane.f32.xlu0 %v968
      %v970 = vpop.xlane.xlu0 %969
      %v971 = vsel %vm541, %v909, 0.0
      %972 = vadd.xlane.f32.xlu0 %v971
      %v973 = vpop.xlane.xlu0 %972
      %v974 = vsel %vm541, %v910, 0.0
      %975 = vadd.xlane.f32.xlu0 %v974
      %v976 = vpop.xlane.xlu0 %975
      %v977 = vsel %vm541, %v911, 0.0
      %978 = vadd.xlane.f32.xlu0 %v977
      %v979 = vpop.xlane.xlu0 %978
      %v980 = vsel %vm541, %v912, 0.0
      %981 = vadd.xlane.f32.xlu0 %v980
      %v982 = vpop.xlane.xlu0 %981
      %v983 = vsel %vm541, %v913, 0.0
      %984 = vadd.xlane.f32.xlu0 %v983
      %v985 = vpop.xlane.xlu0 %984
      %v986 = vsel %vm541, %v914, 0.0
      %987 = vadd.xlane.f32.xlu0 %v986
      %v988 = vpop.xlane.xlu0 %987
      %v989 = vsel %vm541, %v915, 0.0
      %990 = vadd.xlane.f32.xlu0 %v989
      %v991 = vpop.xlane.xlu0 %990
      %v992 = vsel %vm541, %v916, 0.0
      %993 = vadd.xlane.f32.xlu0 %v992
      %v994 = vpop.xlane.xlu0 %993
      %v995 = vsel %vm541, %v917, 0.0
      %996 = vadd.xlane.f32.xlu0 %v995
      %v997 = vpop.xlane.xlu0 %996
      %v998 = vsel %vm541, %v918, 0.0
      %999 = vadd.xlane.f32.xlu0 %v998
      %v1000 = vpop.xlane.xlu0 %999
      %v1001 = vsel %vm541, %v919, 0.0
      %1002 = vadd.xlane.f32.xlu0 %v1001
      %v1003 = vpop.xlane.xlu0 %1002
      %v1004 = vsel %vm541, %v920, 0.0
      %1005 = vadd.xlane.f32.xlu0 %v1004
      %v1006 = vpop.xlane.xlu0 %1005
      %v1007 = vsel %vm541, %v921, 0.0
      %1008 = vadd.xlane.f32.xlu0 %v1007
      %v1009 = vpop.xlane.xlu0 %1008
      %v1010 = vsel %vm541, %v922, 0.0
      %1011 = vadd.xlane.f32.xlu0 %v1010
      %v1012 = vpop.xlane.xlu0 %1011
      %v1013 = vsel %vm541, %v923, 0.0
      %1014 = vadd.xlane.f32.xlu0 %v1013
      %v1015 = vpop.xlane.xlu0 %1014
      %v1016 = vsel %vm541, %v924, 0.0
      %1017 = vadd.xlane.f32.xlu0 %v1016
      %v1018 = vpop.xlane.xlu0 %1017
      %v1019 = vsel %vm541, %v925, 0.0
      %1020 = vadd.xlane.f32.xlu0 %v1019
      %v1021 = vpop.xlane.xlu0 %1020
      %v1022 = vadd.f32 %v800, %v928
      %v1023 = vadd.f32 %v803, %v931
      %v1024 = vadd.f32 %v806, %v934
      %v1025 = vadd.f32 %v809, %v937
      %v1026 = vadd.f32 %v812, %v940
      %v1027 = vadd.f32 %v815, %v943
      %v1028 = vadd.f32 %v818, %v946
      %v1029 = vadd.f32 %v821, %v949
      %v1030 = vadd.f32 %v824, %v952
      %v1031 = vadd.f32 %v827, %v955
      %v1032 = vadd.f32 %v830, %v958
      %v1033 = vadd.f32 %v833, %v961
      %v1034 = vadd.f32 %v836, %v964
      %v1035 = vadd.f32 %v839, %v967
      %v1036 = vadd.f32 %v842, %v970
      %v1037 = vadd.f32 %v845, %v973
      %v1038 = vadd.f32 %v848, %v976
      %v1039 = vadd.f32 %v851, %v979
      %v1040 = vadd.f32 %v854, %v982
      %v1041 = vadd.f32 %v857, %v985
      %v1042 = vadd.f32 %v860, %v988
      %v1043 = vadd.f32 %v863, %v991
      %v1044 = vadd.f32 %v866, %v994
      %v1045 = vadd.f32 %v869, %v997
      %v1046 = vadd.f32 %v872, %v1000
      %v1047 = vadd.f32 %v875, %v1003
      %v1048 = vadd.f32 %v878, %v1006
      %v1049 = vadd.f32 %v881, %v1009
      %v1050 = vadd.f32 %v884, %v1012
      %v1051 = vadd.f32 %v887, %v1015
      %v1052 = vadd.f32 %v890, %v1018
      %v1053 = vadd.f32 %v893, %v1021
      %v1054 = vmul.f32 %v1022, 0.03125
      %v1055 = vmul.f32 %v1023, 0.03125
      %v1056 = vmul.f32 %v1024, 0.03125
      %v1057 = vmul.f32 %v1025, 0.03125
      %v1058 = vmul.f32 %v1026, 0.03125
      %v1059 = vmul.f32 %v1027, 0.03125
      %v1060 = vmul.f32 %v1028, 0.03125
      %v1061 = vmul.f32 %v1029, 0.03125
      %v1062 = vmul.f32 %v1030, 0.03125
      %v1063 = vmul.f32 %v1031, 0.03125
      %v1064 = vmul.f32 %v1032, 0.03125
      %v1065 = vmul.f32 %v1033, 0.03125
      %v1066 = vmul.f32 %v1034, 0.03125
      %v1067 = vmul.f32 %v1035, 0.03125
      %v1068 = vmul.f32 %v1036, 0.03125
      %v1069 = vmul.f32 %v1037, 0.03125
      %v1070 = vmul.f32 %v1038, 0.03125
      %v1071 = vmul.f32 %v1039, 0.03125
      %v1072 = vmul.f32 %v1040, 0.03125
      %v1073 = vmul.f32 %v1041, 0.03125
      %v1074 = vmul.f32 %v1042, 0.03125
      %v1075 = vmul.f32 %v1043, 0.03125
      %v1076 = vmul.f32 %v1044, 0.03125
      %v1077 = vmul.f32 %v1045, 0.03125
      %v1078 = vmul.f32 %v1046, 0.03125
      %v1079 = vmul.f32 %v1047, 0.03125
      %v1080 = vmul.f32 %v1048, 0.03125
      %v1081 = vmul.f32 %v1049, 0.03125
      %v1082 = vmul.f32 %v1050, 0.03125
      %v1083 = vmul.f32 %v1051, 0.03125
      %v1084 = vmul.f32 %v1052, 0.03125
      %v1085 = vmul.f32 %v1053, 0.03125
      %v1086 = vadd.f32 %v1054, 1e-05
      %v1087 = vadd.f32 %v1055, 1e-05
      %v1088 = vadd.f32 %v1056, 1e-05
      %v1089 = vadd.f32 %v1057, 1e-05
      %v1090 = vadd.f32 %v1058, 1e-05
      %v1091 = vadd.f32 %v1059, 1e-05
      %v1092 = vadd.f32 %v1060, 1e-05
      %v1093 = vadd.f32 %v1061, 1e-05
      %v1094 = vadd.f32 %v1062, 1e-05
      %v1095 = vadd.f32 %v1063, 1e-05
      %v1096 = vadd.f32 %v1064, 1e-05
      %v1097 = vadd.f32 %v1065, 1e-05
      %v1098 = vadd.f32 %v1066, 1e-05
      %v1099 = vadd.f32 %v1067, 1e-05
      %v1100 = vadd.f32 %v1068, 1e-05
      %v1101 = vadd.f32 %v1069, 1e-05
      %v1102 = vadd.f32 %v1070, 1e-05
      %v1103 = vadd.f32 %v1071, 1e-05
      %v1104 = vadd.f32 %v1072, 1e-05
      %v1105 = vadd.f32 %v1073, 1e-05
      %v1106 = vadd.f32 %v1074, 1e-05
      %v1107 = vadd.f32 %v1075, 1e-05
      %v1108 = vadd.f32 %v1076, 1e-05
      %v1109 = vadd.f32 %v1077, 1e-05
      %v1110 = vadd.f32 %v1078, 1e-05
      %v1111 = vadd.f32 %v1079, 1e-05
      %v1112 = vadd.f32 %v1080, 1e-05
      %v1113 = vadd.f32 %v1081, 1e-05
      %v1114 = vadd.f32 %v1082, 1e-05
      %v1115 = vadd.f32 %v1083, 1e-05
      %v1116 = vadd.f32 %v1084, 1e-05
      %v1117 = vadd.f32 %v1085, 1e-05
      %v1118 = vrsqrt.pop %v1086
      %v1119 = vrsqrt.pop %v1087
      %v1120 = vrsqrt.pop %v1088
      %v1121 = vrsqrt.pop %v1089
      %v1122 = vrsqrt.pop %v1090
      %v1123 = vrsqrt.pop %v1091
      %v1124 = vrsqrt.pop %v1092
      %v1125 = vrsqrt.pop %v1093
      %v1126 = vrsqrt.pop %v1094
      %v1127 = vrsqrt.pop %v1095
      %v1128 = vrsqrt.pop %v1096
      %v1129 = vrsqrt.pop %v1097
      %v1130 = vrsqrt.pop %v1098
      %v1131 = vrsqrt.pop %v1099
      %v1132 = vrsqrt.pop %v1100
      %v1133 = vrsqrt.pop %v1101
      %v1134 = vrsqrt.pop %v1102
      %v1135 = vrsqrt.pop %v1103
      %v1136 = vrsqrt.pop %v1104
      %v1137 = vrsqrt.pop %v1105
      %v1138 = vrsqrt.pop %v1106
      %v1139 = vrsqrt.pop %v1107
      %v1140 = vrsqrt.pop %v1108
      %v1141 = vrsqrt.pop %v1109
      %v1142 = vrsqrt.pop %v1110
      %v1143 = vrsqrt.pop %v1111
      %v1144 = vrsqrt.pop %v1112
      %v1145 = vrsqrt.pop %v1113
      %v1146 = vrsqrt.pop %v1114
      %v1147 = vrsqrt.pop %v1115
      %v1148 = vrsqrt.pop %v1116
      %v1149 = vrsqrt.pop %v1117
      %v1150 = vmul.f32 %v702, %v1118
      %v1151 = vmul.f32 %v703, %v1119
      %v1152 = vmul.f32 %v704, %v1120
      %v1153 = vmul.f32 %v705, %v1121
      %v1154 = vmul.f32 %v706, %v1122
      %v1155 = vmul.f32 %v707, %v1123
      %v1156 = vmul.f32 %v708, %v1124
      %v1157 = vmul.f32 %v709, %v1125
      %v1158 = vmul.f32 %v710, %v1126
      %v1159 = vmul.f32 %v711, %v1127
      %v1160 = vmul.f32 %v712, %v1128
      %v1161 = vmul.f32 %v713, %v1129
      %v1162 = vmul.f32 %v714, %v1130
      %v1163 = vmul.f32 %v715, %v1131
      %v1164 = vmul.f32 %v716, %v1132
      %v1165 = vmul.f32 %v717, %v1133
      %v1166 = vmul.f32 %v718, %v1134
      %v1167 = vmul.f32 %v719, %v1135
      %v1168 = vmul.f32 %v720, %v1136
      %v1169 = vmul.f32 %v721, %v1137
      %v1170 = vmul.f32 %v722, %v1138
      %v1171 = vmul.f32 %v723, %v1139
      %v1172 = vmul.f32 %v724, %v1140
      %v1173 = vmul.f32 %v725, %v1141
      %v1174 = vmul.f32 %v726, %v1142
      %v1175 = vmul.f32 %v727, %v1143
      %v1176 = vmul.f32 %v728, %v1144
      %v1177 = vmul.f32 %v729, %v1145
      %v1178 = vmul.f32 %v730, %v1146
      %v1179 = vmul.f32 %v731, %v1147
      %v1180 = vmul.f32 %v732, %v1148
      %v1181 = vmul.f32 %v733, %v1149
      %v1182 = vlaneseq
      %v1183 = vshrl.u32 %v1182, 7
      %v1184 = vsub.s32 0, %v1183
      %v1185 = vrot.slane %v432, %v1184
      %v1186 = vmul.f32 %v1150, %v1185
      %v1187 = vmul.f32 %v1151, %v1185
      %v1188 = vmul.f32 %v1152, %v1185
      %v1189 = vmul.f32 %v1153, %v1185
      %v1190 = vmul.f32 %v1154, %v1185
      %v1191 = vmul.f32 %v1155, %v1185
      %v1192 = vmul.f32 %v1156, %v1185
      %v1193 = vmul.f32 %v1157, %v1185
      %v1194 = vmul.f32 %v1158, %v1185
      %v1195 = vmul.f32 %v1159, %v1185
      %v1196 = vmul.f32 %v1160, %v1185
      %v1197 = vmul.f32 %v1161, %v1185
      %v1198 = vmul.f32 %v1162, %v1185
      %v1199 = vmul.f32 %v1163, %v1185
      %v1200 = vmul.f32 %v1164, %v1185
      %v1201 = vmul.f32 %v1165, %v1185
      %v1202 = vmul.f32 %v1166, %v1185
      %v1203 = vmul.f32 %v1167, %v1185
      %v1204 = vmul.f32 %v1168, %v1185
      %v1205 = vmul.f32 %v1169, %v1185
      %v1206 = vmul.f32 %v1170, %v1185
      %v1207 = vmul.f32 %v1171, %v1185
      %v1208 = vmul.f32 %v1172, %v1185
      %v1209 = vmul.f32 %v1173, %v1185
      %v1210 = vmul.f32 %v1174, %v1185
      %v1211 = vmul.f32 %v1175, %v1185
      %v1212 = vmul.f32 %v1176, %v1185
      %v1213 = vmul.f32 %v1177, %v1185
      %v1214 = vmul.f32 %v1178, %v1185
      %v1215 = vmul.f32 %v1179, %v1185
      %v1216 = vmul.f32 %v1180, %v1185
      %v1217 = vmul.f32 %v1181, %v1185
      %v1218 = vlaneseq
      %v1219 = vshrl.u32 %v1218, 7
      %v1220 = vsub.s32 0, %v1219
      %v1221 = vrot.slane %v433, %v1220
      %v1222 = vadd.f32 %v1186, %v1221
      %v1223 = vadd.f32 %v1187, %v1221
      %v1224 = vadd.f32 %v1188, %v1221
      %v1225 = vadd.f32 %v1189, %v1221
      %v1226 = vadd.f32 %v1190, %v1221
      %v1227 = vadd.f32 %v1191, %v1221
      %v1228 = vadd.f32 %v1192, %v1221
      %v1229 = vadd.f32 %v1193, %v1221
      %v1230 = vadd.f32 %v1194, %v1221
      %v1231 = vadd.f32 %v1195, %v1221
      %v1232 = vadd.f32 %v1196, %v1221
      %v1233 = vadd.f32 %v1197, %v1221
      %v1234 = vadd.f32 %v1198, %v1221
      %v1235 = vadd.f32 %v1199, %v1221
      %v1236 = vadd.f32 %v1200, %v1221
      %v1237 = vadd.f32 %v1201, %v1221
      %v1238 = vadd.f32 %v1202, %v1221
      %v1239 = vadd.f32 %v1203, %v1221
      %v1240 = vadd.f32 %v1204, %v1221
      %v1241 = vadd.f32 %v1205, %v1221
      %v1242 = vadd.f32 %v1206, %v1221
      %v1243 = vadd.f32 %v1207, %v1221
      %v1244 = vadd.f32 %v1208, %v1221
      %v1245 = vadd.f32 %v1209, %v1221
      %v1246 = vadd.f32 %v1210, %v1221
      %v1247 = vadd.f32 %v1211, %v1221
      %v1248 = vadd.f32 %v1212, %v1221
      %v1249 = vadd.f32 %v1213, %v1221
      %v1250 = vadd.f32 %v1214, %v1221
      %v1251 = vadd.f32 %v1215, %v1221
      %v1252 = vadd.f32 %v1216, %v1221
      %v1253 = vadd.f32 %v1217, %v1221
      %v1254 = vmul.f32 %v734, %v1118
      %v1255 = vmul.f32 %v735, %v1119
      %v1256 = vmul.f32 %v736, %v1120
      %v1257 = vmul.f32 %v737, %v1121
      %v1258 = vmul.f32 %v738, %v1122
      %v1259 = vmul.f32 %v739, %v1123
      %v1260 = vmul.f32 %v740, %v1124
      %v1261 = vmul.f32 %v741, %v1125
      %v1262 = vmul.f32 %v742, %v1126
      %v1263 = vmul.f32 %v743, %v1127
      %v1264 = vmul.f32 %v744, %v1128
      %v1265 = vmul.f32 %v745, %v1129
      %v1266 = vmul.f32 %v746, %v1130
      %v1267 = vmul.f32 %v747, %v1131
      %v1268 = vmul.f32 %v748, %v1132
      %v1269 = vmul.f32 %v749, %v1133
      %v1270 = vmul.f32 %v750, %v1134
      %v1271 = vmul.f32 %v751, %v1135
      %v1272 = vmul.f32 %v752, %v1136
      %v1273 = vmul.f32 %v753, %v1137
      %v1274 = vmul.f32 %v754, %v1138
      %v1275 = vmul.f32 %v755, %v1139
      %v1276 = vmul.f32 %v756, %v1140
      %v1277 = vmul.f32 %v757, %v1141
      %v1278 = vmul.f32 %v758, %v1142
      %v1279 = vmul.f32 %v759, %v1143
      %v1280 = vmul.f32 %v760, %v1144
      %v1281 = vmul.f32 %v761, %v1145
      %v1282 = vmul.f32 %v762, %v1146
      %v1283 = vmul.f32 %v763, %v1147
      %v1284 = vmul.f32 %v764, %v1148
      %v1285 = vmul.f32 %v765, %v1149
      %v1286 = vlaneseq
      %v1287 = vshrl.u32 %v1286, 7
      %v1288 = vsub.s32 0, %v1287
      %v1289 = vrot.slane %v434, %v1288
      %v1290 = vmul.f32 %v1254, %v1289
      %v1291 = vmul.f32 %v1255, %v1289
      %v1292 = vmul.f32 %v1256, %v1289
      %v1293 = vmul.f32 %v1257, %v1289
      %v1294 = vmul.f32 %v1258, %v1289
      %v1295 = vmul.f32 %v1259, %v1289
      %v1296 = vmul.f32 %v1260, %v1289
      %v1297 = vmul.f32 %v1261, %v1289
      %v1298 = vmul.f32 %v1262, %v1289
      %v1299 = vmul.f32 %v1263, %v1289
      %v1300 = vmul.f32 %v1264, %v1289
      %v1301 = vmul.f32 %v1265, %v1289
      %v1302 = vmul.f32 %v1266, %v1289
      %v1303 = vmul.f32 %v1267, %v1289
      %v1304 = vmul.f32 %v1268, %v1289
      %v1305 = vmul.f32 %v1269, %v1289
      %v1306 = vmul.f32 %v1270, %v1289
      %v1307 = vmul.f32 %v1271, %v1289
      %v1308 = vmul.f32 %v1272, %v1289
      %v1309 = vmul.f32 %v1273, %v1289
      %v1310 = vmul.f32 %v1274, %v1289
      %v1311 = vmul.f32 %v1275, %v1289
      %v1312 = vmul.f32 %v1276, %v1289
      %v1313 = vmul.f32 %v1277, %v1289
      %v1314 = vmul.f32 %v1278, %v1289
      %v1315 = vmul.f32 %v1279, %v1289
      %v1316 = vmul.f32 %v1280, %v1289
      %v1317 = vmul.f32 %v1281, %v1289
      %v1318 = vmul.f32 %v1282, %v1289
      %v1319 = vmul.f32 %v1283, %v1289
      %v1320 = vmul.f32 %v1284, %v1289
      %v1321 = vmul.f32 %v1285, %v1289
      %v1322 = vlaneseq
      %v1323 = vshrl.u32 %v1322, 7
      %v1324 = vsub.s32 0, %v1323
      %v1325 = vrot.slane %v435, %v1324
      %v1326 = vadd.f32 %v1290, %v1325
      %v1327 = vadd.f32 %v1291, %v1325
      %v1328 = vadd.f32 %v1292, %v1325
      %v1329 = vadd.f32 %v1293, %v1325
      %v1330 = vadd.f32 %v1294, %v1325
      %v1331 = vadd.f32 %v1295, %v1325
      %v1332 = vadd.f32 %v1296, %v1325
      %v1333 = vadd.f32 %v1297, %v1325
      %v1334 = vadd.f32 %v1298, %v1325
      %v1335 = vadd.f32 %v1299, %v1325
      %v1336 = vadd.f32 %v1300, %v1325
      %v1337 = vadd.f32 %v1301, %v1325
      %v1338 = vadd.f32 %v1302, %v1325
      %v1339 = vadd.f32 %v1303, %v1325
      %v1340 = vadd.f32 %v1304, %v1325
      %v1341 = vadd.f32 %v1305, %v1325
      %v1342 = vadd.f32 %v1306, %v1325
      %v1343 = vadd.f32 %v1307, %v1325
      %v1344 = vadd.f32 %v1308, %v1325
      %v1345 = vadd.f32 %v1309, %v1325
      %v1346 = vadd.f32 %v1310, %v1325
      %v1347 = vadd.f32 %v1311, %v1325
      %v1348 = vadd.f32 %v1312, %v1325
      %v1349 = vadd.f32 %v1313, %v1325
      %v1350 = vadd.f32 %v1314, %v1325
      %v1351 = vadd.f32 %v1315, %v1325
      %v1352 = vadd.f32 %v1316, %v1325
      %v1353 = vadd.f32 %v1317, %v1325
      %v1354 = vadd.f32 %v1318, %v1325
      %v1355 = vadd.f32 %v1319, %v1325
      %v1356 = vadd.f32 %v1320, %v1325
      %v1357 = vadd.f32 %v1321, %v1325
      %v1358 = vld [vmem:[%s4] sm:$0xff]
      %v1359 = vld [vmem:[%s4 + $0x8] sm:$0xff]
      %v1360 = vld [vmem:[%s4 + $0x10] sm:$0xff]
      %v1361 = vld [vmem:[%s5] sm:$0xff]
      %v1363 = vsel %vm541, %v1326, 0
      %v1366 = vsel %vm541, %v1327, 0
      %v1369 = vsel %vm541, %v1328, 0
      %v1372 = vsel %vm541, %v1329, 0
      %v1375 = vsel %vm541, %v1330, 0
      %v1378 = vsel %vm541, %v1331, 0
      %v1381 = vsel %vm541, %v1332, 0
      %v1384 = vsel %vm541, %v1333, 0
      %v1387 = vsel %vm541, %v1334, 0
      %v1390 = vsel %vm541, %v1335, 0
      %v1393 = vsel %vm541, %v1336, 0
      %v1396 = vsel %vm541, %v1337, 0
      %v1399 = vsel %vm541, %v1338, 0
      %v1402 = vsel %vm541, %v1339, 0
      %v1405 = vsel %vm541, %v1340, 0
      %v1408 = vsel %vm541, %v1341, 0
      %v1411 = vsel %vm541, %v1342, 0
      %v1414 = vsel %vm541, %v1343, 0
      %v1417 = vsel %vm541, %v1344, 0
      %v1420 = vsel %vm541, %v1345, 0
      %v1423 = vsel %vm541, %v1346, 0
      %v1426 = vsel %vm541, %v1347, 0
      %v1429 = vsel %vm541, %v1348, 0
      %v1432 = vsel %vm541, %v1349, 0
      %v1435 = vsel %vm541, %v1350, 0
      %v1438 = vsel %vm541, %v1351, 0
      %v1441 = vsel %vm541, %v1352, 0
      %v1444 = vsel %vm541, %v1353, 0
      %v1447 = vsel %vm541, %v1354, 0
      %v1450 = vsel %vm541, %v1355, 0
      %v1453 = vsel %vm541, %v1356, 0
      %v1456 = vsel %vm541, %v1357, 0
      %1458 = vmatprep.subr.mxu0 0.0
      %1459 = vmatpush1.msra.mxu0 0.0
      %1460 = vmatprep.subr.mxu0 0.0
      %1461 = vmatpush1.msra.mxu0 0.0
      %1462 = vmatprep.subr.mxu0 0.0
      %1463 = vmatpush1.msra.mxu0 0.0
      %1464 = vmatprep.subr.mxu0 0.0
      %1465 = vmatpush1.msra.mxu0 0.0
      %1466 = vmatprep.subr.mxu0 0.0
      %1467 = vmatpush1.msra.mxu0 0.0
      %1468 = vmatprep.subr.mxu0 0.0
      %1469 = vmatpush1.msra.mxu0 0.0
      %1470 = vmatprep.subr.mxu0 0.0
      %1471 = vmatpush1.msra.mxu0 0.0
      %1472 = vmatprep.subr.mxu0 0.0
      %1473 = vmatpush1.msra.mxu0 0.0
      %1474 = vmatprep.subr.mxu0 0.0
      %1475 = vmatpush1.msra.mxu0 0.0
      %1476 = vmatprep.subr.mxu0 0.0
      %1477 = vmatpush1.msra.mxu0 0.0
      %1478 = vmatprep.subr.mxu0 0.0
      %1479 = vmatpush1.msra.mxu0 0.0
      %1480 = vmatprep.subr.mxu0 0.0
      %1481 = vmatpush1.msra.mxu0 0.0
      %1482 = vmatprep.subr.mxu0 0.0
      %1483 = vmatpush1.msra.mxu0 0.0
      %1484 = vmatprep.subr.mxu0 0.0
      %1485 = vmatpush1.msra.mxu0 0.0
      %1486 = vmatprep.subr.mxu0 0.0
      %1487 = vmatpush1.msra.mxu0 0.0
      %1488 = vmatprep.subr.mxu0 0.0
      %1489 = vmatpush1.msra.mxu0 %v1361
      %1490 = vmatprep.subr.mxu0 0.0
      %1491 = vmatpush2.msra.mxu0 0.0
      %1492 = vmatprep.subr.mxu0 0.0
      %1493 = vmatpush2.msra.mxu0 0.0
      %1494 = vmatprep.subr.mxu0 0.0
      %1495 = vmatpush2.msra.mxu0 0.0
      %1496 = vmatprep.subr.mxu0 0.0
      %1497 = vmatpush2.msra.mxu0 0.0
      %1498 = vmatprep.subr.mxu0 0.0
      %1499 = vmatpush2.msra.mxu0 0.0
      %1500 = vmatprep.subr.mxu0 0.0
      %1501 = vmatpush2.msra.mxu0 0.0
      %1502 = vmatprep.subr.mxu0 0.0
      %1503 = vmatpush2.msra.mxu0 0.0
      %1504 = vmatprep.subr.mxu0 0.0
      %1505 = vmatpush2.msra.mxu0 0.0
      %1506 = vmatprep.subr.mxu0 0.0
      %1507 = vmatpush2.msra.mxu0 0.0
      %1508 = vmatprep.subr.mxu0 0.0
      %1509 = vmatpush2.msra.mxu0 0.0
      %1510 = vmatprep.subr.mxu0 0.0
      %1511 = vmatpush2.msra.mxu0 0.0
      %1512 = vmatprep.subr.mxu0 0.0
      %1513 = vmatpush2.msra.mxu0 0.0
      %1514 = vmatprep.subr.mxu0 0.0
      %1515 = vmatpush2.msra.mxu0 0.0
      %1516 = vmatprep.subr.mxu0 0.0
      %1517 = vmatpush2.msra.mxu0 0.0
      %1518 = vmatprep.subr.mxu0 0.0
      %1519 = vmatpush2.msra.mxu0 0.0
      %1520 = vmatprep.subr.mxu0 0.0
      %1521 = vmatpush2.msra.mxu0 0.0
      %1522 = vmatprep.mubr.f32.mxu0 0.0
      %1523 = vmatmul.mubr.f32.gmra.mxu0 %v1363
      %v1524 = vpop.f32.mrf.mxu0
      %v1525 = vadd.f32 0.0, %v1524
      %v1526 = vpop.f32.mrf.mxu0
      %1527 = vmatprep.mubr.f32.mxu0 0.0
      %1528 = vmatmul.mubr.f32.gmra.mxu0 %v1366
      %v1529 = vpop.f32.mrf.mxu0
      %v1530 = vadd.f32 0.0, %v1529
      %v1531 = vpop.f32.mrf.mxu0
      %1532 = vmatprep.mubr.f32.mxu0 0.0
      %1533 = vmatmul.mubr.f32.gmra.mxu0 %v1369
      %v1534 = vpop.f32.mrf.mxu0
      %v1535 = vadd.f32 0.0, %v1534
      %v1536 = vpop.f32.mrf.mxu0
      %1537 = vmatprep.mubr.f32.mxu0 0.0
      %1538 = vmatmul.mubr.f32.gmra.mxu0 %v1372
      %v1539 = vpop.f32.mrf.mxu0
      %v1540 = vadd.f32 0.0, %v1539
      %v1541 = vpop.f32.mrf.mxu0
      %1542 = vmatprep.mubr.f32.mxu0 0.0
      %1543 = vmatmul.mubr.f32.gmra.mxu0 %v1375
      %v1544 = vpop.f32.mrf.mxu0
      %v1545 = vadd.f32 0.0, %v1544
      %v1546 = vpop.f32.mrf.mxu0
      %1547 = vmatprep.mubr.f32.mxu0 0.0
      %1548 = vmatmul.mubr.f32.gmra.mxu0 %v1378
      %v1549 = vpop.f32.mrf.mxu0
      %v1550 = vadd.f32 0.0, %v1549
      %v1551 = vpop.f32.mrf.mxu0
      %1552 = vmatprep.mubr.f32.mxu0 0.0
      %1553 = vmatmul.mubr.f32.gmra.mxu0 %v1381
      %v1554 = vpop.f32.mrf.mxu0
      %v1555 = vadd.f32 0.0, %v1554
      %v1556 = vpop.f32.mrf.mxu0
      %1557 = vmatprep.mubr.f32.mxu0 0.0
      %1558 = vmatmul.mubr.f32.gmra.mxu0 %v1384
      %v1559 = vpop.f32.mrf.mxu0
      %v1560 = vadd.f32 0.0, %v1559
      %v1561 = vpop.f32.mrf.mxu0
      %1562 = vmatprep.mubr.f32.mxu0 0.0
      %1563 = vmatmul.mubr.f32.gmra.mxu0 %v1387
      %v1564 = vpop.f32.mrf.mxu0
      %v1565 = vadd.f32 0.0, %v1564
      %v1566 = vpop.f32.mrf.mxu0
      %1567 = vmatprep.mubr.f32.mxu0 0.0
      %1568 = vmatmul.mubr.f32.gmra.mxu0 %v1390
      %v1569 = vpop.f32.mrf.mxu0
      %v1570 = vadd.f32 0.0, %v1569
      %v1571 = vpop.f32.mrf.mxu0
      %1572 = vmatprep.mubr.f32.mxu0 0.0
      %1573 = vmatmul.mubr.f32.gmra.mxu0 %v1393
      %v1574 = vpop.f32.mrf.mxu0
      %v1575 = vadd.f32 0.0, %v1574
      %v1576 = vpop.f32.mrf.mxu0
      %1577 = vmatprep.mubr.f32.mxu0 0.0
      %1578 = vmatmul.mubr.f32.gmra.mxu0 %v1396
      %v1579 = vpop.f32.mrf.mxu0
      %v1580 = vadd.f32 0.0, %v1579
      %v1581 = vpop.f32.mrf.mxu0
      %1582 = vmatprep.mubr.f32.mxu0 0.0
      %1583 = vmatmul.mubr.f32.gmra.mxu0 %v1399
      %v1584 = vpop.f32.mrf.mxu0
      %v1585 = vadd.f32 0.0, %v1584
      %v1586 = vpop.f32.mrf.mxu0
      %1587 = vmatprep.mubr.f32.mxu0 0.0
      %1588 = vmatmul.mubr.f32.gmra.mxu0 %v1402
      %v1589 = vpop.f32.mrf.mxu0
      %v1590 = vadd.f32 0.0, %v1589
      %v1591 = vpop.f32.mrf.mxu0
      %1592 = vmatprep.mubr.f32.mxu0 0.0
      %1593 = vmatmul.mubr.f32.gmra.mxu0 %v1405
      %v1594 = vpop.f32.mrf.mxu0
      %v1595 = vadd.f32 0.0, %v1594
      %v1596 = vpop.f32.mrf.mxu0
      %1597 = vmatprep.mubr.f32.mxu0 0.0
      %1598 = vmatmul.mubr.f32.gmra.mxu0 %v1408
      %v1599 = vpop.f32.mrf.mxu0
      %v1600 = vadd.f32 0.0, %v1599
      %v1601 = vpop.f32.mrf.mxu0
      %1602 = vmatprep.mubr.f32.mxu0 0.0
      %1603 = vmatmul.mubr.f32.gmra.mxu0 %v1411
      %v1604 = vpop.f32.mrf.mxu0
      %v1605 = vadd.f32 0.0, %v1604
      %v1606 = vpop.f32.mrf.mxu0
      %1607 = vmatprep.mubr.f32.mxu0 0.0
      %1608 = vmatmul.mubr.f32.gmra.mxu0 %v1414
      %v1609 = vpop.f32.mrf.mxu0
      %v1610 = vadd.f32 0.0, %v1609
      %v1611 = vpop.f32.mrf.mxu0
      %1612 = vmatprep.mubr.f32.mxu0 0.0
      %1613 = vmatmul.mubr.f32.gmra.mxu0 %v1417
      %v1614 = vpop.f32.mrf.mxu0
      %v1615 = vadd.f32 0.0, %v1614
      %v1616 = vpop.f32.mrf.mxu0
      %1617 = vmatprep.mubr.f32.mxu0 0.0
      %1618 = vmatmul.mubr.f32.gmra.mxu0 %v1420
      %v1619 = vpop.f32.mrf.mxu0
      %v1620 = vadd.f32 0.0, %v1619
      %v1621 = vpop.f32.mrf.mxu0
      %1622 = vmatprep.mubr.f32.mxu0 0.0
      %1623 = vmatmul.mubr.f32.gmra.mxu0 %v1423
      %v1624 = vpop.f32.mrf.mxu0
      %v1625 = vadd.f32 0.0, %v1624
      %v1626 = vpop.f32.mrf.mxu0
      %1627 = vmatprep.mubr.f32.mxu0 0.0
      %1628 = vmatmul.mubr.f32.gmra.mxu0 %v1426
      %v1629 = vpop.f32.mrf.mxu0
      %v1630 = vadd.f32 0.0, %v1629
      %v1631 = vpop.f32.mrf.mxu0
      %1632 = vmatprep.mubr.f32.mxu0 0.0
      %1633 = vmatmul.mubr.f32.gmra.mxu0 %v1429
      %v1634 = vpop.f32.mrf.mxu0
      %v1635 = vadd.f32 0.0, %v1634
      %v1636 = vpop.f32.mrf.mxu0
      %1637 = vmatprep.mubr.f32.mxu0 0.0
      %1638 = vmatmul.mubr.f32.gmra.mxu0 %v1432
      %v1639 = vpop.f32.mrf.mxu0
      %v1640 = vadd.f32 0.0, %v1639
      %v1641 = vpop.f32.mrf.mxu0
      %1642 = vmatprep.mubr.f32.mxu0 0.0
      %1643 = vmatmul.mubr.f32.gmra.mxu0 %v1435
      %v1644 = vpop.f32.mrf.mxu0
      %v1645 = vadd.f32 0.0, %v1644
      %v1646 = vpop.f32.mrf.mxu0
      %1647 = vmatprep.mubr.f32.mxu0 0.0
      %1648 = vmatmul.mubr.f32.gmra.mxu0 %v1438
      %v1649 = vpop.f32.mrf.mxu0
      %v1650 = vadd.f32 0.0, %v1649
      %v1651 = vpop.f32.mrf.mxu0
      %1652 = vmatprep.mubr.f32.mxu0 0.0
      %1653 = vmatmul.mubr.f32.gmra.mxu0 %v1441
      %v1654 = vpop.f32.mrf.mxu0
      %v1655 = vadd.f32 0.0, %v1654
      %v1656 = vpop.f32.mrf.mxu0
      %1657 = vmatprep.mubr.f32.mxu0 0.0
      %1658 = vmatmul.mubr.f32.gmra.mxu0 %v1444
      %v1659 = vpop.f32.mrf.mxu0
      %v1660 = vadd.f32 0.0, %v1659
      %v1661 = vpop.f32.mrf.mxu0
      %1662 = vmatprep.mubr.f32.mxu0 0.0
      %1663 = vmatmul.mubr.f32.gmra.mxu0 %v1447
      %v1664 = vpop.f32.mrf.mxu0
      %v1665 = vadd.f32 0.0, %v1664
      %v1666 = vpop.f32.mrf.mxu0
      %1667 = vmatprep.mubr.f32.mxu0 0.0
      %1668 = vmatmul.mubr.f32.gmra.mxu0 %v1450
      %v1669 = vpop.f32.mrf.mxu0
      %v1670 = vadd.f32 0.0, %v1669
      %v1671 = vpop.f32.mrf.mxu0
      %1672 = vmatprep.mubr.f32.mxu0 0.0
      %1673 = vmatmul.mubr.f32.gmra.mxu0 %v1453
      %v1674 = vpop.f32.mrf.mxu0
      %v1675 = vadd.f32 0.0, %v1674
      %v1676 = vpop.f32.mrf.mxu0
      %1677 = vmatprep.mubr.f32.mxu0 0.0
      %1678 = vmatmul.mubr.f32.gmra.mxu0 %v1456
      %v1679 = vpop.f32.mrf.mxu0
      %v1680 = vadd.f32 0.0, %v1679
      %v1681 = vpop.f32.mrf.mxu0
      %1682 = vdwg.mxu0
      %v1684 = vsel %vm444, %v1222, 0
      %v1687 = vsel %vm444, %v1223, 0
      %v1690 = vsel %vm444, %v1224, 0
      %v1693 = vsel %vm444, %v1225, 0
      %v1696 = vsel %vm444, %v1226, 0
      %v1699 = vsel %vm444, %v1227, 0
      %v1702 = vsel %vm444, %v1228, 0
      %v1705 = vsel %vm444, %v1229, 0
      %v1708 = vsel %vm444, %v1230, 0
      %v1711 = vsel %vm444, %v1231, 0
      %v1714 = vsel %vm444, %v1232, 0
      %v1717 = vsel %vm444, %v1233, 0
      %v1720 = vsel %vm444, %v1234, 0
      %v1723 = vsel %vm444, %v1235, 0
      %v1726 = vsel %vm444, %v1236, 0
      %v1729 = vsel %vm444, %v1237, 0
      %v1732 = vsel %vm444, %v1238, 0
      %v1735 = vsel %vm444, %v1239, 0
      %v1738 = vsel %vm444, %v1240, 0
      %v1741 = vsel %vm444, %v1241, 0
      %v1744 = vsel %vm444, %v1242, 0
      %v1747 = vsel %vm444, %v1243, 0
      %v1750 = vsel %vm444, %v1244, 0
      %v1753 = vsel %vm444, %v1245, 0
      %v1756 = vsel %vm444, %v1246, 0
      %v1759 = vsel %vm444, %v1247, 0
      %v1762 = vsel %vm444, %v1248, 0
      %v1765 = vsel %vm444, %v1249, 0
      %v1768 = vsel %vm444, %v1250, 0
      %v1771 = vsel %vm444, %v1251, 0
      %v1774 = vsel %vm444, %v1252, 0
      %v1777 = vsel %vm444, %v1253, 0
      %1779 = vmatprep.subr.mxu0 0.0
      %1780 = vmatpush1.msra.mxu0 0.0
      %1781 = vmatprep.subr.mxu0 0.0
      %1782 = vmatpush1.msra.mxu0 0.0
      %1783 = vmatprep.subr.mxu0 0.0
      %1784 = vmatpush1.msra.mxu0 0.0
      %1785 = vmatprep.subr.mxu0 0.0
      %1786 = vmatpush1.msra.mxu0 0.0
      %1787 = vmatprep.subr.mxu0 0.0
      %1788 = vmatpush1.msra.mxu0 0.0
      %1789 = vmatprep.subr.mxu0 0.0
      %1790 = vmatpush1.msra.mxu0 0.0
      %1791 = vmatprep.subr.mxu0 0.0
      %1792 = vmatpush1.msra.mxu0 0.0
      %1793 = vmatprep.subr.mxu0 0.0
      %1794 = vmatpush1.msra.mxu0 0.0
      %1795 = vmatprep.subr.mxu0 0.0
      %1796 = vmatpush1.msra.mxu0 0.0
      %1797 = vmatprep.subr.mxu0 0.0
      %1798 = vmatpush1.msra.mxu0 0.0
      %1799 = vmatprep.subr.mxu0 0.0
      %1800 = vmatpush1.msra.mxu0 0.0
      %1801 = vmatprep.subr.mxu0 0.0
      %1802 = vmatpush1.msra.mxu0 0.0
      %1803 = vmatprep.subr.mxu0 0.0
      %1804 = vmatpush1.msra.mxu0 0.0
      %1805 = vmatprep.subr.mxu0 0.0
      %1806 = vmatpush1.msra.mxu0 %v1360
      %1807 = vmatprep.subr.mxu0 0.0
      %1808 = vmatpush1.msra.mxu0 %v1359
      %1809 = vmatprep.subr.mxu0 0.0
      %1810 = vmatpush1.msra.mxu0 %v1358
      %1811 = vmatprep.subr.mxu0 0.0
      %1812 = vmatpush2.msra.mxu0 0.0
      %1813 = vmatprep.subr.mxu0 0.0
      %1814 = vmatpush2.msra.mxu0 0.0
      %1815 = vmatprep.subr.mxu0 0.0
      %1816 = vmatpush2.msra.mxu0 0.0
      %1817 = vmatprep.subr.mxu0 0.0
      %1818 = vmatpush2.msra.mxu0 0.0
      %1819 = vmatprep.subr.mxu0 0.0
      %1820 = vmatpush2.msra.mxu0 0.0
      %1821 = vmatprep.subr.mxu0 0.0
      %1822 = vmatpush2.msra.mxu0 0.0
      %1823 = vmatprep.subr.mxu0 0.0
      %1824 = vmatpush2.msra.mxu0 0.0
      %1825 = vmatprep.subr.mxu0 0.0
      %1826 = vmatpush2.msra.mxu0 0.0
      %1827 = vmatprep.subr.mxu0 0.0
      %1828 = vmatpush2.msra.mxu0 0.0
      %1829 = vmatprep.subr.mxu0 0.0
      %1830 = vmatpush2.msra.mxu0 0.0
      %1831 = vmatprep.subr.mxu0 0.0
      %1832 = vmatpush2.msra.mxu0 0.0
      %1833 = vmatprep.subr.mxu0 0.0
      %1834 = vmatpush2.msra.mxu0 0.0
      %1835 = vmatprep.subr.mxu0 0.0
      %1836 = vmatpush2.msra.mxu0 0.0
      %1837 = vmatprep.subr.mxu0 0.0
      %1838 = vmatpush2.msra.mxu0 0.0
      %1839 = vmatprep.subr.mxu0 0.0
      %1840 = vmatpush2.msra.mxu0 0.0
      %1841 = vmatprep.subr.mxu0 0.0
      %1842 = vmatpush2.msra.mxu0 0.0
      %1843 = vmatprep.mubr.f32.mxu0 0.0
      %1844 = vmatmul.mubr.f32.gmra.mxu0 %v1684
      %v1845 = vpop.f32.mrf.mxu0
      %v1846 = vadd.f32 %v1525, %v1845
      %v1847 = vpop.f32.mrf.mxu0
      %1848 = vmatprep.mubr.f32.mxu0 0.0
      %1849 = vmatmul.mubr.f32.gmra.mxu0 %v1687
      %v1850 = vpop.f32.mrf.mxu0
      %v1851 = vadd.f32 %v1530, %v1850
      %v1852 = vpop.f32.mrf.mxu0
      %1853 = vmatprep.mubr.f32.mxu0 0.0
      %1854 = vmatmul.mubr.f32.gmra.mxu0 %v1690
      %v1855 = vpop.f32.mrf.mxu0
      %v1856 = vadd.f32 %v1535, %v1855
      %v1857 = vpop.f32.mrf.mxu0
      %1858 = vmatprep.mubr.f32.mxu0 0.0
      %1859 = vmatmul.mubr.f32.gmra.mxu0 %v1693
      %v1860 = vpop.f32.mrf.mxu0
      %v1861 = vadd.f32 %v1540, %v1860
      %v1862 = vpop.f32.mrf.mxu0
      %1863 = vmatprep.mubr.f32.mxu0 0.0
      %1864 = vmatmul.mubr.f32.gmra.mxu0 %v1696
      %v1865 = vpop.f32.mrf.mxu0
      %v1866 = vadd.f32 %v1545, %v1865
      %v1867 = vpop.f32.mrf.mxu0
      %1868 = vmatprep.mubr.f32.mxu0 0.0
      %1869 = vmatmul.mubr.f32.gmra.mxu0 %v1699
      %v1870 = vpop.f32.mrf.mxu0
      %v1871 = vadd.f32 %v1550, %v1870
      %v1872 = vpop.f32.mrf.mxu0
      %1873 = vmatprep.mubr.f32.mxu0 0.0
      %1874 = vmatmul.mubr.f32.gmra.mxu0 %v1702
      %v1875 = vpop.f32.mrf.mxu0
      %v1876 = vadd.f32 %v1555, %v1875
      %v1877 = vpop.f32.mrf.mxu0
      %1878 = vmatprep.mubr.f32.mxu0 0.0
      %1879 = vmatmul.mubr.f32.gmra.mxu0 %v1705
      %v1880 = vpop.f32.mrf.mxu0
      %v1881 = vadd.f32 %v1560, %v1880
      %v1882 = vpop.f32.mrf.mxu0
      %1883 = vmatprep.mubr.f32.mxu0 0.0
      %1884 = vmatmul.mubr.f32.gmra.mxu0 %v1708
      %v1885 = vpop.f32.mrf.mxu0
      %v1886 = vadd.f32 %v1565, %v1885
      %v1887 = vpop.f32.mrf.mxu0
      %1888 = vmatprep.mubr.f32.mxu0 0.0
      %1889 = vmatmul.mubr.f32.gmra.mxu0 %v1711
      %v1890 = vpop.f32.mrf.mxu0
      %v1891 = vadd.f32 %v1570, %v1890
      %v1892 = vpop.f32.mrf.mxu0
      %1893 = vmatprep.mubr.f32.mxu0 0.0
      %1894 = vmatmul.mubr.f32.gmra.mxu0 %v1714
      %v1895 = vpop.f32.mrf.mxu0
      %v1896 = vadd.f32 %v1575, %v1895
      %v1897 = vpop.f32.mrf.mxu0
      %1898 = vmatprep.mubr.f32.mxu0 0.0
      %1899 = vmatmul.mubr.f32.gmra.mxu0 %v1717
      %v1900 = vpop.f32.mrf.mxu0
      %v1901 = vadd.f32 %v1580, %v1900
      %v1902 = vpop.f32.mrf.mxu0
      %1903 = vmatprep.mubr.f32.mxu0 0.0
      %1904 = vmatmul.mubr.f32.gmra.mxu0 %v1720
      %v1905 = vpop.f32.mrf.mxu0
      %v1906 = vadd.f32 %v1585, %v1905
      %v1907 = vpop.f32.mrf.mxu0
      %1908 = vmatprep.mubr.f32.mxu0 0.0
      %1909 = vmatmul.mubr.f32.gmra.mxu0 %v1723
      %v1910 = vpop.f32.mrf.mxu0
      %v1911 = vadd.f32 %v1590, %v1910
      %v1912 = vpop.f32.mrf.mxu0
      %1913 = vmatprep.mubr.f32.mxu0 0.0
      %1914 = vmatmul.mubr.f32.gmra.mxu0 %v1726
      %v1915 = vpop.f32.mrf.mxu0
      %v1916 = vadd.f32 %v1595, %v1915
      %v1917 = vpop.f32.mrf.mxu0
      %1918 = vmatprep.mubr.f32.mxu0 0.0
      %1919 = vmatmul.mubr.f32.gmra.mxu0 %v1729
      %v1920 = vpop.f32.mrf.mxu0
      %v1921 = vadd.f32 %v1600, %v1920
      %v1922 = vpop.f32.mrf.mxu0
      %1923 = vmatprep.mubr.f32.mxu0 0.0
      %1924 = vmatmul.mubr.f32.gmra.mxu0 %v1732
      %v1925 = vpop.f32.mrf.mxu0
      %v1926 = vadd.f32 %v1605, %v1925
      %v1927 = vpop.f32.mrf.mxu0
      %1928 = vmatprep.mubr.f32.mxu0 0.0
      %1929 = vmatmul.mubr.f32.gmra.mxu0 %v1735
      %v1930 = vpop.f32.mrf.mxu0
      %v1931 = vadd.f32 %v1610, %v1930
      %v1932 = vpop.f32.mrf.mxu0
      %1933 = vmatprep.mubr.f32.mxu0 0.0
      %1934 = vmatmul.mubr.f32.gmra.mxu0 %v1738
      %v1935 = vpop.f32.mrf.mxu0
      %v1936 = vadd.f32 %v1615, %v1935
      %v1937 = vpop.f32.mrf.mxu0
      %1938 = vmatprep.mubr.f32.mxu0 0.0
      %1939 = vmatmul.mubr.f32.gmra.mxu0 %v1741
      %v1940 = vpop.f32.mrf.mxu0
      %v1941 = vadd.f32 %v1620, %v1940
      %v1942 = vpop.f32.mrf.mxu0
      %1943 = vmatprep.mubr.f32.mxu0 0.0
      %1944 = vmatmul.mubr.f32.gmra.mxu0 %v1744
      %v1945 = vpop.f32.mrf.mxu0
      %v1946 = vadd.f32 %v1625, %v1945
      %v1947 = vpop.f32.mrf.mxu0
      %1948 = vmatprep.mubr.f32.mxu0 0.0
      %1949 = vmatmul.mubr.f32.gmra.mxu0 %v1747
      %v1950 = vpop.f32.mrf.mxu0
      %v1951 = vadd.f32 %v1630, %v1950
      %v1952 = vpop.f32.mrf.mxu0
      %1953 = vmatprep.mubr.f32.mxu0 0.0
      %1954 = vmatmul.mubr.f32.gmra.mxu0 %v1750
      %v1955 = vpop.f32.mrf.mxu0
      %v1956 = vadd.f32 %v1635, %v1955
      %v1957 = vpop.f32.mrf.mxu0
      %1958 = vmatprep.mubr.f32.mxu0 0.0
      %1959 = vmatmul.mubr.f32.gmra.mxu0 %v1753
      %v1960 = vpop.f32.mrf.mxu0
      %v1961 = vadd.f32 %v1640, %v1960
      %v1962 = vpop.f32.mrf.mxu0
      %1963 = vmatprep.mubr.f32.mxu0 0.0
      %1964 = vmatmul.mubr.f32.gmra.mxu0 %v1756
      %v1965 = vpop.f32.mrf.mxu0
      %v1966 = vadd.f32 %v1645, %v1965
      %v1967 = vpop.f32.mrf.mxu0
      %1968 = vmatprep.mubr.f32.mxu0 0.0
      %1969 = vmatmul.mubr.f32.gmra.mxu0 %v1759
      %v1970 = vpop.f32.mrf.mxu0
      %v1971 = vadd.f32 %v1650, %v1970
      %v1972 = vpop.f32.mrf.mxu0
      %1973 = vmatprep.mubr.f32.mxu0 0.0
      %1974 = vmatmul.mubr.f32.gmra.mxu0 %v1762
      %v1975 = vpop.f32.mrf.mxu0
      %v1976 = vadd.f32 %v1655, %v1975
      %v1977 = vpop.f32.mrf.mxu0
      %1978 = vmatprep.mubr.f32.mxu0 0.0
      %1979 = vmatmul.mubr.f32.gmra.mxu0 %v1765
      %v1980 = vpop.f32.mrf.mxu0
      %v1981 = vadd.f32 %v1660, %v1980
      %v1982 = vpop.f32.mrf.mxu0
      %1983 = vmatprep.mubr.f32.mxu0 0.0
      %1984 = vmatmul.mubr.f32.gmra.mxu0 %v1768
      %v1985 = vpop.f32.mrf.mxu0
      %v1986 = vadd.f32 %v1665, %v1985
      %v1987 = vpop.f32.mrf.mxu0
      %1988 = vmatprep.mubr.f32.mxu0 0.0
      %1989 = vmatmul.mubr.f32.gmra.mxu0 %v1771
      %v1990 = vpop.f32.mrf.mxu0
      %v1991 = vadd.f32 %v1670, %v1990
      %v1992 = vpop.f32.mrf.mxu0
      %1993 = vmatprep.mubr.f32.mxu0 0.0
      %1994 = vmatmul.mubr.f32.gmra.mxu0 %v1774
      %v1995 = vpop.f32.mrf.mxu0
      %v1996 = vadd.f32 %v1675, %v1995
      %v1997 = vpop.f32.mrf.mxu0
      %1998 = vmatprep.mubr.f32.mxu0 0.0
      %1999 = vmatmul.mubr.f32.gmra.mxu0 %v1777
      %v2000 = vpop.f32.mrf.mxu0
      %v2001 = vadd.f32 %v1680, %v2000
      %v2002 = vpop.f32.mrf.mxu0
      %2003 = vdwg.mxu0
      %v2004 = vlaneseq
      %v2005 = vshrl.u32 %v2004, 7
      %v2006 = vsub.s32 0, %v2005
      %v2007 = vrot.slane %v436, %v2006
      %v2008 = vadd.f32 %v1846, %v2007
      %v2009 = vadd.f32 %v1851, %v2007
      %v2010 = vadd.f32 %v1856, %v2007
      %v2011 = vadd.f32 %v1861, %v2007
      %v2012 = vadd.f32 %v1866, %v2007
      %v2013 = vadd.f32 %v1871, %v2007
      %v2014 = vadd.f32 %v1876, %v2007
      %v2015 = vadd.f32 %v1881, %v2007
      %v2016 = vadd.f32 %v1886, %v2007
      %v2017 = vadd.f32 %v1891, %v2007
      %v2018 = vadd.f32 %v1896, %v2007
      %v2019 = vadd.f32 %v1901, %v2007
      %v2020 = vadd.f32 %v1906, %v2007
      %v2021 = vadd.f32 %v1911, %v2007
      %v2022 = vadd.f32 %v1916, %v2007
      %v2023 = vadd.f32 %v1921, %v2007
      %v2024 = vadd.f32 %v1926, %v2007
      %v2025 = vadd.f32 %v1931, %v2007
      %v2026 = vadd.f32 %v1936, %v2007
      %v2027 = vadd.f32 %v1941, %v2007
      %v2028 = vadd.f32 %v1946, %v2007
      %v2029 = vadd.f32 %v1951, %v2007
      %v2030 = vadd.f32 %v1956, %v2007
      %v2031 = vadd.f32 %v1961, %v2007
      %v2032 = vadd.f32 %v1966, %v2007
      %v2033 = vadd.f32 %v1971, %v2007
      %v2034 = vadd.f32 %v1976, %v2007
      %v2035 = vadd.f32 %v1981, %v2007
      %v2036 = vadd.f32 %v1986, %v2007
      %v2037 = vadd.f32 %v1991, %v2007
      %v2038 = vadd.f32 %v1996, %v2007
      %v2039 = vadd.f32 %v2001, %v2007
      %v2040 = vmax.f32 %v2008, 0.0
      %v2041 = vmax.f32 %v2009, 0.0
      %v2042 = vmax.f32 %v2010, 0.0
      %v2043 = vmax.f32 %v2011, 0.0
      %v2044 = vmax.f32 %v2012, 0.0
      %v2045 = vmax.f32 %v2013, 0.0
      %v2046 = vmax.f32 %v2014, 0.0
      %v2047 = vmax.f32 %v2015, 0.0
      %v2048 = vmax.f32 %v2016, 0.0
      %v2049 = vmax.f32 %v2017, 0.0
      %v2050 = vmax.f32 %v2018, 0.0
      %v2051 = vmax.f32 %v2019, 0.0
      %v2052 = vmax.f32 %v2020, 0.0
      %v2053 = vmax.f32 %v2021, 0.0
      %v2054 = vmax.f32 %v2022, 0.0
      %v2055 = vmax.f32 %v2023, 0.0
      %v2056 = vmax.f32 %v2024, 0.0
      %v2057 = vmax.f32 %v2025, 0.0
      %v2058 = vmax.f32 %v2026, 0.0
      %v2059 = vmax.f32 %v2027, 0.0
      %v2060 = vmax.f32 %v2028, 0.0
      %v2061 = vmax.f32 %v2029, 0.0
      %v2062 = vmax.f32 %v2030, 0.0
      %v2063 = vmax.f32 %v2031, 0.0
      %v2064 = vmax.f32 %v2032, 0.0
      %v2065 = vmax.f32 %v2033, 0.0
      %v2066 = vmax.f32 %v2034, 0.0
      %v2067 = vmax.f32 %v2035, 0.0
      %v2068 = vmax.f32 %v2036, 0.0
      %v2069 = vmax.f32 %v2037, 0.0
      %v2070 = vmax.f32 %v2038, 0.0
      %v2071 = vmax.f32 %v2039, 0.0
      %vm2072 = vcmask 261120
      %v2073 = vsel %vm2072, %v2040, 0.0
      %2074 = vadd.xlane.f32.xlu0 %v2073
      %v2075 = vpop.xlane.xlu0 %2074
      %v2076 = vsel %vm2072, %v2041, 0.0
      %2077 = vadd.xlane.f32.xlu0 %v2076
      %v2078 = vpop.xlane.xlu0 %2077
      %v2079 = vsel %vm2072, %v2042, 0.0
      %2080 = vadd.xlane.f32.xlu0 %v2079
      %v2081 = vpop.xlane.xlu0 %2080
      %v2082 = vsel %vm2072, %v2043, 0.0
      %2083 = vadd.xlane.f32.xlu0 %v2082
      %v2084 = vpop.xlane.xlu0 %2083
      %v2085 = vsel %vm2072, %v2044, 0.0
      %2086 = vadd.xlane.f32.xlu0 %v2085
      %v2087 = vpop.xlane.xlu0 %2086
      %v2088 = vsel %vm2072, %v2045, 0.0
      %2089 = vadd.xlane.f32.xlu0 %v2088
      %v2090 = vpop.xlane.xlu0 %2089
      %v2091 = vsel %vm2072, %v2046, 0.0
      %2092 = vadd.xlane.f32.xlu0 %v2091
      %v2093 = vpop.xlane.xlu0 %2092
      %v2094 = vsel %vm2072, %v2047, 0.0
      %2095 = vadd.xlane.f32.xlu0 %v2094
      %v2096 = vpop.xlane.xlu0 %2095
      %v2097 = vsel %vm2072, %v2048, 0.0
      %2098 = vadd.xlane.f32.xlu0 %v2097
      %v2099 = vpop.xlane.xlu0 %2098
      %v2100 = vsel %vm2072, %v2049, 0.0
      %2101 = vadd.xlane.f32.xlu0 %v2100
      %v2102 = vpop.xlane.xlu0 %2101
      %v2103 = vsel %vm2072, %v2050, 0.0
      %2104 = vadd.xlane.f32.xlu0 %v2103
      %v2105 = vpop.xlane.xlu0 %2104
      %v2106 = vsel %vm2072, %v2051, 0.0
      %2107 = vadd.xlane.f32.xlu0 %v2106
      %v2108 = vpop.xlane.xlu0 %2107
      %v2109 = vsel %vm2072, %v2052, 0.0
      %2110 = vadd.xlane.f32.xlu0 %v2109
      %v2111 = vpop.xlane.xlu0 %2110
      %v2112 = vsel %vm2072, %v2053, 0.0
      %2113 = vadd.xlane.f32.xlu0 %v2112
      %v2114 = vpop.xlane.xlu0 %2113
      %v2115 = vsel %vm2072, %v2054, 0.0
      %2116 = vadd.xlane.f32.xlu0 %v2115
      %v2117 = vpop.xlane.xlu0 %2116
      %v2118 = vsel %vm2072, %v2055, 0.0
      %2119 = vadd.xlane.f32.xlu0 %v2118
      %v2120 = vpop.xlane.xlu0 %2119
      %v2121 = vsel %vm2072, %v2056, 0.0
      %2122 = vadd.xlane.f32.xlu0 %v2121
      %v2123 = vpop.xlane.xlu0 %2122
      %v2124 = vsel %vm2072, %v2057, 0.0
      %2125 = vadd.xlane.f32.xlu0 %v2124
      %v2126 = vpop.xlane.xlu0 %2125
      %v2127 = vsel %vm2072, %v2058, 0.0
      %2128 = vadd.xlane.f32.xlu0 %v2127
      %v2129 = vpop.xlane.xlu0 %2128
      %v2130 = vsel %vm2072, %v2059, 0.0
      %2131 = vadd.xlane.f32.xlu0 %v2130
      %v2132 = vpop.xlane.xlu0 %2131
      %v2133 = vsel %vm2072, %v2060, 0.0
      %2134 = vadd.xlane.f32.xlu0 %v2133
      %v2135 = vpop.xlane.xlu0 %2134
      %v2136 = vsel %vm2072, %v2061, 0.0
      %2137 = vadd.xlane.f32.xlu0 %v2136
      %v2138 = vpop.xlane.xlu0 %2137
      %v2139 = vsel %vm2072, %v2062, 0.0
      %2140 = vadd.xlane.f32.xlu0 %v2139
      %v2141 = vpop.xlane.xlu0 %2140
      %v2142 = vsel %vm2072, %v2063, 0.0
      %2143 = vadd.xlane.f32.xlu0 %v2142
      %v2144 = vpop.xlane.xlu0 %2143
      %v2145 = vsel %vm2072, %v2064, 0.0
      %2146 = vadd.xlane.f32.xlu0 %v2145
      %v2147 = vpop.xlane.xlu0 %2146
      %v2148 = vsel %vm2072, %v2065, 0.0
      %2149 = vadd.xlane.f32.xlu0 %v2148
      %v2150 = vpop.xlane.xlu0 %2149
      %v2151 = vsel %vm2072, %v2066, 0.0
      %2152 = vadd.xlane.f32.xlu0 %v2151
      %v2153 = vpop.xlane.xlu0 %2152
      %v2154 = vsel %vm2072, %v2067, 0.0
      %2155 = vadd.xlane.f32.xlu0 %v2154
      %v2156 = vpop.xlane.xlu0 %2155
      %v2157 = vsel %vm2072, %v2068, 0.0
      %2158 = vadd.xlane.f32.xlu0 %v2157
      %v2159 = vpop.xlane.xlu0 %2158
      %v2160 = vsel %vm2072, %v2069, 0.0
      %2161 = vadd.xlane.f32.xlu0 %v2160
      %v2162 = vpop.xlane.xlu0 %2161
      %v2163 = vsel %vm2072, %v2070, 0.0
      %2164 = vadd.xlane.f32.xlu0 %v2163
      %v2165 = vpop.xlane.xlu0 %2164
      %v2166 = vsel %vm2072, %v2071, 0.0
      %2167 = vadd.xlane.f32.xlu0 %v2166
      %v2168 = vpop.xlane.xlu0 %2167
      %v2169 = vrcp.pop 32.0
      %v2170 = vmul.f32 %v2075, %v2169
      %v2171 = vmul.f32 %v2078, %v2169
      %v2172 = vmul.f32 %v2081, %v2169
      %v2173 = vmul.f32 %v2084, %v2169
      %v2174 = vmul.f32 %v2087, %v2169
      %v2175 = vmul.f32 %v2090, %v2169
      %v2176 = vmul.f32 %v2093, %v2169
      %v2177 = vmul.f32 %v2096, %v2169
      %v2178 = vmul.f32 %v2099, %v2169
      %v2179 = vmul.f32 %v2102, %v2169
      %v2180 = vmul.f32 %v2105, %v2169
      %v2181 = vmul.f32 %v2108, %v2169
      %v2182 = vmul.f32 %v2111, %v2169
      %v2183 = vmul.f32 %v2114, %v2169
      %v2184 = vmul.f32 %v2117, %v2169
      %v2185 = vmul.f32 %v2120, %v2169
      %v2186 = vmul.f32 %v2123, %v2169
      %v2187 = vmul.f32 %v2126, %v2169
      %v2188 = vmul.f32 %v2129, %v2169
      %v2189 = vmul.f32 %v2132, %v2169
      %v2190 = vmul.f32 %v2135, %v2169
      %v2191 = vmul.f32 %v2138, %v2169
      %v2192 = vmul.f32 %v2141, %v2169
      %v2193 = vmul.f32 %v2144, %v2169
      %v2194 = vmul.f32 %v2147, %v2169
      %v2195 = vmul.f32 %v2150, %v2169
      %v2196 = vmul.f32 %v2153, %v2169
      %v2197 = vmul.f32 %v2156, %v2169
      %v2198 = vmul.f32 %v2159, %v2169
      %v2199 = vmul.f32 %v2162, %v2169
      %v2200 = vmul.f32 %v2165, %v2169
      %v2201 = vmul.f32 %v2168, %v2169
      %v2202 = vsub.f32 %v2040, %v2170
      %v2203 = vsub.f32 %v2041, %v2171
      %v2204 = vsub.f32 %v2042, %v2172
      %v2205 = vsub.f32 %v2043, %v2173
      %v2206 = vsub.f32 %v2044, %v2174
      %v2207 = vsub.f32 %v2045, %v2175
      %v2208 = vsub.f32 %v2046, %v2176
      %v2209 = vsub.f32 %v2047, %v2177
      %v2210 = vsub.f32 %v2048, %v2178
      %v2211 = vsub.f32 %v2049, %v2179
      %v2212 = vsub.f32 %v2050, %v2180
      %v2213 = vsub.f32 %v2051, %v2181
      %v2214 = vsub.f32 %v2052, %v2182
      %v2215 = vsub.f32 %v2053, %v2183
      %v2216 = vsub.f32 %v2054, %v2184
      %v2217 = vsub.f32 %v2055, %v2185
      %v2218 = vsub.f32 %v2056, %v2186
      %v2219 = vsub.f32 %v2057, %v2187
      %v2220 = vsub.f32 %v2058, %v2188
      %v2221 = vsub.f32 %v2059, %v2189
      %v2222 = vsub.f32 %v2060, %v2190
      %v2223 = vsub.f32 %v2061, %v2191
      %v2224 = vsub.f32 %v2062, %v2192
      %v2225 = vsub.f32 %v2063, %v2193
      %v2226 = vsub.f32 %v2064, %v2194
      %v2227 = vsub.f32 %v2065, %v2195
      %v2228 = vsub.f32 %v2066, %v2196
      %v2229 = vsub.f32 %v2067, %v2197
      %v2230 = vsub.f32 %v2068, %v2198
      %v2231 = vsub.f32 %v2069, %v2199
      %v2232 = vsub.f32 %v2070, %v2200
      %v2233 = vsub.f32 %v2071, %v2201
      %v2234 = vmul.f32 %v2202, %v2202
      %v2235 = vmul.f32 %v2203, %v2203
      %v2236 = vmul.f32 %v2204, %v2204
      %v2237 = vmul.f32 %v2205, %v2205
      %v2238 = vmul.f32 %v2206, %v2206
      %v2239 = vmul.f32 %v2207, %v2207
      %v2240 = vmul.f32 %v2208, %v2208
      %v2241 = vmul.f32 %v2209, %v2209
      %v2242 = vmul.f32 %v2210, %v2210
      %v2243 = vmul.f32 %v2211, %v2211
      %v2244 = vmul.f32 %v2212, %v2212
      %v2245 = vmul.f32 %v2213, %v2213
      %v2246 = vmul.f32 %v2214, %v2214
      %v2247 = vmul.f32 %v2215, %v2215
      %v2248 = vmul.f32 %v2216, %v2216
      %v2249 = vmul.f32 %v2217, %v2217
      %v2250 = vmul.f32 %v2218, %v2218
      %v2251 = vmul.f32 %v2219, %v2219
      %v2252 = vmul.f32 %v2220, %v2220
      %v2253 = vmul.f32 %v2221, %v2221
      %v2254 = vmul.f32 %v2222, %v2222
      %v2255 = vmul.f32 %v2223, %v2223
      %v2256 = vmul.f32 %v2224, %v2224
      %v2257 = vmul.f32 %v2225, %v2225
      %v2258 = vmul.f32 %v2226, %v2226
      %v2259 = vmul.f32 %v2227, %v2227
      %v2260 = vmul.f32 %v2228, %v2228
      %v2261 = vmul.f32 %v2229, %v2229
      %v2262 = vmul.f32 %v2230, %v2230
      %v2263 = vmul.f32 %v2231, %v2231
      %v2264 = vmul.f32 %v2232, %v2232
      %v2265 = vmul.f32 %v2233, %v2233
      %v2266 = vsel %vm2072, %v2234, 0.0
      %2267 = vadd.xlane.f32.xlu0 %v2266
      %v2268 = vpop.xlane.xlu0 %2267
      %v2269 = vsel %vm2072, %v2235, 0.0
      %2270 = vadd.xlane.f32.xlu0 %v2269
      %v2271 = vpop.xlane.xlu0 %2270
      %v2272 = vsel %vm2072, %v2236, 0.0
      %2273 = vadd.xlane.f32.xlu0 %v2272
      %v2274 = vpop.xlane.xlu0 %2273
      %v2275 = vsel %vm2072, %v2237, 0.0
      %2276 = vadd.xlane.f32.xlu0 %v2275
      %v2277 = vpop.xlane.xlu0 %2276
      %v2278 = vsel %vm2072, %v2238, 0.0
      %2279 = vadd.xlane.f32.xlu0 %v2278
      %v2280 = vpop.xlane.xlu0 %2279
      %v2281 = vsel %vm2072, %v2239, 0.0
      %2282 = vadd.xlane.f32.xlu0 %v2281
      %v2283 = vpop.xlane.xlu0 %2282
      %v2284 = vsel %vm2072, %v2240, 0.0
      %2285 = vadd.xlane.f32.xlu0 %v2284
      %v2286 = vpop.xlane.xlu0 %2285
      %v2287 = vsel %vm2072, %v2241, 0.0
      %2288 = vadd.xlane.f32.xlu0 %v2287
      %v2289 = vpop.xlane.xlu0 %2288
      %v2290 = vsel %vm2072, %v2242, 0.0
      %2291 = vadd.xlane.f32.xlu0 %v2290
      %v2292 = vpop.xlane.xlu0 %2291
      %v2293 = vsel %vm2072, %v2243, 0.0
      %2294 = vadd.xlane.f32.xlu0 %v2293
      %v2295 = vpop.xlane.xlu0 %2294
      %v2296 = vsel %vm2072, %v2244, 0.0
      %2297 = vadd.xlane.f32.xlu0 %v2296
      %v2298 = vpop.xlane.xlu0 %2297
      %v2299 = vsel %vm2072, %v2245, 0.0
      %2300 = vadd.xlane.f32.xlu0 %v2299
      %v2301 = vpop.xlane.xlu0 %2300
      %v2302 = vsel %vm2072, %v2246, 0.0
      %2303 = vadd.xlane.f32.xlu0 %v2302
      %v2304 = vpop.xlane.xlu0 %2303
      %v2305 = vsel %vm2072, %v2247, 0.0
      %2306 = vadd.xlane.f32.xlu0 %v2305
      %v2307 = vpop.xlane.xlu0 %2306
      %v2308 = vsel %vm2072, %v2248, 0.0
      %2309 = vadd.xlane.f32.xlu0 %v2308
      %v2310 = vpop.xlane.xlu0 %2309
      %v2311 = vsel %vm2072, %v2249, 0.0
      %2312 = vadd.xlane.f32.xlu0 %v2311
      %v2313 = vpop.xlane.xlu0 %2312
      %v2314 = vsel %vm2072, %v2250, 0.0
      %2315 = vadd.xlane.f32.xlu0 %v2314
      %v2316 = vpop.xlane.xlu0 %2315
      %v2317 = vsel %vm2072, %v2251, 0.0
      %2318 = vadd.xlane.f32.xlu0 %v2317
      %v2319 = vpop.xlane.xlu0 %2318
      %v2320 = vsel %vm2072, %v2252, 0.0
      %2321 = vadd.xlane.f32.xlu0 %v2320
      %v2322 = vpop.xlane.xlu0 %2321
      %v2323 = vsel %vm2072, %v2253, 0.0
      %2324 = vadd.xlane.f32.xlu0 %v2323
      %v2325 = vpop.xlane.xlu0 %2324
      %v2326 = vsel %vm2072, %v2254, 0.0
      %2327 = vadd.xlane.f32.xlu0 %v2326
      %v2328 = vpop.xlane.xlu0 %2327
      %v2329 = vsel %vm2072, %v2255, 0.0
      %2330 = vadd.xlane.f32.xlu0 %v2329
      %v2331 = vpop.xlane.xlu0 %2330
      %v2332 = vsel %vm2072, %v2256, 0.0
      %2333 = vadd.xlane.f32.xlu0 %v2332
      %v2334 = vpop.xlane.xlu0 %2333
      %v2335 = vsel %vm2072, %v2257, 0.0
      %2336 = vadd.xlane.f32.xlu0 %v2335
      %v2337 = vpop.xlane.xlu0 %2336
      %v2338 = vsel %vm2072, %v2258, 0.0
      %2339 = vadd.xlane.f32.xlu0 %v2338
      %v2340 = vpop.xlane.xlu0 %2339
      %v2341 = vsel %vm2072, %v2259, 0.0
      %2342 = vadd.xlane.f32.xlu0 %v2341
      %v2343 = vpop.xlane.xlu0 %2342
      %v2344 = vsel %vm2072, %v2260, 0.0
      %2345 = vadd.xlane.f32.xlu0 %v2344
      %v2346 = vpop.xlane.xlu0 %2345
      %v2347 = vsel %vm2072, %v2261, 0.0
      %2348 = vadd.xlane.f32.xlu0 %v2347
      %v2349 = vpop.xlane.xlu0 %2348
      %v2350 = vsel %vm2072, %v2262, 0.0
      %2351 = vadd.xlane.f32.xlu0 %v2350
      %v2352 = vpop.xlane.xlu0 %2351
      %v2353 = vsel %vm2072, %v2263, 0.0
      %2354 = vadd.xlane.f32.xlu0 %v2353
      %v2355 = vpop.xlane.xlu0 %2354
      %v2356 = vsel %vm2072, %v2264, 0.0
      %2357 = vadd.xlane.f32.xlu0 %v2356
      %v2358 = vpop.xlane.xlu0 %2357
      %v2359 = vsel %vm2072, %v2265, 0.0
      %2360 = vadd.xlane.f32.xlu0 %v2359
      %v2361 = vpop.xlane.xlu0 %2360
      %v2362 = vmul.f32 %v2268, %v2169
      %v2363 = vmul.f32 %v2271, %v2169
      %v2364 = vmul.f32 %v2274, %v2169
      %v2365 = vmul.f32 %v2277, %v2169
      %v2366 = vmul.f32 %v2280, %v2169
      %v2367 = vmul.f32 %v2283, %v2169
      %v2368 = vmul.f32 %v2286, %v2169
      %v2369 = vmul.f32 %v2289, %v2169
      %v2370 = vmul.f32 %v2292, %v2169
      %v2371 = vmul.f32 %v2295, %v2169
      %v2372 = vmul.f32 %v2298, %v2169
      %v2373 = vmul.f32 %v2301, %v2169
      %v2374 = vmul.f32 %v2304, %v2169
      %v2375 = vmul.f32 %v2307, %v2169
      %v2376 = vmul.f32 %v2310, %v2169
      %v2377 = vmul.f32 %v2313, %v2169
      %v2378 = vmul.f32 %v2316, %v2169
      %v2379 = vmul.f32 %v2319, %v2169
      %v2380 = vmul.f32 %v2322, %v2169
      %v2381 = vmul.f32 %v2325, %v2169
      %v2382 = vmul.f32 %v2328, %v2169
      %v2383 = vmul.f32 %v2331, %v2169
      %v2384 = vmul.f32 %v2334, %v2169
      %v2385 = vmul.f32 %v2337, %v2169
      %v2386 = vmul.f32 %v2340, %v2169
      %v2387 = vmul.f32 %v2343, %v2169
      %v2388 = vmul.f32 %v2346, %v2169
      %v2389 = vmul.f32 %v2349, %v2169
      %v2390 = vmul.f32 %v2352, %v2169
      %v2391 = vmul.f32 %v2355, %v2169
      %v2392 = vmul.f32 %v2358, %v2169
      %v2393 = vmul.f32 %v2361, %v2169
      %v2394 = vadd.f32 %v2362, 1e-05
      %v2395 = vadd.f32 %v2363, 1e-05
      %v2396 = vadd.f32 %v2364, 1e-05
      %v2397 = vadd.f32 %v2365, 1e-05
      %v2398 = vadd.f32 %v2366, 1e-05
      %v2399 = vadd.f32 %v2367, 1e-05
      %v2400 = vadd.f32 %v2368, 1e-05
      %v2401 = vadd.f32 %v2369, 1e-05
      %v2402 = vadd.f32 %v2370, 1e-05
      %v2403 = vadd.f32 %v2371, 1e-05
      %v2404 = vadd.f32 %v2372, 1e-05
      %v2405 = vadd.f32 %v2373, 1e-05
      %v2406 = vadd.f32 %v2374, 1e-05
      %v2407 = vadd.f32 %v2375, 1e-05
      %v2408 = vadd.f32 %v2376, 1e-05
      %v2409 = vadd.f32 %v2377, 1e-05
      %v2410 = vadd.f32 %v2378, 1e-05
      %v2411 = vadd.f32 %v2379, 1e-05
      %v2412 = vadd.f32 %v2380, 1e-05
      %v2413 = vadd.f32 %v2381, 1e-05
      %v2414 = vadd.f32 %v2382, 1e-05
      %v2415 = vadd.f32 %v2383, 1e-05
      %v2416 = vadd.f32 %v2384, 1e-05
      %v2417 = vadd.f32 %v2385, 1e-05
      %v2418 = vadd.f32 %v2386, 1e-05
      %v2419 = vadd.f32 %v2387, 1e-05
      %v2420 = vadd.f32 %v2388, 1e-05
      %v2421 = vadd.f32 %v2389, 1e-05
      %v2422 = vadd.f32 %v2390, 1e-05
      %v2423 = vadd.f32 %v2391, 1e-05
      %v2424 = vadd.f32 %v2392, 1e-05
      %v2425 = vadd.f32 %v2393, 1e-05
      %v2426 = vrsqrt.pop %v2394
      %v2427 = vrsqrt.pop %v2395
      %v2428 = vrsqrt.pop %v2396
      %v2429 = vrsqrt.pop %v2397
      %v2430 = vrsqrt.pop %v2398
      %v2431 = vrsqrt.pop %v2399
      %v2432 = vrsqrt.pop %v2400
      %v2433 = vrsqrt.pop %v2401
      %v2434 = vrsqrt.pop %v2402
      %v2435 = vrsqrt.pop %v2403
      %v2436 = vrsqrt.pop %v2404
      %v2437 = vrsqrt.pop %v2405
      %v2438 = vrsqrt.pop %v2406
      %v2439 = vrsqrt.pop %v2407
      %v2440 = vrsqrt.pop %v2408
      %v2441 = vrsqrt.pop %v2409
      %v2442 = vrsqrt.pop %v2410
      %v2443 = vrsqrt.pop %v2411
      %v2444 = vrsqrt.pop %v2412
      %v2445 = vrsqrt.pop %v2413
      %v2446 = vrsqrt.pop %v2414
      %v2447 = vrsqrt.pop %v2415
      %v2448 = vrsqrt.pop %v2416
      %v2449 = vrsqrt.pop %v2417
      %v2450 = vrsqrt.pop %v2418
      %v2451 = vrsqrt.pop %v2419
      %v2452 = vrsqrt.pop %v2420
      %v2453 = vrsqrt.pop %v2421
      %v2454 = vrsqrt.pop %v2422
      %v2455 = vrsqrt.pop %v2423
      %v2456 = vrsqrt.pop %v2424
      %v2457 = vrsqrt.pop %v2425
      %v2458 = vmul.f32 %v2202, %v2426
      %v2459 = vmul.f32 %v2203, %v2427
      %v2460 = vmul.f32 %v2204, %v2428
      %v2461 = vmul.f32 %v2205, %v2429
      %v2462 = vmul.f32 %v2206, %v2430
      %v2463 = vmul.f32 %v2207, %v2431
      %v2464 = vmul.f32 %v2208, %v2432
      %v2465 = vmul.f32 %v2209, %v2433
      %v2466 = vmul.f32 %v2210, %v2434
      %v2467 = vmul.f32 %v2211, %v2435
      %v2468 = vmul.f32 %v2212, %v2436
      %v2469 = vmul.f32 %v2213, %v2437
      %v2470 = vmul.f32 %v2214, %v2438
      %v2471 = vmul.f32 %v2215, %v2439
      %v2472 = vmul.f32 %v2216, %v2440
      %v2473 = vmul.f32 %v2217, %v2441
      %v2474 = vmul.f32 %v2218, %v2442
      %v2475 = vmul.f32 %v2219, %v2443
      %v2476 = vmul.f32 %v2220, %v2444
      %v2477 = vmul.f32 %v2221, %v2445
      %v2478 = vmul.f32 %v2222, %v2446
      %v2479 = vmul.f32 %v2223, %v2447
      %v2480 = vmul.f32 %v2224, %v2448
      %v2481 = vmul.f32 %v2225, %v2449
      %v2482 = vmul.f32 %v2226, %v2450
      %v2483 = vmul.f32 %v2227, %v2451
      %v2484 = vmul.f32 %v2228, %v2452
      %v2485 = vmul.f32 %v2229, %v2453
      %v2486 = vmul.f32 %v2230, %v2454
      %v2487 = vmul.f32 %v2231, %v2455
      %v2488 = vmul.f32 %v2232, %v2456
      %v2489 = vmul.f32 %v2233, %v2457
      %v2490 = vlaneseq
      %v2491 = vshrl.u32 %v2490, 7
      %v2492 = vsub.s32 0, %v2491
      %v2493 = vrot.slane %v437, %v2492
      %v2494 = vmul.f32 %v2458, %v2493
      %v2495 = vmul.f32 %v2459, %v2493
      %v2496 = vmul.f32 %v2460, %v2493
      %v2497 = vmul.f32 %v2461, %v2493
      %v2498 = vmul.f32 %v2462, %v2493
      %v2499 = vmul.f32 %v2463, %v2493
      %v2500 = vmul.f32 %v2464, %v2493
      %v2501 = vmul.f32 %v2465, %v2493
      %v2502 = vmul.f32 %v2466, %v2493
      %v2503 = vmul.f32 %v2467, %v2493
      %v2504 = vmul.f32 %v2468, %v2493
      %v2505 = vmul.f32 %v2469, %v2493
      %v2506 = vmul.f32 %v2470, %v2493
      %v2507 = vmul.f32 %v2471, %v2493
      %v2508 = vmul.f32 %v2472, %v2493
      %v2509 = vmul.f32 %v2473, %v2493
      %v2510 = vmul.f32 %v2474, %v2493
      %v2511 = vmul.f32 %v2475, %v2493
      %v2512 = vmul.f32 %v2476, %v2493
      %v2513 = vmul.f32 %v2477, %v2493
      %v2514 = vmul.f32 %v2478, %v2493
      %v2515 = vmul.f32 %v2479, %v2493
      %v2516 = vmul.f32 %v2480, %v2493
      %v2517 = vmul.f32 %v2481, %v2493
      %v2518 = vmul.f32 %v2482, %v2493
      %v2519 = vmul.f32 %v2483, %v2493
      %v2520 = vmul.f32 %v2484, %v2493
      %v2521 = vmul.f32 %v2485, %v2493
      %v2522 = vmul.f32 %v2486, %v2493
      %v2523 = vmul.f32 %v2487, %v2493
      %v2524 = vmul.f32 %v2488, %v2493
      %v2525 = vmul.f32 %v2489, %v2493
      %v2526 = vlaneseq
      %v2527 = vshrl.u32 %v2526, 7
      %v2528 = vsub.s32 0, %v2527
      %v2529 = vrot.slane %v438, %v2528
      %v2530 = vadd.f32 %v2494, %v2529
      %v2531 = vadd.f32 %v2495, %v2529
      %v2532 = vadd.f32 %v2496, %v2529
      %v2533 = vadd.f32 %v2497, %v2529
      %v2534 = vadd.f32 %v2498, %v2529
      %v2535 = vadd.f32 %v2499, %v2529
      %v2536 = vadd.f32 %v2500, %v2529
      %v2537 = vadd.f32 %v2501, %v2529
      %v2538 = vadd.f32 %v2502, %v2529
      %v2539 = vadd.f32 %v2503, %v2529
      %v2540 = vadd.f32 %v2504, %v2529
      %v2541 = vadd.f32 %v2505, %v2529
      %v2542 = vadd.f32 %v2506, %v2529
      %v2543 = vadd.f32 %v2507, %v2529
      %v2544 = vadd.f32 %v2508, %v2529
      %v2545 = vadd.f32 %v2509, %v2529
      %v2546 = vadd.f32 %v2510, %v2529
      %v2547 = vadd.f32 %v2511, %v2529
      %v2548 = vadd.f32 %v2512, %v2529
      %v2549 = vadd.f32 %v2513, %v2529
      %v2550 = vadd.f32 %v2514, %v2529
      %v2551 = vadd.f32 %v2515, %v2529
      %v2552 = vadd.f32 %v2516, %v2529
      %v2553 = vadd.f32 %v2517, %v2529
      %v2554 = vadd.f32 %v2518, %v2529
      %v2555 = vadd.f32 %v2519, %v2529
      %v2556 = vadd.f32 %v2520, %v2529
      %v2557 = vadd.f32 %v2521, %v2529
      %v2558 = vadd.f32 %v2522, %v2529
      %v2559 = vadd.f32 %v2523, %v2529
      %v2560 = vadd.f32 %v2524, %v2529
      %v2561 = vadd.f32 %v2525, %v2529
      %v2562 = vld [vmem:[%s6] sm:$0xff]
      %v2563 = vld [vmem:[%s6 + $0x8] sm:$0xff]
      %v2564 = vld [vmem:[%s6 + $0x10] sm:$0xff]
      %v2565 = vld [vmem:[%s6 + $0x18] sm:$0xff]
      %v2566 = vlaneseq
      %v2567 = vshrl.u32 %v2566, 7
      %v2568 = vsub.s32 0, %v2567
      %v2569 = vrot.slane %v439, %v2568
      %v2571 = vsel %vm2072, %v2530, 0
      %v2574 = vsel %vm2072, %v2531, 0
      %v2577 = vsel %vm2072, %v2532, 0
      %v2580 = vsel %vm2072, %v2533, 0
      %v2583 = vsel %vm2072, %v2534, 0
      %v2586 = vsel %vm2072, %v2535, 0
      %v2589 = vsel %vm2072, %v2536, 0
      %v2592 = vsel %vm2072, %v2537, 0
      %v2595 = vsel %vm2072, %v2538, 0
      %v2598 = vsel %vm2072, %v2539, 0
      %v2601 = vsel %vm2072, %v2540, 0
      %v2604 = vsel %vm2072, %v2541, 0
      %v2607 = vsel %vm2072, %v2542, 0
      %v2610 = vsel %vm2072, %v2543, 0
      %v2613 = vsel %vm2072, %v2544, 0
      %v2616 = vsel %vm2072, %v2545, 0
      %v2619 = vsel %vm2072, %v2546, 0
      %v2622 = vsel %vm2072, %v2547, 0
      %v2625 = vsel %vm2072, %v2548, 0
      %v2628 = vsel %vm2072, %v2549, 0
      %v2631 = vsel %vm2072, %v2550, 0
      %v2634 = vsel %vm2072, %v2551, 0
      %v2637 = vsel %vm2072, %v2552, 0
      %v2640 = vsel %vm2072, %v2553, 0
      %v2643 = vsel %vm2072, %v2554, 0
      %v2646 = vsel %vm2072, %v2555, 0
      %v2649 = vsel %vm2072, %v2556, 0
      %v2652 = vsel %vm2072, %v2557, 0
      %v2655 = vsel %vm2072, %v2558, 0
      %v2658 = vsel %vm2072, %v2559, 0
      %v2661 = vsel %vm2072, %v2560, 0
      %v2664 = vsel %vm2072, %v2561, 0
      %2666 = vmatprep.subr.mxu0 0.0
      %2667 = vmatpush1.msra.mxu0 0.0
      %2668 = vmatprep.subr.mxu0 0.0
      %2669 = vmatpush1.msra.mxu0 0.0
      %2670 = vmatprep.subr.mxu0 0.0
      %2671 = vmatpush1.msra.mxu0 0.0
      %2672 = vmatprep.subr.mxu0 0.0
      %2673 = vmatpush1.msra.mxu0 0.0
      %2674 = vmatprep.subr.mxu0 0.0
      %2675 = vmatpush1.msra.mxu0 0.0
      %2676 = vmatprep.subr.mxu0 0.0
      %2677 = vmatpush1.msra.mxu0 0.0
      %2678 = vmatprep.subr.mxu0 0.0
      %2679 = vmatpush1.msra.mxu0 0.0
      %2680 = vmatprep.subr.mxu0 0.0
      %2681 = vmatpush1.msra.mxu0 0.0
      %2682 = vmatprep.subr.mxu0 0.0
      %2683 = vmatpush1.msra.mxu0 0.0
      %2684 = vmatprep.subr.mxu0 0.0
      %2685 = vmatpush1.msra.mxu0 0.0
      %2686 = vmatprep.subr.mxu0 0.0
      %2687 = vmatpush1.msra.mxu0 0.0
      %2688 = vmatprep.subr.mxu0 0.0
      %2689 = vmatpush1.msra.mxu0 0.0
      %2690 = vmatprep.subr.mxu0 0.0
      %2691 = vmatpush1.msra.mxu0 %v2565
      %2692 = vmatprep.subr.mxu0 0.0
      %2693 = vmatpush1.msra.mxu0 %v2564
      %2694 = vmatprep.subr.mxu0 0.0
      %2695 = vmatpush1.msra.mxu0 %v2563
      %2696 = vmatprep.subr.mxu0 0.0
      %2697 = vmatpush1.msra.mxu0 %v2562
      %2698 = vmatprep.subr.mxu0 0.0
      %2699 = vmatpush2.msra.mxu0 0.0
      %2700 = vmatprep.subr.mxu0 0.0
      %2701 = vmatpush2.msra.mxu0 0.0
      %2702 = vmatprep.subr.mxu0 0.0
      %2703 = vmatpush2.msra.mxu0 0.0
      %2704 = vmatprep.subr.mxu0 0.0
      %2705 = vmatpush2.msra.mxu0 0.0
      %2706 = vmatprep.subr.mxu0 0.0
      %2707 = vmatpush2.msra.mxu0 0.0
      %2708 = vmatprep.subr.mxu0 0.0
      %2709 = vmatpush2.msra.mxu0 0.0
      %2710 = vmatprep.subr.mxu0 0.0
      %2711 = vmatpush2.msra.mxu0 0.0
      %2712 = vmatprep.subr.mxu0 0.0
      %2713 = vmatpush2.msra.mxu0 0.0
      %2714 = vmatprep.subr.mxu0 0.0
      %2715 = vmatpush2.msra.mxu0 0.0
      %2716 = vmatprep.subr.mxu0 0.0
      %2717 = vmatpush2.msra.mxu0 0.0
      %2718 = vmatprep.subr.mxu0 0.0
      %2719 = vmatpush2.msra.mxu0 0.0
      %2720 = vmatprep.subr.mxu0 0.0
      %2721 = vmatpush2.msra.mxu0 0.0
      %2722 = vmatprep.subr.mxu0 0.0
      %2723 = vmatpush2.msra.mxu0 0.0
      %2724 = vmatprep.subr.mxu0 0.0
      %2725 = vmatpush2.msra.mxu0 0.0
      %2726 = vmatprep.subr.mxu0 0.0
      %2727 = vmatpush2.msra.mxu0 0.0
      %2728 = vmatprep.subr.mxu0 0.0
      %2729 = vmatpush2.msra.mxu0 0.0
      %2730 = vmatprep.mubr.f32.mxu0 0.0
      %2731 = vmatmul.mubr.f32.gmra.mxu0 %v2571
      %v2732 = vpop.f32.mrf.mxu0
      %v2733 = vadd.f32 %v2569, %v2732
      %v2734 = vpop.f32.mrf.mxu0
      %2735 = vmatprep.mubr.f32.mxu0 0.0
      %2736 = vmatmul.mubr.f32.gmra.mxu0 %v2574
      %v2737 = vpop.f32.mrf.mxu0
      %v2738 = vadd.f32 %v2569, %v2737
      %v2739 = vpop.f32.mrf.mxu0
      %2740 = vmatprep.mubr.f32.mxu0 0.0
      %2741 = vmatmul.mubr.f32.gmra.mxu0 %v2577
      %v2742 = vpop.f32.mrf.mxu0
      %v2743 = vadd.f32 %v2569, %v2742
      %v2744 = vpop.f32.mrf.mxu0
      %2745 = vmatprep.mubr.f32.mxu0 0.0
      %2746 = vmatmul.mubr.f32.gmra.mxu0 %v2580
      %v2747 = vpop.f32.mrf.mxu0
      %v2748 = vadd.f32 %v2569, %v2747
      %v2749 = vpop.f32.mrf.mxu0
      %2750 = vmatprep.mubr.f32.mxu0 0.0
      %2751 = vmatmul.mubr.f32.gmra.mxu0 %v2583
      %v2752 = vpop.f32.mrf.mxu0
      %v2753 = vadd.f32 %v2569, %v2752
      %v2754 = vpop.f32.mrf.mxu0
      %2755 = vmatprep.mubr.f32.mxu0 0.0
      %2756 = vmatmul.mubr.f32.gmra.mxu0 %v2586
      %v2757 = vpop.f32.mrf.mxu0
      %v2758 = vadd.f32 %v2569, %v2757
      %v2759 = vpop.f32.mrf.mxu0
      %2760 = vmatprep.mubr.f32.mxu0 0.0
      %2761 = vmatmul.mubr.f32.gmra.mxu0 %v2589
      %v2762 = vpop.f32.mrf.mxu0
      %v2763 = vadd.f32 %v2569, %v2762
      %v2764 = vpop.f32.mrf.mxu0
      %2765 = vmatprep.mubr.f32.mxu0 0.0
      %2766 = vmatmul.mubr.f32.gmra.mxu0 %v2592
      %v2767 = vpop.f32.mrf.mxu0
      %v2768 = vadd.f32 %v2569, %v2767
      %v2769 = vpop.f32.mrf.mxu0
      %2770 = vmatprep.mubr.f32.mxu0 0.0
      %2771 = vmatmul.mubr.f32.gmra.mxu0 %v2595
      %v2772 = vpop.f32.mrf.mxu0
      %v2773 = vadd.f32 %v2569, %v2772
      %v2774 = vpop.f32.mrf.mxu0
      %2775 = vmatprep.mubr.f32.mxu0 0.0
      %2776 = vmatmul.mubr.f32.gmra.mxu0 %v2598
      %v2777 = vpop.f32.mrf.mxu0
      %v2778 = vadd.f32 %v2569, %v2777
      %v2779 = vpop.f32.mrf.mxu0
      %2780 = vmatprep.mubr.f32.mxu0 0.0
      %2781 = vmatmul.mubr.f32.gmra.mxu0 %v2601
      %v2782 = vpop.f32.mrf.mxu0
      %v2783 = vadd.f32 %v2569, %v2782
      %v2784 = vpop.f32.mrf.mxu0
      %2785 = vmatprep.mubr.f32.mxu0 0.0
      %2786 = vmatmul.mubr.f32.gmra.mxu0 %v2604
      %v2787 = vpop.f32.mrf.mxu0
      %v2788 = vadd.f32 %v2569, %v2787
      %v2789 = vpop.f32.mrf.mxu0
      %2790 = vmatprep.mubr.f32.mxu0 0.0
      %2791 = vmatmul.mubr.f32.gmra.mxu0 %v2607
      %v2792 = vpop.f32.mrf.mxu0
      %v2793 = vadd.f32 %v2569, %v2792
      %v2794 = vpop.f32.mrf.mxu0
      %2795 = vmatprep.mubr.f32.mxu0 0.0
      %2796 = vmatmul.mubr.f32.gmra.mxu0 %v2610
      %v2797 = vpop.f32.mrf.mxu0
      %v2798 = vadd.f32 %v2569, %v2797
      %v2799 = vpop.f32.mrf.mxu0
      %2800 = vmatprep.mubr.f32.mxu0 0.0
      %2801 = vmatmul.mubr.f32.gmra.mxu0 %v2613
      %v2802 = vpop.f32.mrf.mxu0
      %v2803 = vadd.f32 %v2569, %v2802
      %v2804 = vpop.f32.mrf.mxu0
      %2805 = vmatprep.mubr.f32.mxu0 0.0
      %2806 = vmatmul.mubr.f32.gmra.mxu0 %v2616
      %v2807 = vpop.f32.mrf.mxu0
      %v2808 = vadd.f32 %v2569, %v2807
      %v2809 = vpop.f32.mrf.mxu0
      %2810 = vmatprep.mubr.f32.mxu0 0.0
      %2811 = vmatmul.mubr.f32.gmra.mxu0 %v2619
      %v2812 = vpop.f32.mrf.mxu0
      %v2813 = vadd.f32 %v2569, %v2812
      %v2814 = vpop.f32.mrf.mxu0
      %2815 = vmatprep.mubr.f32.mxu0 0.0
      %2816 = vmatmul.mubr.f32.gmra.mxu0 %v2622
      %v2817 = vpop.f32.mrf.mxu0
      %v2818 = vadd.f32 %v2569, %v2817
      %v2819 = vpop.f32.mrf.mxu0
      %2820 = vmatprep.mubr.f32.mxu0 0.0
      %2821 = vmatmul.mubr.f32.gmra.mxu0 %v2625
      %v2822 = vpop.f32.mrf.mxu0
      %v2823 = vadd.f32 %v2569, %v2822
      %v2824 = vpop.f32.mrf.mxu0
      %2825 = vmatprep.mubr.f32.mxu0 0.0
      %2826 = vmatmul.mubr.f32.gmra.mxu0 %v2628
      %v2827 = vpop.f32.mrf.mxu0
      %v2828 = vadd.f32 %v2569, %v2827
      %v2829 = vpop.f32.mrf.mxu0
      %2830 = vmatprep.mubr.f32.mxu0 0.0
      %2831 = vmatmul.mubr.f32.gmra.mxu0 %v2631
      %v2832 = vpop.f32.mrf.mxu0
      %v2833 = vadd.f32 %v2569, %v2832
      %v2834 = vpop.f32.mrf.mxu0
      %2835 = vmatprep.mubr.f32.mxu0 0.0
      %2836 = vmatmul.mubr.f32.gmra.mxu0 %v2634
      %v2837 = vpop.f32.mrf.mxu0
      %v2838 = vadd.f32 %v2569, %v2837
      %v2839 = vpop.f32.mrf.mxu0
      %2840 = vmatprep.mubr.f32.mxu0 0.0
      %2841 = vmatmul.mubr.f32.gmra.mxu0 %v2637
      %v2842 = vpop.f32.mrf.mxu0
      %v2843 = vadd.f32 %v2569, %v2842
      %v2844 = vpop.f32.mrf.mxu0
      %2845 = vmatprep.mubr.f32.mxu0 0.0
      %2846 = vmatmul.mubr.f32.gmra.mxu0 %v2640
      %v2847 = vpop.f32.mrf.mxu0
      %v2848 = vadd.f32 %v2569, %v2847
      %v2849 = vpop.f32.mrf.mxu0
      %2850 = vmatprep.mubr.f32.mxu0 0.0
      %2851 = vmatmul.mubr.f32.gmra.mxu0 %v2643
      %v2852 = vpop.f32.mrf.mxu0
      %v2853 = vadd.f32 %v2569, %v2852
      %v2854 = vpop.f32.mrf.mxu0
      %2855 = vmatprep.mubr.f32.mxu0 0.0
      %2856 = vmatmul.mubr.f32.gmra.mxu0 %v2646
      %v2857 = vpop.f32.mrf.mxu0
      %v2858 = vadd.f32 %v2569, %v2857
      %v2859 = vpop.f32.mrf.mxu0
      %2860 = vmatprep.mubr.f32.mxu0 0.0
      %2861 = vmatmul.mubr.f32.gmra.mxu0 %v2649
      %v2862 = vpop.f32.mrf.mxu0
      %v2863 = vadd.f32 %v2569, %v2862
      %v2864 = vpop.f32.mrf.mxu0
      %2865 = vmatprep.mubr.f32.mxu0 0.0
      %2866 = vmatmul.mubr.f32.gmra.mxu0 %v2652
      %v2867 = vpop.f32.mrf.mxu0
      %v2868 = vadd.f32 %v2569, %v2867
      %v2869 = vpop.f32.mrf.mxu0
      %2870 = vmatprep.mubr.f32.mxu0 0.0
      %2871 = vmatmul.mubr.f32.gmra.mxu0 %v2655
      %v2872 = vpop.f32.mrf.mxu0
      %v2873 = vadd.f32 %v2569, %v2872
      %v2874 = vpop.f32.mrf.mxu0
      %2875 = vmatprep.mubr.f32.mxu0 0.0
      %2876 = vmatmul.mubr.f32.gmra.mxu0 %v2658
      %v2877 = vpop.f32.mrf.mxu0
      %v2878 = vadd.f32 %v2569, %v2877
      %v2879 = vpop.f32.mrf.mxu0
      %2880 = vmatprep.mubr.f32.mxu0 0.0
      %2881 = vmatmul.mubr.f32.gmra.mxu0 %v2661
      %v2882 = vpop.f32.mrf.mxu0
      %v2883 = vadd.f32 %v2569, %v2882
      %v2884 = vpop.f32.mrf.mxu0
      %2885 = vmatprep.mubr.f32.mxu0 0.0
      %2886 = vmatmul.mubr.f32.gmra.mxu0 %v2664
      %v2887 = vpop.f32.mrf.mxu0
      %v2888 = vadd.f32 %v2569, %v2887
      %v2889 = vpop.f32.mrf.mxu0
      %2890 = vdwg.mxu0
      %v2891 = vmax.f32 %v2733, 0.0
      %v2892 = vmax.f32 %v2738, 0.0
      %v2893 = vmax.f32 %v2743, 0.0
      %v2894 = vmax.f32 %v2748, 0.0
      %v2895 = vmax.f32 %v2753, 0.0
      %v2896 = vmax.f32 %v2758, 0.0
      %v2897 = vmax.f32 %v2763, 0.0
      %v2898 = vmax.f32 %v2768, 0.0
      %v2899 = vmax.f32 %v2773, 0.0
      %v2900 = vmax.f32 %v2778, 0.0
      %v2901 = vmax.f32 %v2783, 0.0
      %v2902 = vmax.f32 %v2788, 0.0
      %v2903 = vmax.f32 %v2793, 0.0
      %v2904 = vmax.f32 %v2798, 0.0
      %v2905 = vmax.f32 %v2803, 0.0
      %v2906 = vmax.f32 %v2808, 0.0
      %v2907 = vmax.f32 %v2813, 0.0
      %v2908 = vmax.f32 %v2818, 0.0
      %v2909 = vmax.f32 %v2823, 0.0
      %v2910 = vmax.f32 %v2828, 0.0
      %v2911 = vmax.f32 %v2833, 0.0
      %v2912 = vmax.f32 %v2838, 0.0
      %v2913 = vmax.f32 %v2843, 0.0
      %v2914 = vmax.f32 %v2848, 0.0
      %v2915 = vmax.f32 %v2853, 0.0
      %v2916 = vmax.f32 %v2858, 0.0
      %v2917 = vmax.f32 %v2863, 0.0
      %v2918 = vmax.f32 %v2868, 0.0
      %v2919 = vmax.f32 %v2873, 0.0
      %v2920 = vmax.f32 %v2878, 0.0
      %v2921 = vmax.f32 %v2883, 0.0
      %v2922 = vmax.f32 %v2888, 0.0
      %v2923 = vsel %vm2072, %v2891, 0.0
      %2924 = vadd.xlane.f32.xlu0 %v2923
      %v2925 = vpop.xlane.xlu0 %2924
      %v2926 = vsel %vm2072, %v2892, 0.0
      %2927 = vadd.xlane.f32.xlu0 %v2926
      %v2928 = vpop.xlane.xlu0 %2927
      %v2929 = vsel %vm2072, %v2893, 0.0
      %2930 = vadd.xlane.f32.xlu0 %v2929
      %v2931 = vpop.xlane.xlu0 %2930
      %v2932 = vsel %vm2072, %v2894, 0.0
      %2933 = vadd.xlane.f32.xlu0 %v2932
      %v2934 = vpop.xlane.xlu0 %2933
      %v2935 = vsel %vm2072, %v2895, 0.0
      %2936 = vadd.xlane.f32.xlu0 %v2935
      %v2937 = vpop.xlane.xlu0 %2936
      %v2938 = vsel %vm2072, %v2896, 0.0
      %2939 = vadd.xlane.f32.xlu0 %v2938
      %v2940 = vpop.xlane.xlu0 %2939
      %v2941 = vsel %vm2072, %v2897, 0.0
      %2942 = vadd.xlane.f32.xlu0 %v2941
      %v2943 = vpop.xlane.xlu0 %2942
      %v2944 = vsel %vm2072, %v2898, 0.0
      %2945 = vadd.xlane.f32.xlu0 %v2944
      %v2946 = vpop.xlane.xlu0 %2945
      %v2947 = vsel %vm2072, %v2899, 0.0
      %2948 = vadd.xlane.f32.xlu0 %v2947
      %v2949 = vpop.xlane.xlu0 %2948
      %v2950 = vsel %vm2072, %v2900, 0.0
      %2951 = vadd.xlane.f32.xlu0 %v2950
      %v2952 = vpop.xlane.xlu0 %2951
      %v2953 = vsel %vm2072, %v2901, 0.0
      %2954 = vadd.xlane.f32.xlu0 %v2953
      %v2955 = vpop.xlane.xlu0 %2954
      %v2956 = vsel %vm2072, %v2902, 0.0
      %2957 = vadd.xlane.f32.xlu0 %v2956
      %v2958 = vpop.xlane.xlu0 %2957
      %v2959 = vsel %vm2072, %v2903, 0.0
      %2960 = vadd.xlane.f32.xlu0 %v2959
      %v2961 = vpop.xlane.xlu0 %2960
      %v2962 = vsel %vm2072, %v2904, 0.0
      %2963 = vadd.xlane.f32.xlu0 %v2962
      %v2964 = vpop.xlane.xlu0 %2963
      %v2965 = vsel %vm2072, %v2905, 0.0
      %2966 = vadd.xlane.f32.xlu0 %v2965
      %v2967 = vpop.xlane.xlu0 %2966
      %v2968 = vsel %vm2072, %v2906, 0.0
      %2969 = vadd.xlane.f32.xlu0 %v2968
      %v2970 = vpop.xlane.xlu0 %2969
      %v2971 = vsel %vm2072, %v2907, 0.0
      %2972 = vadd.xlane.f32.xlu0 %v2971
      %v2973 = vpop.xlane.xlu0 %2972
      %v2974 = vsel %vm2072, %v2908, 0.0
      %2975 = vadd.xlane.f32.xlu0 %v2974
      %v2976 = vpop.xlane.xlu0 %2975
      %v2977 = vsel %vm2072, %v2909, 0.0
      %2978 = vadd.xlane.f32.xlu0 %v2977
      %v2979 = vpop.xlane.xlu0 %2978
      %v2980 = vsel %vm2072, %v2910, 0.0
      %2981 = vadd.xlane.f32.xlu0 %v2980
      %v2982 = vpop.xlane.xlu0 %2981
      %v2983 = vsel %vm2072, %v2911, 0.0
      %2984 = vadd.xlane.f32.xlu0 %v2983
      %v2985 = vpop.xlane.xlu0 %2984
      %v2986 = vsel %vm2072, %v2912, 0.0
      %2987 = vadd.xlane.f32.xlu0 %v2986
      %v2988 = vpop.xlane.xlu0 %2987
      %v2989 = vsel %vm2072, %v2913, 0.0
      %2990 = vadd.xlane.f32.xlu0 %v2989
      %v2991 = vpop.xlane.xlu0 %2990
      %v2992 = vsel %vm2072, %v2914, 0.0
      %2993 = vadd.xlane.f32.xlu0 %v2992
      %v2994 = vpop.xlane.xlu0 %2993
      %v2995 = vsel %vm2072, %v2915, 0.0
      %2996 = vadd.xlane.f32.xlu0 %v2995
      %v2997 = vpop.xlane.xlu0 %2996
      %v2998 = vsel %vm2072, %v2916, 0.0
      %2999 = vadd.xlane.f32.xlu0 %v2998
      %v3000 = vpop.xlane.xlu0 %2999
      %v3001 = vsel %vm2072, %v2917, 0.0
      %3002 = vadd.xlane.f32.xlu0 %v3001
      %v3003 = vpop.xlane.xlu0 %3002
      %v3004 = vsel %vm2072, %v2918, 0.0
      %3005 = vadd.xlane.f32.xlu0 %v3004
      %v3006 = vpop.xlane.xlu0 %3005
      %v3007 = vsel %vm2072, %v2919, 0.0
      %3008 = vadd.xlane.f32.xlu0 %v3007
      %v3009 = vpop.xlane.xlu0 %3008
      %v3010 = vsel %vm2072, %v2920, 0.0
      %3011 = vadd.xlane.f32.xlu0 %v3010
      %v3012 = vpop.xlane.xlu0 %3011
      %v3013 = vsel %vm2072, %v2921, 0.0
      %3014 = vadd.xlane.f32.xlu0 %v3013
      %v3015 = vpop.xlane.xlu0 %3014
      %v3016 = vsel %vm2072, %v2922, 0.0
      %3017 = vadd.xlane.f32.xlu0 %v3016
      %v3018 = vpop.xlane.xlu0 %3017
      %v3019 = vmul.f32 %v2925, %v2169
      %v3020 = vmul.f32 %v2928, %v2169
      %v3021 = vmul.f32 %v2931, %v2169
      %v3022 = vmul.f32 %v2934, %v2169
      %v3023 = vmul.f32 %v2937, %v2169
      %v3024 = vmul.f32 %v2940, %v2169
      %v3025 = vmul.f32 %v2943, %v2169
      %v3026 = vmul.f32 %v2946, %v2169
      %v3027 = vmul.f32 %v2949, %v2169
      %v3028 = vmul.f32 %v2952, %v2169
      %v3029 = vmul.f32 %v2955, %v2169
      %v3030 = vmul.f32 %v2958, %v2169
      %v3031 = vmul.f32 %v2961, %v2169
      %v3032 = vmul.f32 %v2964, %v2169
      %v3033 = vmul.f32 %v2967, %v2169
      %v3034 = vmul.f32 %v2970, %v2169
      %v3035 = vmul.f32 %v2973, %v2169
      %v3036 = vmul.f32 %v2976, %v2169
      %v3037 = vmul.f32 %v2979, %v2169
      %v3038 = vmul.f32 %v2982, %v2169
      %v3039 = vmul.f32 %v2985, %v2169
      %v3040 = vmul.f32 %v2988, %v2169
      %v3041 = vmul.f32 %v2991, %v2169
      %v3042 = vmul.f32 %v2994, %v2169
      %v3043 = vmul.f32 %v2997, %v2169
      %v3044 = vmul.f32 %v3000, %v2169
      %v3045 = vmul.f32 %v3003, %v2169
      %v3046 = vmul.f32 %v3006, %v2169
      %v3047 = vmul.f32 %v3009, %v2169
      %v3048 = vmul.f32 %v3012, %v2169
      %v3049 = vmul.f32 %v3015, %v2169
      %v3050 = vmul.f32 %v3018, %v2169
      %v3051 = vsub.f32 %v2891, %v3019
      %v3052 = vsub.f32 %v2892, %v3020
      %v3053 = vsub.f32 %v2893, %v3021
      %v3054 = vsub.f32 %v2894, %v3022
      %v3055 = vsub.f32 %v2895, %v3023
      %v3056 = vsub.f32 %v2896, %v3024
      %v3057 = vsub.f32 %v2897, %v3025
      %v3058 = vsub.f32 %v2898, %v3026
      %v3059 = vsub.f32 %v2899, %v3027
      %v3060 = vsub.f32 %v2900, %v3028
      %v3061 = vsub.f32 %v2901, %v3029
      %v3062 = vsub.f32 %v2902, %v3030
      %v3063 = vsub.f32 %v2903, %v3031
      %v3064 = vsub.f32 %v2904, %v3032
      %v3065 = vsub.f32 %v2905, %v3033
      %v3066 = vsub.f32 %v2906, %v3034
      %v3067 = vsub.f32 %v2907, %v3035
      %v3068 = vsub.f32 %v2908, %v3036
      %v3069 = vsub.f32 %v2909, %v3037
      %v3070 = vsub.f32 %v2910, %v3038
      %v3071 = vsub.f32 %v2911, %v3039
      %v3072 = vsub.f32 %v2912, %v3040
      %v3073 = vsub.f32 %v2913, %v3041
      %v3074 = vsub.f32 %v2914, %v3042
      %v3075 = vsub.f32 %v2915, %v3043
      %v3076 = vsub.f32 %v2916, %v3044
      %v3077 = vsub.f32 %v2917, %v3045
      %v3078 = vsub.f32 %v2918, %v3046
      %v3079 = vsub.f32 %v2919, %v3047
      %v3080 = vsub.f32 %v2920, %v3048
      %v3081 = vsub.f32 %v2921, %v3049
      %v3082 = vsub.f32 %v2922, %v3050
      %v3083 = vmul.f32 %v3051, %v3051
      %v3084 = vmul.f32 %v3052, %v3052
      %v3085 = vmul.f32 %v3053, %v3053
      %v3086 = vmul.f32 %v3054, %v3054
      %v3087 = vmul.f32 %v3055, %v3055
      %v3088 = vmul.f32 %v3056, %v3056
      %v3089 = vmul.f32 %v3057, %v3057
      %v3090 = vmul.f32 %v3058, %v3058
      %v3091 = vmul.f32 %v3059, %v3059
      %v3092 = vmul.f32 %v3060, %v3060
      %v3093 = vmul.f32 %v3061, %v3061
      %v3094 = vmul.f32 %v3062, %v3062
      %v3095 = vmul.f32 %v3063, %v3063
      %v3096 = vmul.f32 %v3064, %v3064
      %v3097 = vmul.f32 %v3065, %v3065
      %v3098 = vmul.f32 %v3066, %v3066
      %v3099 = vmul.f32 %v3067, %v3067
      %v3100 = vmul.f32 %v3068, %v3068
      %v3101 = vmul.f32 %v3069, %v3069
      %v3102 = vmul.f32 %v3070, %v3070
      %v3103 = vmul.f32 %v3071, %v3071
      %v3104 = vmul.f32 %v3072, %v3072
      %v3105 = vmul.f32 %v3073, %v3073
      %v3106 = vmul.f32 %v3074, %v3074
      %v3107 = vmul.f32 %v3075, %v3075
      %v3108 = vmul.f32 %v3076, %v3076
      %v3109 = vmul.f32 %v3077, %v3077
      %v3110 = vmul.f32 %v3078, %v3078
      %v3111 = vmul.f32 %v3079, %v3079
      %v3112 = vmul.f32 %v3080, %v3080
      %v3113 = vmul.f32 %v3081, %v3081
      %v3114 = vmul.f32 %v3082, %v3082
      %v3115 = vsel %vm2072, %v3083, 0.0
      %3116 = vadd.xlane.f32.xlu0 %v3115
      %v3117 = vpop.xlane.xlu0 %3116
      %v3118 = vsel %vm2072, %v3084, 0.0
      %3119 = vadd.xlane.f32.xlu0 %v3118
      %v3120 = vpop.xlane.xlu0 %3119
      %v3121 = vsel %vm2072, %v3085, 0.0
      %3122 = vadd.xlane.f32.xlu0 %v3121
      %v3123 = vpop.xlane.xlu0 %3122
      %v3124 = vsel %vm2072, %v3086, 0.0
      %3125 = vadd.xlane.f32.xlu0 %v3124
      %v3126 = vpop.xlane.xlu0 %3125
      %v3127 = vsel %vm2072, %v3087, 0.0
      %3128 = vadd.xlane.f32.xlu0 %v3127
      %v3129 = vpop.xlane.xlu0 %3128
      %v3130 = vsel %vm2072, %v3088, 0.0
      %3131 = vadd.xlane.f32.xlu0 %v3130
      %v3132 = vpop.xlane.xlu0 %3131
      %v3133 = vsel %vm2072, %v3089, 0.0
      %3134 = vadd.xlane.f32.xlu0 %v3133
      %v3135 = vpop.xlane.xlu0 %3134
      %v3136 = vsel %vm2072, %v3090, 0.0
      %3137 = vadd.xlane.f32.xlu0 %v3136
      %v3138 = vpop.xlane.xlu0 %3137
      %v3139 = vsel %vm2072, %v3091, 0.0
      %3140 = vadd.xlane.f32.xlu0 %v3139
      %v3141 = vpop.xlane.xlu0 %3140
      %v3142 = vsel %vm2072, %v3092, 0.0
      %3143 = vadd.xlane.f32.xlu0 %v3142
      %v3144 = vpop.xlane.xlu0 %3143
      %v3145 = vsel %vm2072, %v3093, 0.0
      %3146 = vadd.xlane.f32.xlu0 %v3145
      %v3147 = vpop.xlane.xlu0 %3146
      %v3148 = vsel %vm2072, %v3094, 0.0
      %3149 = vadd.xlane.f32.xlu0 %v3148
      %v3150 = vpop.xlane.xlu0 %3149
      %v3151 = vsel %vm2072, %v3095, 0.0
      %3152 = vadd.xlane.f32.xlu0 %v3151
      %v3153 = vpop.xlane.xlu0 %3152
      %v3154 = vsel %vm2072, %v3096, 0.0
      %3155 = vadd.xlane.f32.xlu0 %v3154
      %v3156 = vpop.xlane.xlu0 %3155
      %v3157 = vsel %vm2072, %v3097, 0.0
      %3158 = vadd.xlane.f32.xlu0 %v3157
      %v3159 = vpop.xlane.xlu0 %3158
      %v3160 = vsel %vm2072, %v3098, 0.0
      %3161 = vadd.xlane.f32.xlu0 %v3160
      %v3162 = vpop.xlane.xlu0 %3161
      %v3163 = vsel %vm2072, %v3099, 0.0
      %3164 = vadd.xlane.f32.xlu0 %v3163
      %v3165 = vpop.xlane.xlu0 %3164
      %v3166 = vsel %vm2072, %v3100, 0.0
      %3167 = vadd.xlane.f32.xlu0 %v3166
      %v3168 = vpop.xlane.xlu0 %3167
      %v3169 = vsel %vm2072, %v3101, 0.0
      %3170 = vadd.xlane.f32.xlu0 %v3169
      %v3171 = vpop.xlane.xlu0 %3170
      %v3172 = vsel %vm2072, %v3102, 0.0
      %3173 = vadd.xlane.f32.xlu0 %v3172
      %v3174 = vpop.xlane.xlu0 %3173
      %v3175 = vsel %vm2072, %v3103, 0.0
      %3176 = vadd.xlane.f32.xlu0 %v3175
      %v3177 = vpop.xlane.xlu0 %3176
      %v3178 = vsel %vm2072, %v3104, 0.0
      %3179 = vadd.xlane.f32.xlu0 %v3178
      %v3180 = vpop.xlane.xlu0 %3179
      %v3181 = vsel %vm2072, %v3105, 0.0
      %3182 = vadd.xlane.f32.xlu0 %v3181
      %v3183 = vpop.xlane.xlu0 %3182
      %v3184 = vsel %vm2072, %v3106, 0.0
      %3185 = vadd.xlane.f32.xlu0 %v3184
      %v3186 = vpop.xlane.xlu0 %3185
      %v3187 = vsel %vm2072, %v3107, 0.0
      %3188 = vadd.xlane.f32.xlu0 %v3187
      %v3189 = vpop.xlane.xlu0 %3188
      %v3190 = vsel %vm2072, %v3108, 0.0
      %3191 = vadd.xlane.f32.xlu0 %v3190
      %v3192 = vpop.xlane.xlu0 %3191
      %v3193 = vsel %vm2072, %v3109, 0.0
      %3194 = vadd.xlane.f32.xlu0 %v3193
      %v3195 = vpop.xlane.xlu0 %3194
      %v3196 = vsel %vm2072, %v3110, 0.0
      %3197 = vadd.xlane.f32.xlu0 %v3196
      %v3198 = vpop.xlane.xlu0 %3197
      %v3199 = vsel %vm2072, %v3111, 0.0
      %3200 = vadd.xlane.f32.xlu0 %v3199
      %v3201 = vpop.xlane.xlu0 %3200
      %v3202 = vsel %vm2072, %v3112, 0.0
      %3203 = vadd.xlane.f32.xlu0 %v3202
      %v3204 = vpop.xlane.xlu0 %3203
      %v3205 = vsel %vm2072, %v3113, 0.0
      %3206 = vadd.xlane.f32.xlu0 %v3205
      %v3207 = vpop.xlane.xlu0 %3206
      %v3208 = vsel %vm2072, %v3114, 0.0
      %3209 = vadd.xlane.f32.xlu0 %v3208
      %v3210 = vpop.xlane.xlu0 %3209
      %v3211 = vmul.f32 %v3117, %v2169
      %v3212 = vmul.f32 %v3120, %v2169
      %v3213 = vmul.f32 %v3123, %v2169
      %v3214 = vmul.f32 %v3126, %v2169
      %v3215 = vmul.f32 %v3129, %v2169
      %v3216 = vmul.f32 %v3132, %v2169
      %v3217 = vmul.f32 %v3135, %v2169
      %v3218 = vmul.f32 %v3138, %v2169
      %v3219 = vmul.f32 %v3141, %v2169
      %v3220 = vmul.f32 %v3144, %v2169
      %v3221 = vmul.f32 %v3147, %v2169
      %v3222 = vmul.f32 %v3150, %v2169
      %v3223 = vmul.f32 %v3153, %v2169
      %v3224 = vmul.f32 %v3156, %v2169
      %v3225 = vmul.f32 %v3159, %v2169
      %v3226 = vmul.f32 %v3162, %v2169
      %v3227 = vmul.f32 %v3165, %v2169
      %v3228 = vmul.f32 %v3168, %v2169
      %v3229 = vmul.f32 %v3171, %v2169
      %v3230 = vmul.f32 %v3174, %v2169
      %v3231 = vmul.f32 %v3177, %v2169
      %v3232 = vmul.f32 %v3180, %v2169
      %v3233 = vmul.f32 %v3183, %v2169
      %v3234 = vmul.f32 %v3186, %v2169
      %v3235 = vmul.f32 %v3189, %v2169
      %v3236 = vmul.f32 %v3192, %v2169
      %v3237 = vmul.f32 %v3195, %v2169
      %v3238 = vmul.f32 %v3198, %v2169
      %v3239 = vmul.f32 %v3201, %v2169
      %v3240 = vmul.f32 %v3204, %v2169
      %v3241 = vmul.f32 %v3207, %v2169
      %v3242 = vmul.f32 %v3210, %v2169
      %v3243 = vadd.f32 %v3211, 1e-05
      %v3244 = vadd.f32 %v3212, 1e-05
      %v3245 = vadd.f32 %v3213, 1e-05
      %v3246 = vadd.f32 %v3214, 1e-05
      %v3247 = vadd.f32 %v3215, 1e-05
      %v3248 = vadd.f32 %v3216, 1e-05
      %v3249 = vadd.f32 %v3217, 1e-05
      %v3250 = vadd.f32 %v3218, 1e-05
      %v3251 = vadd.f32 %v3219, 1e-05
      %v3252 = vadd.f32 %v3220, 1e-05
      %v3253 = vadd.f32 %v3221, 1e-05
      %v3254 = vadd.f32 %v3222, 1e-05
      %v3255 = vadd.f32 %v3223, 1e-05
      %v3256 = vadd.f32 %v3224, 1e-05
      %v3257 = vadd.f32 %v3225, 1e-05
      %v3258 = vadd.f32 %v3226, 1e-05
      %v3259 = vadd.f32 %v3227, 1e-05
      %v3260 = vadd.f32 %v3228, 1e-05
      %v3261 = vadd.f32 %v3229, 1e-05
      %v3262 = vadd.f32 %v3230, 1e-05
      %v3263 = vadd.f32 %v3231, 1e-05
      %v3264 = vadd.f32 %v3232, 1e-05
      %v3265 = vadd.f32 %v3233, 1e-05
      %v3266 = vadd.f32 %v3234, 1e-05
      %v3267 = vadd.f32 %v3235, 1e-05
      %v3268 = vadd.f32 %v3236, 1e-05
      %v3269 = vadd.f32 %v3237, 1e-05
      %v3270 = vadd.f32 %v3238, 1e-05
      %v3271 = vadd.f32 %v3239, 1e-05
      %v3272 = vadd.f32 %v3240, 1e-05
      %v3273 = vadd.f32 %v3241, 1e-05
      %v3274 = vadd.f32 %v3242, 1e-05
      %v3275 = vrsqrt.pop %v3243
      %v3276 = vrsqrt.pop %v3244
      %v3277 = vrsqrt.pop %v3245
      %v3278 = vrsqrt.pop %v3246
      %v3279 = vrsqrt.pop %v3247
      %v3280 = vrsqrt.pop %v3248
      %v3281 = vrsqrt.pop %v3249
      %v3282 = vrsqrt.pop %v3250
      %v3283 = vrsqrt.pop %v3251
      %v3284 = vrsqrt.pop %v3252
      %v3285 = vrsqrt.pop %v3253
      %v3286 = vrsqrt.pop %v3254
      %v3287 = vrsqrt.pop %v3255
      %v3288 = vrsqrt.pop %v3256
      %v3289 = vrsqrt.pop %v3257
      %v3290 = vrsqrt.pop %v3258
      %v3291 = vrsqrt.pop %v3259
      %v3292 = vrsqrt.pop %v3260
      %v3293 = vrsqrt.pop %v3261
      %v3294 = vrsqrt.pop %v3262
      %v3295 = vrsqrt.pop %v3263
      %v3296 = vrsqrt.pop %v3264
      %v3297 = vrsqrt.pop %v3265
      %v3298 = vrsqrt.pop %v3266
      %v3299 = vrsqrt.pop %v3267
      %v3300 = vrsqrt.pop %v3268
      %v3301 = vrsqrt.pop %v3269
      %v3302 = vrsqrt.pop %v3270
      %v3303 = vrsqrt.pop %v3271
      %v3304 = vrsqrt.pop %v3272
      %v3305 = vrsqrt.pop %v3273
      %v3306 = vrsqrt.pop %v3274
      %v3307 = vmul.f32 %v3051, %v3275
      %v3308 = vmul.f32 %v3052, %v3276
      %v3309 = vmul.f32 %v3053, %v3277
      %v3310 = vmul.f32 %v3054, %v3278
      %v3311 = vmul.f32 %v3055, %v3279
      %v3312 = vmul.f32 %v3056, %v3280
      %v3313 = vmul.f32 %v3057, %v3281
      %v3314 = vmul.f32 %v3058, %v3282
      %v3315 = vmul.f32 %v3059, %v3283
      %v3316 = vmul.f32 %v3060, %v3284
      %v3317 = vmul.f32 %v3061, %v3285
      %v3318 = vmul.f32 %v3062, %v3286
      %v3319 = vmul.f32 %v3063, %v3287
      %v3320 = vmul.f32 %v3064, %v3288
      %v3321 = vmul.f32 %v3065, %v3289
      %v3322 = vmul.f32 %v3066, %v3290
      %v3323 = vmul.f32 %v3067, %v3291
      %v3324 = vmul.f32 %v3068, %v3292
      %v3325 = vmul.f32 %v3069, %v3293
      %v3326 = vmul.f32 %v3070, %v3294
      %v3327 = vmul.f32 %v3071, %v3295
      %v3328 = vmul.f32 %v3072, %v3296
      %v3329 = vmul.f32 %v3073, %v3297
      %v3330 = vmul.f32 %v3074, %v3298
      %v3331 = vmul.f32 %v3075, %v3299
      %v3332 = vmul.f32 %v3076, %v3300
      %v3333 = vmul.f32 %v3077, %v3301
      %v3334 = vmul.f32 %v3078, %v3302
      %v3335 = vmul.f32 %v3079, %v3303
      %v3336 = vmul.f32 %v3080, %v3304
      %v3337 = vmul.f32 %v3081, %v3305
      %v3338 = vmul.f32 %v3082, %v3306
      %v3339 = vlaneseq
      %v3340 = vshrl.u32 %v3339, 7
      %v3341 = vsub.s32 0, %v3340
      %v3342 = vrot.slane %v440, %v3341
      %v3343 = vmul.f32 %v3307, %v3342
      %v3344 = vmul.f32 %v3308, %v3342
      %v3345 = vmul.f32 %v3309, %v3342
      %v3346 = vmul.f32 %v3310, %v3342
      %v3347 = vmul.f32 %v3311, %v3342
      %v3348 = vmul.f32 %v3312, %v3342
      %v3349 = vmul.f32 %v3313, %v3342
      %v3350 = vmul.f32 %v3314, %v3342
      %v3351 = vmul.f32 %v3315, %v3342
      %v3352 = vmul.f32 %v3316, %v3342
      %v3353 = vmul.f32 %v3317, %v3342
      %v3354 = vmul.f32 %v3318, %v3342
      %v3355 = vmul.f32 %v3319, %v3342
      %v3356 = vmul.f32 %v3320, %v3342
      %v3357 = vmul.f32 %v3321, %v3342
      %v3358 = vmul.f32 %v3322, %v3342
      %v3359 = vmul.f32 %v3323, %v3342
      %v3360 = vmul.f32 %v3324, %v3342
      %v3361 = vmul.f32 %v3325, %v3342
      %v3362 = vmul.f32 %v3326, %v3342
      %v3363 = vmul.f32 %v3327, %v3342
      %v3364 = vmul.f32 %v3328, %v3342
      %v3365 = vmul.f32 %v3329, %v3342
      %v3366 = vmul.f32 %v3330, %v3342
      %v3367 = vmul.f32 %v3331, %v3342
      %v3368 = vmul.f32 %v3332, %v3342
      %v3369 = vmul.f32 %v3333, %v3342
      %v3370 = vmul.f32 %v3334, %v3342
      %v3371 = vmul.f32 %v3335, %v3342
      %v3372 = vmul.f32 %v3336, %v3342
      %v3373 = vmul.f32 %v3337, %v3342
      %v3374 = vmul.f32 %v3338, %v3342
      %v3375 = vlaneseq
      %v3376 = vshrl.u32 %v3375, 7
      %v3377 = vsub.s32 0, %v3376
      %v3378 = vrot.slane %v441, %v3377
      %v3379 = vadd.f32 %v3343, %v3378
      %v3380 = vadd.f32 %v3344, %v3378
      %v3381 = vadd.f32 %v3345, %v3378
      %v3382 = vadd.f32 %v3346, %v3378
      %v3383 = vadd.f32 %v3347, %v3378
      %v3384 = vadd.f32 %v3348, %v3378
      %v3385 = vadd.f32 %v3349, %v3378
      %v3386 = vadd.f32 %v3350, %v3378
      %v3387 = vadd.f32 %v3351, %v3378
      %v3388 = vadd.f32 %v3352, %v3378
      %v3389 = vadd.f32 %v3353, %v3378
      %v3390 = vadd.f32 %v3354, %v3378
      %v3391 = vadd.f32 %v3355, %v3378
      %v3392 = vadd.f32 %v3356, %v3378
      %v3393 = vadd.f32 %v3357, %v3378
      %v3394 = vadd.f32 %v3358, %v3378
      %v3395 = vadd.f32 %v3359, %v3378
      %v3396 = vadd.f32 %v3360, %v3378
      %v3397 = vadd.f32 %v3361, %v3378
      %v3398 = vadd.f32 %v3362, %v3378
      %v3399 = vadd.f32 %v3363, %v3378
      %v3400 = vadd.f32 %v3364, %v3378
      %v3401 = vadd.f32 %v3365, %v3378
      %v3402 = vadd.f32 %v3366, %v3378
      %v3403 = vadd.f32 %v3367, %v3378
      %v3404 = vadd.f32 %v3368, %v3378
      %v3405 = vadd.f32 %v3369, %v3378
      %v3406 = vadd.f32 %v3370, %v3378
      %v3407 = vadd.f32 %v3371, %v3378
      %v3408 = vadd.f32 %v3372, %v3378
      %v3409 = vadd.f32 %v3373, %v3378
      %v3410 = vadd.f32 %v3374, %v3378
      %v3411 = vlaneseq
      %v3412 = vshrl.u32 %v3411, 7
      %v3413 = vsub.s32 0, %v3412
      %v3414 = vrot.slane %v442, %v3413
      %v3415 = vmul.f32 %v3379, %v3414
      %v3416 = vmul.f32 %v3380, %v3414
      %v3417 = vmul.f32 %v3381, %v3414
      %v3418 = vmul.f32 %v3382, %v3414
      %v3419 = vmul.f32 %v3383, %v3414
      %v3420 = vmul.f32 %v3384, %v3414
      %v3421 = vmul.f32 %v3385, %v3414
      %v3422 = vmul.f32 %v3386, %v3414
      %v3423 = vmul.f32 %v3387, %v3414
      %v3424 = vmul.f32 %v3388, %v3414
      %v3425 = vmul.f32 %v3389, %v3414
      %v3426 = vmul.f32 %v3390, %v3414
      %v3427 = vmul.f32 %v3391, %v3414
      %v3428 = vmul.f32 %v3392, %v3414
      %v3429 = vmul.f32 %v3393, %v3414
      %v3430 = vmul.f32 %v3394, %v3414
      %v3431 = vmul.f32 %v3395, %v3414
      %v3432 = vmul.f32 %v3396, %v3414
      %v3433 = vmul.f32 %v3397, %v3414
      %v3434 = vmul.f32 %v3398, %v3414
      %v3435 = vmul.f32 %v3399, %v3414
      %v3436 = vmul.f32 %v3400, %v3414
      %v3437 = vmul.f32 %v3401, %v3414
      %v3438 = vmul.f32 %v3402, %v3414
      %v3439 = vmul.f32 %v3403, %v3414
      %v3440 = vmul.f32 %v3404, %v3414
      %v3441 = vmul.f32 %v3405, %v3414
      %v3442 = vmul.f32 %v3406, %v3414
      %v3443 = vmul.f32 %v3407, %v3414
      %v3444 = vmul.f32 %v3408, %v3414
      %v3445 = vmul.f32 %v3409, %v3414
      %v3446 = vmul.f32 %v3410, %v3414
      %v3447 = vlaneseq
      %v3448 = vshrl.u32 %v3447, 7
      %v3449 = vsub.s32 0, %v3448
      %v3450 = vrot.slane %v443, %v3449
      %v3451 = vadd.f32 %v3415, %v3450
      %v3452 = vadd.f32 %v3416, %v3450
      %v3453 = vadd.f32 %v3417, %v3450
      %v3454 = vadd.f32 %v3418, %v3450
      %v3455 = vadd.f32 %v3419, %v3450
      %v3456 = vadd.f32 %v3420, %v3450
      %v3457 = vadd.f32 %v3421, %v3450
      %v3458 = vadd.f32 %v3422, %v3450
      %v3459 = vadd.f32 %v3423, %v3450
      %v3460 = vadd.f32 %v3424, %v3450
      %v3461 = vadd.f32 %v3425, %v3450
      %v3462 = vadd.f32 %v3426, %v3450
      %v3463 = vadd.f32 %v3427, %v3450
      %v3464 = vadd.f32 %v3428, %v3450
      %v3465 = vadd.f32 %v3429, %v3450
      %v3466 = vadd.f32 %v3430, %v3450
      %v3467 = vadd.f32 %v3431, %v3450
      %v3468 = vadd.f32 %v3432, %v3450
      %v3469 = vadd.f32 %v3433, %v3450
      %v3470 = vadd.f32 %v3434, %v3450
      %v3471 = vadd.f32 %v3435, %v3450
      %v3472 = vadd.f32 %v3436, %v3450
      %v3473 = vadd.f32 %v3437, %v3450
      %v3474 = vadd.f32 %v3438, %v3450
      %v3475 = vadd.f32 %v3439, %v3450
      %v3476 = vadd.f32 %v3440, %v3450
      %v3477 = vadd.f32 %v3441, %v3450
      %v3478 = vadd.f32 %v3442, %v3450
      %v3479 = vadd.f32 %v3443, %v3450
      %v3480 = vadd.f32 %v3444, %v3450
      %v3481 = vadd.f32 %v3445, %v3450
      %v3482 = vadd.f32 %v3446, %v3450
      %v3483 = vsel %vm2072, %v3451, 0.0
      %3484 = vadd.xlane.f32.xlu0 %v3483
      %v3485 = vpop.xlane.xlu0 %3484
      %v3486 = vsel %vm2072, %v3452, 0.0
      %3487 = vadd.xlane.f32.xlu0 %v3486
      %v3488 = vpop.xlane.xlu0 %3487
      %v3489 = vsel %vm2072, %v3453, 0.0
      %3490 = vadd.xlane.f32.xlu0 %v3489
      %v3491 = vpop.xlane.xlu0 %3490
      %v3492 = vsel %vm2072, %v3454, 0.0
      %3493 = vadd.xlane.f32.xlu0 %v3492
      %v3494 = vpop.xlane.xlu0 %3493
      %v3495 = vsel %vm2072, %v3455, 0.0
      %3496 = vadd.xlane.f32.xlu0 %v3495
      %v3497 = vpop.xlane.xlu0 %3496
      %v3498 = vsel %vm2072, %v3456, 0.0
      %3499 = vadd.xlane.f32.xlu0 %v3498
      %v3500 = vpop.xlane.xlu0 %3499
      %v3501 = vsel %vm2072, %v3457, 0.0
      %3502 = vadd.xlane.f32.xlu0 %v3501
      %v3503 = vpop.xlane.xlu0 %3502
      %v3504 = vsel %vm2072, %v3458, 0.0
      %3505 = vadd.xlane.f32.xlu0 %v3504
      %v3506 = vpop.xlane.xlu0 %3505
      %v3507 = vsel %vm2072, %v3459, 0.0
      %3508 = vadd.xlane.f32.xlu0 %v3507
      %v3509 = vpop.xlane.xlu0 %3508
      %v3510 = vsel %vm2072, %v3460, 0.0
      %3511 = vadd.xlane.f32.xlu0 %v3510
      %v3512 = vpop.xlane.xlu0 %3511
      %v3513 = vsel %vm2072, %v3461, 0.0
      %3514 = vadd.xlane.f32.xlu0 %v3513
      %v3515 = vpop.xlane.xlu0 %3514
      %v3516 = vsel %vm2072, %v3462, 0.0
      %3517 = vadd.xlane.f32.xlu0 %v3516
      %v3518 = vpop.xlane.xlu0 %3517
      %v3519 = vsel %vm2072, %v3463, 0.0
      %3520 = vadd.xlane.f32.xlu0 %v3519
      %v3521 = vpop.xlane.xlu0 %3520
      %v3522 = vsel %vm2072, %v3464, 0.0
      %3523 = vadd.xlane.f32.xlu0 %v3522
      %v3524 = vpop.xlane.xlu0 %3523
      %v3525 = vsel %vm2072, %v3465, 0.0
      %3526 = vadd.xlane.f32.xlu0 %v3525
      %v3527 = vpop.xlane.xlu0 %3526
      %v3528 = vsel %vm2072, %v3466, 0.0
      %3529 = vadd.xlane.f32.xlu0 %v3528
      %v3530 = vpop.xlane.xlu0 %3529
      %v3531 = vsel %vm2072, %v3467, 0.0
      %3532 = vadd.xlane.f32.xlu0 %v3531
      %v3533 = vpop.xlane.xlu0 %3532
      %v3534 = vsel %vm2072, %v3468, 0.0
      %3535 = vadd.xlane.f32.xlu0 %v3534
      %v3536 = vpop.xlane.xlu0 %3535
      %v3537 = vsel %vm2072, %v3469, 0.0
      %3538 = vadd.xlane.f32.xlu0 %v3537
      %v3539 = vpop.xlane.xlu0 %3538
      %v3540 = vsel %vm2072, %v3470, 0.0
      %3541 = vadd.xlane.f32.xlu0 %v3540
      %v3542 = vpop.xlane.xlu0 %3541
      %v3543 = vsel %vm2072, %v3471, 0.0
      %3544 = vadd.xlane.f32.xlu0 %v3543
      %v3545 = vpop.xlane.xlu0 %3544
      %v3546 = vsel %vm2072, %v3472, 0.0
      %3547 = vadd.xlane.f32.xlu0 %v3546
      %v3548 = vpop.xlane.xlu0 %3547
      %v3549 = vsel %vm2072, %v3473, 0.0
      %3550 = vadd.xlane.f32.xlu0 %v3549
      %v3551 = vpop.xlane.xlu0 %3550
      %v3552 = vsel %vm2072, %v3474, 0.0
      %3553 = vadd.xlane.f32.xlu0 %v3552
      %v3554 = vpop.xlane.xlu0 %3553
      %v3555 = vsel %vm2072, %v3475, 0.0
      %3556 = vadd.xlane.f32.xlu0 %v3555
      %v3557 = vpop.xlane.xlu0 %3556
      %v3558 = vsel %vm2072, %v3476, 0.0
      %3559 = vadd.xlane.f32.xlu0 %v3558
      %v3560 = vpop.xlane.xlu0 %3559
      %v3561 = vsel %vm2072, %v3477, 0.0
      %3562 = vadd.xlane.f32.xlu0 %v3561
      %v3563 = vpop.xlane.xlu0 %3562
      %v3564 = vsel %vm2072, %v3478, 0.0
      %3565 = vadd.xlane.f32.xlu0 %v3564
      %v3566 = vpop.xlane.xlu0 %3565
      %v3567 = vsel %vm2072, %v3479, 0.0
      %3568 = vadd.xlane.f32.xlu0 %v3567
      %v3569 = vpop.xlane.xlu0 %3568
      %v3570 = vsel %vm2072, %v3480, 0.0
      %3571 = vadd.xlane.f32.xlu0 %v3570
      %v3572 = vpop.xlane.xlu0 %3571
      %v3573 = vsel %vm2072, %v3481, 0.0
      %3574 = vadd.xlane.f32.xlu0 %v3573
      %v3575 = vpop.xlane.xlu0 %3574
      %v3576 = vsel %vm2072, %v3482, 0.0
      %3577 = vadd.xlane.f32.xlu0 %v3576
      %v3578 = vpop.xlane.xlu0 %3577
      %v3611 = vlaneseq
      %v3612 = vshrl.u32 %v3611, 7
      %v3613 = vsub.s32 0, %v3612
      %v3614 = vrot.slane %v3485, %v3613
      %v3615 = vlaneseq
      %v3616 = vshrl.u32 %v3615, 7
      %v3617 = vsub.s32 1, %v3616
      %v3618 = vrot.slane %v3485, %v3617
      %v3619 = vlaneseq
      %v3620 = vshrl.u32 %v3619, 7
      %v3621 = vsub.s32 2, %v3620
      %v3622 = vrot.slane %v3485, %v3621
      %v3623 = vlaneseq
      %v3624 = vshrl.u32 %v3623, 7
      %v3625 = vsub.s32 3, %v3624
      %v3626 = vrot.slane %v3485, %v3625
      %v3627 = vlaneseq
      %v3628 = vshrl.u32 %v3627, 7
      %v3629 = vsub.s32 4, %v3628
      %v3630 = vrot.slane %v3485, %v3629
      %v3631 = vlaneseq
      %v3632 = vshrl.u32 %v3631, 7
      %v3633 = vsub.s32 5, %v3632
      %v3634 = vrot.slane %v3485, %v3633
      %v3635 = vlaneseq
      %v3636 = vshrl.u32 %v3635, 7
      %v3637 = vsub.s32 6, %v3636
      %v3638 = vrot.slane %v3485, %v3637
      %v3639 = vlaneseq
      %v3640 = vshrl.u32 %v3639, 7
      %v3641 = vsub.s32 7, %v3640
      %v3642 = vrot.slane %v3485, %v3641
      %v3643 = vlaneseq
      %v3644 = vshrl.u32 %v3643, 7
      %v3645 = vsub.s32 0, %v3644
      %v3646 = vrot.slane %v3488, %v3645
      %v3647 = vlaneseq
      %v3648 = vshrl.u32 %v3647, 7
      %v3649 = vsub.s32 1, %v3648
      %v3650 = vrot.slane %v3488, %v3649
      %v3651 = vlaneseq
      %v3652 = vshrl.u32 %v3651, 7
      %v3653 = vsub.s32 2, %v3652
      %v3654 = vrot.slane %v3488, %v3653
      %v3655 = vlaneseq
      %v3656 = vshrl.u32 %v3655, 7
      %v3657 = vsub.s32 3, %v3656
      %v3658 = vrot.slane %v3488, %v3657
      %v3659 = vlaneseq
      %v3660 = vshrl.u32 %v3659, 7
      %v3661 = vsub.s32 4, %v3660
      %v3662 = vrot.slane %v3488, %v3661
      %v3663 = vlaneseq
      %v3664 = vshrl.u32 %v3663, 7
      %v3665 = vsub.s32 5, %v3664
      %v3666 = vrot.slane %v3488, %v3665
      %v3667 = vlaneseq
      %v3668 = vshrl.u32 %v3667, 7
      %v3669 = vsub.s32 6, %v3668
      %v3670 = vrot.slane %v3488, %v3669
      %v3671 = vlaneseq
      %v3672 = vshrl.u32 %v3671, 7
      %v3673 = vsub.s32 7, %v3672
      %v3674 = vrot.slane %v3488, %v3673
      %v3675 = vlaneseq
      %v3676 = vshrl.u32 %v3675, 7
      %v3677 = vsub.s32 0, %v3676
      %v3678 = vrot.slane %v3491, %v3677
      %v3679 = vlaneseq
      %v3680 = vshrl.u32 %v3679, 7
      %v3681 = vsub.s32 1, %v3680
      %v3682 = vrot.slane %v3491, %v3681
      %v3683 = vlaneseq
      %v3684 = vshrl.u32 %v3683, 7
      %v3685 = vsub.s32 2, %v3684
      %v3686 = vrot.slane %v3491, %v3685
      %v3687 = vlaneseq
      %v3688 = vshrl.u32 %v3687, 7
      %v3689 = vsub.s32 3, %v3688
      %v3690 = vrot.slane %v3491, %v3689
      %v3691 = vlaneseq
      %v3692 = vshrl.u32 %v3691, 7
      %v3693 = vsub.s32 4, %v3692
      %v3694 = vrot.slane %v3491, %v3693
      %v3695 = vlaneseq
      %v3696 = vshrl.u32 %v3695, 7
      %v3697 = vsub.s32 5, %v3696
      %v3698 = vrot.slane %v3491, %v3697
      %v3699 = vlaneseq
      %v3700 = vshrl.u32 %v3699, 7
      %v3701 = vsub.s32 6, %v3700
      %v3702 = vrot.slane %v3491, %v3701
      %v3703 = vlaneseq
      %v3704 = vshrl.u32 %v3703, 7
      %v3705 = vsub.s32 7, %v3704
      %v3706 = vrot.slane %v3491, %v3705
      %v3707 = vlaneseq
      %v3708 = vshrl.u32 %v3707, 7
      %v3709 = vsub.s32 0, %v3708
      %v3710 = vrot.slane %v3494, %v3709
      %v3711 = vlaneseq
      %v3712 = vshrl.u32 %v3711, 7
      %v3713 = vsub.s32 1, %v3712
      %v3714 = vrot.slane %v3494, %v3713
      %v3715 = vlaneseq
      %v3716 = vshrl.u32 %v3715, 7
      %v3717 = vsub.s32 2, %v3716
      %v3718 = vrot.slane %v3494, %v3717
      %v3719 = vlaneseq
      %v3720 = vshrl.u32 %v3719, 7
      %v3721 = vsub.s32 3, %v3720
      %v3722 = vrot.slane %v3494, %v3721
      %v3723 = vlaneseq
      %v3724 = vshrl.u32 %v3723, 7
      %v3725 = vsub.s32 4, %v3724
      %v3726 = vrot.slane %v3494, %v3725
      %v3727 = vlaneseq
      %v3728 = vshrl.u32 %v3727, 7
      %v3729 = vsub.s32 5, %v3728
      %v3730 = vrot.slane %v3494, %v3729
      %v3731 = vlaneseq
      %v3732 = vshrl.u32 %v3731, 7
      %v3733 = vsub.s32 6, %v3732
      %v3734 = vrot.slane %v3494, %v3733
      %v3735 = vlaneseq
      %v3736 = vshrl.u32 %v3735, 7
      %v3737 = vsub.s32 7, %v3736
      %v3738 = vrot.slane %v3494, %v3737
      %v3739 = vlaneseq
      %v3740 = vshrl.u32 %v3739, 7
      %v3741 = vsub.s32 0, %v3740
      %v3742 = vrot.slane %v3497, %v3741
      %v3743 = vlaneseq
      %v3744 = vshrl.u32 %v3743, 7
      %v3745 = vsub.s32 1, %v3744
      %v3746 = vrot.slane %v3497, %v3745
      %v3747 = vlaneseq
      %v3748 = vshrl.u32 %v3747, 7
      %v3749 = vsub.s32 2, %v3748
      %v3750 = vrot.slane %v3497, %v3749
      %v3751 = vlaneseq
      %v3752 = vshrl.u32 %v3751, 7
      %v3753 = vsub.s32 3, %v3752
      %v3754 = vrot.slane %v3497, %v3753
      %v3755 = vlaneseq
      %v3756 = vshrl.u32 %v3755, 7
      %v3757 = vsub.s32 4, %v3756
      %v3758 = vrot.slane %v3497, %v3757
      %v3759 = vlaneseq
      %v3760 = vshrl.u32 %v3759, 7
      %v3761 = vsub.s32 5, %v3760
      %v3762 = vrot.slane %v3497, %v3761
      %v3763 = vlaneseq
      %v3764 = vshrl.u32 %v3763, 7
      %v3765 = vsub.s32 6, %v3764
      %v3766 = vrot.slane %v3497, %v3765
      %v3767 = vlaneseq
      %v3768 = vshrl.u32 %v3767, 7
      %v3769 = vsub.s32 7, %v3768
      %v3770 = vrot.slane %v3497, %v3769
      %v3771 = vlaneseq
      %v3772 = vshrl.u32 %v3771, 7
      %v3773 = vsub.s32 0, %v3772
      %v3774 = vrot.slane %v3500, %v3773
      %v3775 = vlaneseq
      %v3776 = vshrl.u32 %v3775, 7
      %v3777 = vsub.s32 1, %v3776
      %v3778 = vrot.slane %v3500, %v3777
      %v3779 = vlaneseq
      %v3780 = vshrl.u32 %v3779, 7
      %v3781 = vsub.s32 2, %v3780
      %v3782 = vrot.slane %v3500, %v3781
      %v3783 = vlaneseq
      %v3784 = vshrl.u32 %v3783, 7
      %v3785 = vsub.s32 3, %v3784
      %v3786 = vrot.slane %v3500, %v3785
      %v3787 = vlaneseq
      %v3788 = vshrl.u32 %v3787, 7
      %v3789 = vsub.s32 4, %v3788
      %v3790 = vrot.slane %v3500, %v3789
      %v3791 = vlaneseq
      %v3792 = vshrl.u32 %v3791, 7
      %v3793 = vsub.s32 5, %v3792
      %v3794 = vrot.slane %v3500, %v3793
      %v3795 = vlaneseq
      %v3796 = vshrl.u32 %v3795, 7
      %v3797 = vsub.s32 6, %v3796
      %v3798 = vrot.slane %v3500, %v3797
      %v3799 = vlaneseq
      %v3800 = vshrl.u32 %v3799, 7
      %v3801 = vsub.s32 7, %v3800
      %v3802 = vrot.slane %v3500, %v3801
      %v3803 = vlaneseq
      %v3804 = vshrl.u32 %v3803, 7
      %v3805 = vsub.s32 0, %v3804
      %v3806 = vrot.slane %v3503, %v3805
      %v3807 = vlaneseq
      %v3808 = vshrl.u32 %v3807, 7
      %v3809 = vsub.s32 1, %v3808
      %v3810 = vrot.slane %v3503, %v3809
      %v3811 = vlaneseq
      %v3812 = vshrl.u32 %v3811, 7
      %v3813 = vsub.s32 2, %v3812
      %v3814 = vrot.slane %v3503, %v3813
      %v3815 = vlaneseq
      %v3816 = vshrl.u32 %v3815, 7
      %v3817 = vsub.s32 3, %v3816
      %v3818 = vrot.slane %v3503, %v3817
      %v3819 = vlaneseq
      %v3820 = vshrl.u32 %v3819, 7
      %v3821 = vsub.s32 4, %v3820
      %v3822 = vrot.slane %v3503, %v3821
      %v3823 = vlaneseq
      %v3824 = vshrl.u32 %v3823, 7
      %v3825 = vsub.s32 5, %v3824
      %v3826 = vrot.slane %v3503, %v3825
      %v3827 = vlaneseq
      %v3828 = vshrl.u32 %v3827, 7
      %v3829 = vsub.s32 6, %v3828
      %v3830 = vrot.slane %v3503, %v3829
      %v3831 = vlaneseq
      %v3832 = vshrl.u32 %v3831, 7
      %v3833 = vsub.s32 7, %v3832
      %v3834 = vrot.slane %v3503, %v3833
      %v3835 = vlaneseq
      %v3836 = vshrl.u32 %v3835, 7
      %v3837 = vsub.s32 0, %v3836
      %v3838 = vrot.slane %v3506, %v3837
      %v3839 = vlaneseq
      %v3840 = vshrl.u32 %v3839, 7
      %v3841 = vsub.s32 1, %v3840
      %v3842 = vrot.slane %v3506, %v3841
      %v3843 = vlaneseq
      %v3844 = vshrl.u32 %v3843, 7
      %v3845 = vsub.s32 2, %v3844
      %v3846 = vrot.slane %v3506, %v3845
      %v3847 = vlaneseq
      %v3848 = vshrl.u32 %v3847, 7
      %v3849 = vsub.s32 3, %v3848
      %v3850 = vrot.slane %v3506, %v3849
      %v3851 = vlaneseq
      %v3852 = vshrl.u32 %v3851, 7
      %v3853 = vsub.s32 4, %v3852
      %v3854 = vrot.slane %v3506, %v3853
      %v3855 = vlaneseq
      %v3856 = vshrl.u32 %v3855, 7
      %v3857 = vsub.s32 5, %v3856
      %v3858 = vrot.slane %v3506, %v3857
      %v3859 = vlaneseq
      %v3860 = vshrl.u32 %v3859, 7
      %v3861 = vsub.s32 6, %v3860
      %v3862 = vrot.slane %v3506, %v3861
      %v3863 = vlaneseq
      %v3864 = vshrl.u32 %v3863, 7
      %v3865 = vsub.s32 7, %v3864
      %v3866 = vrot.slane %v3506, %v3865
      %v3867 = vlaneseq
      %v3868 = vshrl.u32 %v3867, 7
      %v3869 = vsub.s32 0, %v3868
      %v3870 = vrot.slane %v3509, %v3869
      %v3871 = vlaneseq
      %v3872 = vshrl.u32 %v3871, 7
      %v3873 = vsub.s32 1, %v3872
      %v3874 = vrot.slane %v3509, %v3873
      %v3875 = vlaneseq
      %v3876 = vshrl.u32 %v3875, 7
      %v3877 = vsub.s32 2, %v3876
      %v3878 = vrot.slane %v3509, %v3877
      %v3879 = vlaneseq
      %v3880 = vshrl.u32 %v3879, 7
      %v3881 = vsub.s32 3, %v3880
      %v3882 = vrot.slane %v3509, %v3881
      %v3883 = vlaneseq
      %v3884 = vshrl.u32 %v3883, 7
      %v3885 = vsub.s32 4, %v3884
      %v3886 = vrot.slane %v3509, %v3885
      %v3887 = vlaneseq
      %v3888 = vshrl.u32 %v3887, 7
      %v3889 = vsub.s32 5, %v3888
      %v3890 = vrot.slane %v3509, %v3889
      %v3891 = vlaneseq
      %v3892 = vshrl.u32 %v3891, 7
      %v3893 = vsub.s32 6, %v3892
      %v3894 = vrot.slane %v3509, %v3893
      %v3895 = vlaneseq
      %v3896 = vshrl.u32 %v3895, 7
      %v3897 = vsub.s32 7, %v3896
      %v3898 = vrot.slane %v3509, %v3897
      %v3899 = vlaneseq
      %v3900 = vshrl.u32 %v3899, 7
      %v3901 = vsub.s32 0, %v3900
      %v3902 = vrot.slane %v3512, %v3901
      %v3903 = vlaneseq
      %v3904 = vshrl.u32 %v3903, 7
      %v3905 = vsub.s32 1, %v3904
      %v3906 = vrot.slane %v3512, %v3905
      %v3907 = vlaneseq
      %v3908 = vshrl.u32 %v3907, 7
      %v3909 = vsub.s32 2, %v3908
      %v3910 = vrot.slane %v3512, %v3909
      %v3911 = vlaneseq
      %v3912 = vshrl.u32 %v3911, 7
      %v3913 = vsub.s32 3, %v3912
      %v3914 = vrot.slane %v3512, %v3913
      %v3915 = vlaneseq
      %v3916 = vshrl.u32 %v3915, 7
      %v3917 = vsub.s32 4, %v3916
      %v3918 = vrot.slane %v3512, %v3917
      %v3919 = vlaneseq
      %v3920 = vshrl.u32 %v3919, 7
      %v3921 = vsub.s32 5, %v3920
      %v3922 = vrot.slane %v3512, %v3921
      %v3923 = vlaneseq
      %v3924 = vshrl.u32 %v3923, 7
      %v3925 = vsub.s32 6, %v3924
      %v3926 = vrot.slane %v3512, %v3925
      %v3927 = vlaneseq
      %v3928 = vshrl.u32 %v3927, 7
      %v3929 = vsub.s32 7, %v3928
      %v3930 = vrot.slane %v3512, %v3929
      %v3931 = vlaneseq
      %v3932 = vshrl.u32 %v3931, 7
      %v3933 = vsub.s32 0, %v3932
      %v3934 = vrot.slane %v3515, %v3933
      %v3935 = vlaneseq
      %v3936 = vshrl.u32 %v3935, 7
      %v3937 = vsub.s32 1, %v3936
      %v3938 = vrot.slane %v3515, %v3937
      %v3939 = vlaneseq
      %v3940 = vshrl.u32 %v3939, 7
      %v3941 = vsub.s32 2, %v3940
      %v3942 = vrot.slane %v3515, %v3941
      %v3943 = vlaneseq
      %v3944 = vshrl.u32 %v3943, 7
      %v3945 = vsub.s32 3, %v3944
      %v3946 = vrot.slane %v3515, %v3945
      %v3947 = vlaneseq
      %v3948 = vshrl.u32 %v3947, 7
      %v3949 = vsub.s32 4, %v3948
      %v3950 = vrot.slane %v3515, %v3949
      %v3951 = vlaneseq
      %v3952 = vshrl.u32 %v3951, 7
      %v3953 = vsub.s32 5, %v3952
      %v3954 = vrot.slane %v3515, %v3953
      %v3955 = vlaneseq
      %v3956 = vshrl.u32 %v3955, 7
      %v3957 = vsub.s32 6, %v3956
      %v3958 = vrot.slane %v3515, %v3957
      %v3959 = vlaneseq
      %v3960 = vshrl.u32 %v3959, 7
      %v3961 = vsub.s32 7, %v3960
      %v3962 = vrot.slane %v3515, %v3961
      %v3963 = vlaneseq
      %v3964 = vshrl.u32 %v3963, 7
      %v3965 = vsub.s32 0, %v3964
      %v3966 = vrot.slane %v3518, %v3965
      %v3967 = vlaneseq
      %v3968 = vshrl.u32 %v3967, 7
      %v3969 = vsub.s32 1, %v3968
      %v3970 = vrot.slane %v3518, %v3969
      %v3971 = vlaneseq
      %v3972 = vshrl.u32 %v3971, 7
      %v3973 = vsub.s32 2, %v3972
      %v3974 = vrot.slane %v3518, %v3973
      %v3975 = vlaneseq
      %v3976 = vshrl.u32 %v3975, 7
      %v3977 = vsub.s32 3, %v3976
      %v3978 = vrot.slane %v3518, %v3977
      %v3979 = vlaneseq
      %v3980 = vshrl.u32 %v3979, 7
      %v3981 = vsub.s32 4, %v3980
      %v3982 = vrot.slane %v3518, %v3981
      %v3983 = vlaneseq
      %v3984 = vshrl.u32 %v3983, 7
      %v3985 = vsub.s32 5, %v3984
      %v3986 = vrot.slane %v3518, %v3985
      %v3987 = vlaneseq
      %v3988 = vshrl.u32 %v3987, 7
      %v3989 = vsub.s32 6, %v3988
      %v3990 = vrot.slane %v3518, %v3989
      %v3991 = vlaneseq
      %v3992 = vshrl.u32 %v3991, 7
      %v3993 = vsub.s32 7, %v3992
      %v3994 = vrot.slane %v3518, %v3993
      %v3995 = vlaneseq
      %v3996 = vshrl.u32 %v3995, 7
      %v3997 = vsub.s32 0, %v3996
      %v3998 = vrot.slane %v3521, %v3997
      %v3999 = vlaneseq
      %v4000 = vshrl.u32 %v3999, 7
      %v4001 = vsub.s32 1, %v4000
      %v4002 = vrot.slane %v3521, %v4001
      %v4003 = vlaneseq
      %v4004 = vshrl.u32 %v4003, 7
      %v4005 = vsub.s32 2, %v4004
      %v4006 = vrot.slane %v3521, %v4005
      %v4007 = vlaneseq
      %v4008 = vshrl.u32 %v4007, 7
      %v4009 = vsub.s32 3, %v4008
      %v4010 = vrot.slane %v3521, %v4009
      %v4011 = vlaneseq
      %v4012 = vshrl.u32 %v4011, 7
      %v4013 = vsub.s32 4, %v4012
      %v4014 = vrot.slane %v3521, %v4013
      %v4015 = vlaneseq
      %v4016 = vshrl.u32 %v4015, 7
      %v4017 = vsub.s32 5, %v4016
      %v4018 = vrot.slane %v3521, %v4017
      %v4019 = vlaneseq
      %v4020 = vshrl.u32 %v4019, 7
      %v4021 = vsub.s32 6, %v4020
      %v4022 = vrot.slane %v3521, %v4021
      %v4023 = vlaneseq
      %v4024 = vshrl.u32 %v4023, 7
      %v4025 = vsub.s32 7, %v4024
      %v4026 = vrot.slane %v3521, %v4025
      %v4027 = vlaneseq
      %v4028 = vshrl.u32 %v4027, 7
      %v4029 = vsub.s32 0, %v4028
      %v4030 = vrot.slane %v3524, %v4029
      %v4031 = vlaneseq
      %v4032 = vshrl.u32 %v4031, 7
      %v4033 = vsub.s32 1, %v4032
      %v4034 = vrot.slane %v3524, %v4033
      %v4035 = vlaneseq
      %v4036 = vshrl.u32 %v4035, 7
      %v4037 = vsub.s32 2, %v4036
      %v4038 = vrot.slane %v3524, %v4037
      %v4039 = vlaneseq
      %v4040 = vshrl.u32 %v4039, 7
      %v4041 = vsub.s32 3, %v4040
      %v4042 = vrot.slane %v3524, %v4041
      %v4043 = vlaneseq
      %v4044 = vshrl.u32 %v4043, 7
      %v4045 = vsub.s32 4, %v4044
      %v4046 = vrot.slane %v3524, %v4045
      %v4047 = vlaneseq
      %v4048 = vshrl.u32 %v4047, 7
      %v4049 = vsub.s32 5, %v4048
      %v4050 = vrot.slane %v3524, %v4049
      %v4051 = vlaneseq
      %v4052 = vshrl.u32 %v4051, 7
      %v4053 = vsub.s32 6, %v4052
      %v4054 = vrot.slane %v3524, %v4053
      %v4055 = vlaneseq
      %v4056 = vshrl.u32 %v4055, 7
      %v4057 = vsub.s32 7, %v4056
      %v4058 = vrot.slane %v3524, %v4057
      %v4059 = vlaneseq
      %v4060 = vshrl.u32 %v4059, 7
      %v4061 = vsub.s32 0, %v4060
      %v4062 = vrot.slane %v3527, %v4061
      %v4063 = vlaneseq
      %v4064 = vshrl.u32 %v4063, 7
      %v4065 = vsub.s32 1, %v4064
      %v4066 = vrot.slane %v3527, %v4065
      %v4067 = vlaneseq
      %v4068 = vshrl.u32 %v4067, 7
      %v4069 = vsub.s32 2, %v4068
      %v4070 = vrot.slane %v3527, %v4069
      %v4071 = vlaneseq
      %v4072 = vshrl.u32 %v4071, 7
      %v4073 = vsub.s32 3, %v4072
      %v4074 = vrot.slane %v3527, %v4073
      %v4075 = vlaneseq
      %v4076 = vshrl.u32 %v4075, 7
      %v4077 = vsub.s32 4, %v4076
      %v4078 = vrot.slane %v3527, %v4077
      %v4079 = vlaneseq
      %v4080 = vshrl.u32 %v4079, 7
      %v4081 = vsub.s32 5, %v4080
      %v4082 = vrot.slane %v3527, %v4081
      %v4083 = vlaneseq
      %v4084 = vshrl.u32 %v4083, 7
      %v4085 = vsub.s32 6, %v4084
      %v4086 = vrot.slane %v3527, %v4085
      %v4087 = vlaneseq
      %v4088 = vshrl.u32 %v4087, 7
      %v4089 = vsub.s32 7, %v4088
      %v4090 = vrot.slane %v3527, %v4089
      %v4091 = vlaneseq
      %v4092 = vshrl.u32 %v4091, 7
      %v4093 = vsub.s32 0, %v4092
      %v4094 = vrot.slane %v3530, %v4093
      %v4095 = vlaneseq
      %v4096 = vshrl.u32 %v4095, 7
      %v4097 = vsub.s32 1, %v4096
      %v4098 = vrot.slane %v3530, %v4097
      %v4099 = vlaneseq
      %v4100 = vshrl.u32 %v4099, 7
      %v4101 = vsub.s32 2, %v4100
      %v4102 = vrot.slane %v3530, %v4101
      %v4103 = vlaneseq
      %v4104 = vshrl.u32 %v4103, 7
      %v4105 = vsub.s32 3, %v4104
      %v4106 = vrot.slane %v3530, %v4105
      %v4107 = vlaneseq
      %v4108 = vshrl.u32 %v4107, 7
      %v4109 = vsub.s32 4, %v4108
      %v4110 = vrot.slane %v3530, %v4109
      %v4111 = vlaneseq
      %v4112 = vshrl.u32 %v4111, 7
      %v4113 = vsub.s32 5, %v4112
      %v4114 = vrot.slane %v3530, %v4113
      %v4115 = vlaneseq
      %v4116 = vshrl.u32 %v4115, 7
      %v4117 = vsub.s32 6, %v4116
      %v4118 = vrot.slane %v3530, %v4117
      %v4119 = vlaneseq
      %v4120 = vshrl.u32 %v4119, 7
      %v4121 = vsub.s32 7, %v4120
      %v4122 = vrot.slane %v3530, %v4121
      %v4123 = vlaneseq
      %v4124 = vshrl.u32 %v4123, 7
      %v4125 = vsub.s32 0, %v4124
      %v4126 = vrot.slane %v3533, %v4125
      %v4127 = vlaneseq
      %v4128 = vshrl.u32 %v4127, 7
      %v4129 = vsub.s32 1, %v4128
      %v4130 = vrot.slane %v3533, %v4129
      %v4131 = vlaneseq
      %v4132 = vshrl.u32 %v4131, 7
      %v4133 = vsub.s32 2, %v4132
      %v4134 = vrot.slane %v3533, %v4133
      %v4135 = vlaneseq
      %v4136 = vshrl.u32 %v4135, 7
      %v4137 = vsub.s32 3, %v4136
      %v4138 = vrot.slane %v3533, %v4137
      %v4139 = vlaneseq
      %v4140 = vshrl.u32 %v4139, 7
      %v4141 = vsub.s32 4, %v4140
      %v4142 = vrot.slane %v3533, %v4141
      %v4143 = vlaneseq
      %v4144 = vshrl.u32 %v4143, 7
      %v4145 = vsub.s32 5, %v4144
      %v4146 = vrot.slane %v3533, %v4145
      %v4147 = vlaneseq
      %v4148 = vshrl.u32 %v4147, 7
      %v4149 = vsub.s32 6, %v4148
      %v4150 = vrot.slane %v3533, %v4149
      %v4151 = vlaneseq
      %v4152 = vshrl.u32 %v4151, 7
      %v4153 = vsub.s32 7, %v4152
      %v4154 = vrot.slane %v3533, %v4153
      %v4155 = vlaneseq
      %v4156 = vshrl.u32 %v4155, 7
      %v4157 = vsub.s32 0, %v4156
      %v4158 = vrot.slane %v3536, %v4157
      %v4159 = vlaneseq
      %v4160 = vshrl.u32 %v4159, 7
      %v4161 = vsub.s32 1, %v4160
      %v4162 = vrot.slane %v3536, %v4161
      %v4163 = vlaneseq
      %v4164 = vshrl.u32 %v4163, 7
      %v4165 = vsub.s32 2, %v4164
      %v4166 = vrot.slane %v3536, %v4165
      %v4167 = vlaneseq
      %v4168 = vshrl.u32 %v4167, 7
      %v4169 = vsub.s32 3, %v4168
      %v4170 = vrot.slane %v3536, %v4169
      %v4171 = vlaneseq
      %v4172 = vshrl.u32 %v4171, 7
      %v4173 = vsub.s32 4, %v4172
      %v4174 = vrot.slane %v3536, %v4173
      %v4175 = vlaneseq
      %v4176 = vshrl.u32 %v4175, 7
      %v4177 = vsub.s32 5, %v4176
      %v4178 = vrot.slane %v3536, %v4177
      %v4179 = vlaneseq
      %v4180 = vshrl.u32 %v4179, 7
      %v4181 = vsub.s32 6, %v4180
      %v4182 = vrot.slane %v3536, %v4181
      %v4183 = vlaneseq
      %v4184 = vshrl.u32 %v4183, 7
      %v4185 = vsub.s32 7, %v4184
      %v4186 = vrot.slane %v3536, %v4185
      %v4187 = vlaneseq
      %v4188 = vshrl.u32 %v4187, 7
      %v4189 = vsub.s32 0, %v4188
      %v4190 = vrot.slane %v3539, %v4189
      %v4191 = vlaneseq
      %v4192 = vshrl.u32 %v4191, 7
      %v4193 = vsub.s32 1, %v4192
      %v4194 = vrot.slane %v3539, %v4193
      %v4195 = vlaneseq
      %v4196 = vshrl.u32 %v4195, 7
      %v4197 = vsub.s32 2, %v4196
      %v4198 = vrot.slane %v3539, %v4197
      %v4199 = vlaneseq
      %v4200 = vshrl.u32 %v4199, 7
      %v4201 = vsub.s32 3, %v4200
      %v4202 = vrot.slane %v3539, %v4201
      %v4203 = vlaneseq
      %v4204 = vshrl.u32 %v4203, 7
      %v4205 = vsub.s32 4, %v4204
      %v4206 = vrot.slane %v3539, %v4205
      %v4207 = vlaneseq
      %v4208 = vshrl.u32 %v4207, 7
      %v4209 = vsub.s32 5, %v4208
      %v4210 = vrot.slane %v3539, %v4209
      %v4211 = vlaneseq
      %v4212 = vshrl.u32 %v4211, 7
      %v4213 = vsub.s32 6, %v4212
      %v4214 = vrot.slane %v3539, %v4213
      %v4215 = vlaneseq
      %v4216 = vshrl.u32 %v4215, 7
      %v4217 = vsub.s32 7, %v4216
      %v4218 = vrot.slane %v3539, %v4217
      %v4219 = vlaneseq
      %v4220 = vshrl.u32 %v4219, 7
      %v4221 = vsub.s32 0, %v4220
      %v4222 = vrot.slane %v3542, %v4221
      %v4223 = vlaneseq
      %v4224 = vshrl.u32 %v4223, 7
      %v4225 = vsub.s32 1, %v4224
      %v4226 = vrot.slane %v3542, %v4225
      %v4227 = vlaneseq
      %v4228 = vshrl.u32 %v4227, 7
      %v4229 = vsub.s32 2, %v4228
      %v4230 = vrot.slane %v3542, %v4229
      %v4231 = vlaneseq
      %v4232 = vshrl.u32 %v4231, 7
      %v4233 = vsub.s32 3, %v4232
      %v4234 = vrot.slane %v3542, %v4233
      %v4235 = vlaneseq
      %v4236 = vshrl.u32 %v4235, 7
      %v4237 = vsub.s32 4, %v4236
      %v4238 = vrot.slane %v3542, %v4237
      %v4239 = vlaneseq
      %v4240 = vshrl.u32 %v4239, 7
      %v4241 = vsub.s32 5, %v4240
      %v4242 = vrot.slane %v3542, %v4241
      %v4243 = vlaneseq
      %v4244 = vshrl.u32 %v4243, 7
      %v4245 = vsub.s32 6, %v4244
      %v4246 = vrot.slane %v3542, %v4245
      %v4247 = vlaneseq
      %v4248 = vshrl.u32 %v4247, 7
      %v4249 = vsub.s32 7, %v4248
      %v4250 = vrot.slane %v3542, %v4249
      %v4251 = vlaneseq
      %v4252 = vshrl.u32 %v4251, 7
      %v4253 = vsub.s32 0, %v4252
      %v4254 = vrot.slane %v3545, %v4253
      %v4255 = vlaneseq
      %v4256 = vshrl.u32 %v4255, 7
      %v4257 = vsub.s32 1, %v4256
      %v4258 = vrot.slane %v3545, %v4257
      %v4259 = vlaneseq
      %v4260 = vshrl.u32 %v4259, 7
      %v4261 = vsub.s32 2, %v4260
      %v4262 = vrot.slane %v3545, %v4261
      %v4263 = vlaneseq
      %v4264 = vshrl.u32 %v4263, 7
      %v4265 = vsub.s32 3, %v4264
      %v4266 = vrot.slane %v3545, %v4265
      %v4267 = vlaneseq
      %v4268 = vshrl.u32 %v4267, 7
      %v4269 = vsub.s32 4, %v4268
      %v4270 = vrot.slane %v3545, %v4269
      %v4271 = vlaneseq
      %v4272 = vshrl.u32 %v4271, 7
      %v4273 = vsub.s32 5, %v4272
      %v4274 = vrot.slane %v3545, %v4273
      %v4275 = vlaneseq
      %v4276 = vshrl.u32 %v4275, 7
      %v4277 = vsub.s32 6, %v4276
      %v4278 = vrot.slane %v3545, %v4277
      %v4279 = vlaneseq
      %v4280 = vshrl.u32 %v4279, 7
      %v4281 = vsub.s32 7, %v4280
      %v4282 = vrot.slane %v3545, %v4281
      %v4283 = vlaneseq
      %v4284 = vshrl.u32 %v4283, 7
      %v4285 = vsub.s32 0, %v4284
      %v4286 = vrot.slane %v3548, %v4285
      %v4287 = vlaneseq
      %v4288 = vshrl.u32 %v4287, 7
      %v4289 = vsub.s32 1, %v4288
      %v4290 = vrot.slane %v3548, %v4289
      %v4291 = vlaneseq
      %v4292 = vshrl.u32 %v4291, 7
      %v4293 = vsub.s32 2, %v4292
      %v4294 = vrot.slane %v3548, %v4293
      %v4295 = vlaneseq
      %v4296 = vshrl.u32 %v4295, 7
      %v4297 = vsub.s32 3, %v4296
      %v4298 = vrot.slane %v3548, %v4297
      %v4299 = vlaneseq
      %v4300 = vshrl.u32 %v4299, 7
      %v4301 = vsub.s32 4, %v4300
      %v4302 = vrot.slane %v3548, %v4301
      %v4303 = vlaneseq
      %v4304 = vshrl.u32 %v4303, 7
      %v4305 = vsub.s32 5, %v4304
      %v4306 = vrot.slane %v3548, %v4305
      %v4307 = vlaneseq
      %v4308 = vshrl.u32 %v4307, 7
      %v4309 = vsub.s32 6, %v4308
      %v4310 = vrot.slane %v3548, %v4309
      %v4311 = vlaneseq
      %v4312 = vshrl.u32 %v4311, 7
      %v4313 = vsub.s32 7, %v4312
      %v4314 = vrot.slane %v3548, %v4313
      %v4315 = vlaneseq
      %v4316 = vshrl.u32 %v4315, 7
      %v4317 = vsub.s32 0, %v4316
      %v4318 = vrot.slane %v3551, %v4317
      %v4319 = vlaneseq
      %v4320 = vshrl.u32 %v4319, 7
      %v4321 = vsub.s32 1, %v4320
      %v4322 = vrot.slane %v3551, %v4321
      %v4323 = vlaneseq
      %v4324 = vshrl.u32 %v4323, 7
      %v4325 = vsub.s32 2, %v4324
      %v4326 = vrot.slane %v3551, %v4325
      %v4327 = vlaneseq
      %v4328 = vshrl.u32 %v4327, 7
      %v4329 = vsub.s32 3, %v4328
      %v4330 = vrot.slane %v3551, %v4329
      %v4331 = vlaneseq
      %v4332 = vshrl.u32 %v4331, 7
      %v4333 = vsub.s32 4, %v4332
      %v4334 = vrot.slane %v3551, %v4333
      %v4335 = vlaneseq
      %v4336 = vshrl.u32 %v4335, 7
      %v4337 = vsub.s32 5, %v4336
      %v4338 = vrot.slane %v3551, %v4337
      %v4339 = vlaneseq
      %v4340 = vshrl.u32 %v4339, 7
      %v4341 = vsub.s32 6, %v4340
      %v4342 = vrot.slane %v3551, %v4341
      %v4343 = vlaneseq
      %v4344 = vshrl.u32 %v4343, 7
      %v4345 = vsub.s32 7, %v4344
      %v4346 = vrot.slane %v3551, %v4345
      %v4347 = vlaneseq
      %v4348 = vshrl.u32 %v4347, 7
      %v4349 = vsub.s32 0, %v4348
      %v4350 = vrot.slane %v3554, %v4349
      %v4351 = vlaneseq
      %v4352 = vshrl.u32 %v4351, 7
      %v4353 = vsub.s32 1, %v4352
      %v4354 = vrot.slane %v3554, %v4353
      %v4355 = vlaneseq
      %v4356 = vshrl.u32 %v4355, 7
      %v4357 = vsub.s32 2, %v4356
      %v4358 = vrot.slane %v3554, %v4357
      %v4359 = vlaneseq
      %v4360 = vshrl.u32 %v4359, 7
      %v4361 = vsub.s32 3, %v4360
      %v4362 = vrot.slane %v3554, %v4361
      %v4363 = vlaneseq
      %v4364 = vshrl.u32 %v4363, 7
      %v4365 = vsub.s32 4, %v4364
      %v4366 = vrot.slane %v3554, %v4365
      %v4367 = vlaneseq
      %v4368 = vshrl.u32 %v4367, 7
      %v4369 = vsub.s32 5, %v4368
      %v4370 = vrot.slane %v3554, %v4369
      %v4371 = vlaneseq
      %v4372 = vshrl.u32 %v4371, 7
      %v4373 = vsub.s32 6, %v4372
      %v4374 = vrot.slane %v3554, %v4373
      %v4375 = vlaneseq
      %v4376 = vshrl.u32 %v4375, 7
      %v4377 = vsub.s32 7, %v4376
      %v4378 = vrot.slane %v3554, %v4377
      %v4379 = vlaneseq
      %v4380 = vshrl.u32 %v4379, 7
      %v4381 = vsub.s32 0, %v4380
      %v4382 = vrot.slane %v3557, %v4381
      %v4383 = vlaneseq
      %v4384 = vshrl.u32 %v4383, 7
      %v4385 = vsub.s32 1, %v4384
      %v4386 = vrot.slane %v3557, %v4385
      %v4387 = vlaneseq
      %v4388 = vshrl.u32 %v4387, 7
      %v4389 = vsub.s32 2, %v4388
      %v4390 = vrot.slane %v3557, %v4389
      %v4391 = vlaneseq
      %v4392 = vshrl.u32 %v4391, 7
      %v4393 = vsub.s32 3, %v4392
      %v4394 = vrot.slane %v3557, %v4393
      %v4395 = vlaneseq
      %v4396 = vshrl.u32 %v4395, 7
      %v4397 = vsub.s32 4, %v4396
      %v4398 = vrot.slane %v3557, %v4397
      %v4399 = vlaneseq
      %v4400 = vshrl.u32 %v4399, 7
      %v4401 = vsub.s32 5, %v4400
      %v4402 = vrot.slane %v3557, %v4401
      %v4403 = vlaneseq
      %v4404 = vshrl.u32 %v4403, 7
      %v4405 = vsub.s32 6, %v4404
      %v4406 = vrot.slane %v3557, %v4405
      %v4407 = vlaneseq
      %v4408 = vshrl.u32 %v4407, 7
      %v4409 = vsub.s32 7, %v4408
      %v4410 = vrot.slane %v3557, %v4409
      %v4411 = vlaneseq
      %v4412 = vshrl.u32 %v4411, 7
      %v4413 = vsub.s32 0, %v4412
      %v4414 = vrot.slane %v3560, %v4413
      %v4415 = vlaneseq
      %v4416 = vshrl.u32 %v4415, 7
      %v4417 = vsub.s32 1, %v4416
      %v4418 = vrot.slane %v3560, %v4417
      %v4419 = vlaneseq
      %v4420 = vshrl.u32 %v4419, 7
      %v4421 = vsub.s32 2, %v4420
      %v4422 = vrot.slane %v3560, %v4421
      %v4423 = vlaneseq
      %v4424 = vshrl.u32 %v4423, 7
      %v4425 = vsub.s32 3, %v4424
      %v4426 = vrot.slane %v3560, %v4425
      %v4427 = vlaneseq
      %v4428 = vshrl.u32 %v4427, 7
      %v4429 = vsub.s32 4, %v4428
      %v4430 = vrot.slane %v3560, %v4429
      %v4431 = vlaneseq
      %v4432 = vshrl.u32 %v4431, 7
      %v4433 = vsub.s32 5, %v4432
      %v4434 = vrot.slane %v3560, %v4433
      %v4435 = vlaneseq
      %v4436 = vshrl.u32 %v4435, 7
      %v4437 = vsub.s32 6, %v4436
      %v4438 = vrot.slane %v3560, %v4437
      %v4439 = vlaneseq
      %v4440 = vshrl.u32 %v4439, 7
      %v4441 = vsub.s32 7, %v4440
      %v4442 = vrot.slane %v3560, %v4441
      %v4443 = vlaneseq
      %v4444 = vshrl.u32 %v4443, 7
      %v4445 = vsub.s32 0, %v4444
      %v4446 = vrot.slane %v3563, %v4445
      %v4447 = vlaneseq
      %v4448 = vshrl.u32 %v4447, 7
      %v4449 = vsub.s32 1, %v4448
      %v4450 = vrot.slane %v3563, %v4449
      %v4451 = vlaneseq
      %v4452 = vshrl.u32 %v4451, 7
      %v4453 = vsub.s32 2, %v4452
      %v4454 = vrot.slane %v3563, %v4453
      %v4455 = vlaneseq
      %v4456 = vshrl.u32 %v4455, 7
      %v4457 = vsub.s32 3, %v4456
      %v4458 = vrot.slane %v3563, %v4457
      %v4459 = vlaneseq
      %v4460 = vshrl.u32 %v4459, 7
      %v4461 = vsub.s32 4, %v4460
      %v4462 = vrot.slane %v3563, %v4461
      %v4463 = vlaneseq
      %v4464 = vshrl.u32 %v4463, 7
      %v4465 = vsub.s32 5, %v4464
      %v4466 = vrot.slane %v3563, %v4465
      %v4467 = vlaneseq
      %v4468 = vshrl.u32 %v4467, 7
      %v4469 = vsub.s32 6, %v4468
      %v4470 = vrot.slane %v3563, %v4469
      %v4471 = vlaneseq
      %v4472 = vshrl.u32 %v4471, 7
      %v4473 = vsub.s32 7, %v4472
      %v4474 = vrot.slane %v3563, %v4473
      %v4475 = vlaneseq
      %v4476 = vshrl.u32 %v4475, 7
      %v4477 = vsub.s32 0, %v4476
      %v4478 = vrot.slane %v3566, %v4477
      %v4479 = vlaneseq
      %v4480 = vshrl.u32 %v4479, 7
      %v4481 = vsub.s32 1, %v4480
      %v4482 = vrot.slane %v3566, %v4481
      %v4483 = vlaneseq
      %v4484 = vshrl.u32 %v4483, 7
      %v4485 = vsub.s32 2, %v4484
      %v4486 = vrot.slane %v3566, %v4485
      %v4487 = vlaneseq
      %v4488 = vshrl.u32 %v4487, 7
      %v4489 = vsub.s32 3, %v4488
      %v4490 = vrot.slane %v3566, %v4489
      %v4491 = vlaneseq
      %v4492 = vshrl.u32 %v4491, 7
      %v4493 = vsub.s32 4, %v4492
      %v4494 = vrot.slane %v3566, %v4493
      %v4495 = vlaneseq
      %v4496 = vshrl.u32 %v4495, 7
      %v4497 = vsub.s32 5, %v4496
      %v4498 = vrot.slane %v3566, %v4497
      %v4499 = vlaneseq
      %v4500 = vshrl.u32 %v4499, 7
      %v4501 = vsub.s32 6, %v4500
      %v4502 = vrot.slane %v3566, %v4501
      %v4503 = vlaneseq
      %v4504 = vshrl.u32 %v4503, 7
      %v4505 = vsub.s32 7, %v4504
      %v4506 = vrot.slane %v3566, %v4505
      %v4507 = vlaneseq
      %v4508 = vshrl.u32 %v4507, 7
      %v4509 = vsub.s32 0, %v4508
      %v4510 = vrot.slane %v3569, %v4509
      %v4511 = vlaneseq
      %v4512 = vshrl.u32 %v4511, 7
      %v4513 = vsub.s32 1, %v4512
      %v4514 = vrot.slane %v3569, %v4513
      %v4515 = vlaneseq
      %v4516 = vshrl.u32 %v4515, 7
      %v4517 = vsub.s32 2, %v4516
      %v4518 = vrot.slane %v3569, %v4517
      %v4519 = vlaneseq
      %v4520 = vshrl.u32 %v4519, 7
      %v4521 = vsub.s32 3, %v4520
      %v4522 = vrot.slane %v3569, %v4521
      %v4523 = vlaneseq
      %v4524 = vshrl.u32 %v4523, 7
      %v4525 = vsub.s32 4, %v4524
      %v4526 = vrot.slane %v3569, %v4525
      %v4527 = vlaneseq
      %v4528 = vshrl.u32 %v4527, 7
      %v4529 = vsub.s32 5, %v4528
      %v4530 = vrot.slane %v3569, %v4529
      %v4531 = vlaneseq
      %v4532 = vshrl.u32 %v4531, 7
      %v4533 = vsub.s32 6, %v4532
      %v4534 = vrot.slane %v3569, %v4533
      %v4535 = vlaneseq
      %v4536 = vshrl.u32 %v4535, 7
      %v4537 = vsub.s32 7, %v4536
      %v4538 = vrot.slane %v3569, %v4537
      %v4539 = vlaneseq
      %v4540 = vshrl.u32 %v4539, 7
      %v4541 = vsub.s32 0, %v4540
      %v4542 = vrot.slane %v3572, %v4541
      %v4543 = vlaneseq
      %v4544 = vshrl.u32 %v4543, 7
      %v4545 = vsub.s32 1, %v4544
      %v4546 = vrot.slane %v3572, %v4545
      %v4547 = vlaneseq
      %v4548 = vshrl.u32 %v4547, 7
      %v4549 = vsub.s32 2, %v4548
      %v4550 = vrot.slane %v3572, %v4549
      %v4551 = vlaneseq
      %v4552 = vshrl.u32 %v4551, 7
      %v4553 = vsub.s32 3, %v4552
      %v4554 = vrot.slane %v3572, %v4553
      %v4555 = vlaneseq
      %v4556 = vshrl.u32 %v4555, 7
      %v4557 = vsub.s32 4, %v4556
      %v4558 = vrot.slane %v3572, %v4557
      %v4559 = vlaneseq
      %v4560 = vshrl.u32 %v4559, 7
      %v4561 = vsub.s32 5, %v4560
      %v4562 = vrot.slane %v3572, %v4561
      %v4563 = vlaneseq
      %v4564 = vshrl.u32 %v4563, 7
      %v4565 = vsub.s32 6, %v4564
      %v4566 = vrot.slane %v3572, %v4565
      %v4567 = vlaneseq
      %v4568 = vshrl.u32 %v4567, 7
      %v4569 = vsub.s32 7, %v4568
      %v4570 = vrot.slane %v3572, %v4569
      %v4571 = vlaneseq
      %v4572 = vshrl.u32 %v4571, 7
      %v4573 = vsub.s32 0, %v4572
      %v4574 = vrot.slane %v3575, %v4573
      %v4575 = vlaneseq
      %v4576 = vshrl.u32 %v4575, 7
      %v4577 = vsub.s32 1, %v4576
      %v4578 = vrot.slane %v3575, %v4577
      %v4579 = vlaneseq
      %v4580 = vshrl.u32 %v4579, 7
      %v4581 = vsub.s32 2, %v4580
      %v4582 = vrot.slane %v3575, %v4581
      %v4583 = vlaneseq
      %v4584 = vshrl.u32 %v4583, 7
      %v4585 = vsub.s32 3, %v4584
      %v4586 = vrot.slane %v3575, %v4585
      %v4587 = vlaneseq
      %v4588 = vshrl.u32 %v4587, 7
      %v4589 = vsub.s32 4, %v4588
      %v4590 = vrot.slane %v3575, %v4589
      %v4591 = vlaneseq
      %v4592 = vshrl.u32 %v4591, 7
      %v4593 = vsub.s32 5, %v4592
      %v4594 = vrot.slane %v3575, %v4593
      %v4595 = vlaneseq
      %v4596 = vshrl.u32 %v4595, 7
      %v4597 = vsub.s32 6, %v4596
      %v4598 = vrot.slane %v3575, %v4597
      %v4599 = vlaneseq
      %v4600 = vshrl.u32 %v4599, 7
      %v4601 = vsub.s32 7, %v4600
      %v4602 = vrot.slane %v3575, %v4601
      %v4603 = vlaneseq
      %v4604 = vshrl.u32 %v4603, 7
      %v4605 = vsub.s32 0, %v4604
      %v4606 = vrot.slane %v3578, %v4605
      %v4607 = vlaneseq
      %v4608 = vshrl.u32 %v4607, 7
      %v4609 = vsub.s32 1, %v4608
      %v4610 = vrot.slane %v3578, %v4609
      %v4611 = vlaneseq
      %v4612 = vshrl.u32 %v4611, 7
      %v4613 = vsub.s32 2, %v4612
      %v4614 = vrot.slane %v3578, %v4613
      %v4615 = vlaneseq
      %v4616 = vshrl.u32 %v4615, 7
      %v4617 = vsub.s32 3, %v4616
      %v4618 = vrot.slane %v3578, %v4617
      %v4619 = vlaneseq
      %v4620 = vshrl.u32 %v4619, 7
      %v4621 = vsub.s32 4, %v4620
      %v4622 = vrot.slane %v3578, %v4621
      %v4623 = vlaneseq
      %v4624 = vshrl.u32 %v4623, 7
      %v4625 = vsub.s32 5, %v4624
      %v4626 = vrot.slane %v3578, %v4625
      %v4627 = vlaneseq
      %v4628 = vshrl.u32 %v4627, 7
      %v4629 = vsub.s32 6, %v4628
      %v4630 = vrot.slane %v3578, %v4629
      %v4631 = vlaneseq
      %v4632 = vshrl.u32 %v4631, 7
      %v4633 = vsub.s32 7, %v4632
      %v4634 = vrot.slane %v3578, %v4633
      %v4635 = vcombine.low %v3614, %v3618
      %v4636 = vcombine.low %v3622, %v3626
      %v4637 = vcombine.low %v3630, %v3634
      %v4638 = vcombine.low %v3638, %v3642
      %v4640 = vunpack.c.l.s4 1966171168
      %v4641 = vunpack.c.0.s8 %v4640
      %v4642 = vlaneseq
      %v4643 = vshrl.u32 %v4642, 7
      %v4644 = vsub.s32 %v4641, %v4643
      %v4645 = vrot.slane %v4635, %v4644
      %v4647 = vunpack.c.l.s4 1966171168
      %v4648 = vunpack.c.0.s8 %v4647
      %v4649 = vlaneseq
      %v4650 = vshrl.u32 %v4649, 7
      %v4651 = vsub.s32 %v4648, %v4650
      %v4652 = vrot.slane %v4636, %v4651
      %v4654 = vunpack.c.l.s4 1966171168
      %v4655 = vunpack.c.0.s8 %v4654
      %v4656 = vlaneseq
      %v4657 = vshrl.u32 %v4656, 7
      %v4658 = vsub.s32 %v4655, %v4657
      %v4659 = vrot.slane %v4637, %v4658
      %v4661 = vunpack.c.l.s4 1966171168
      %v4662 = vunpack.c.0.s8 %v4661
      %v4663 = vlaneseq
      %v4664 = vshrl.u32 %v4663, 7
      %v4665 = vsub.s32 %v4662, %v4664
      %v4666 = vrot.slane %v4638, %v4665
      %v4667 = vcombine.low %v4645, %v4652
      %v4668 = vcombine.low %v4659, %v4666
      %v4670 = vunpack.c.l.s4 1966171168
      %v4671 = vunpack.c.0.s8 %v4670
      %v4672 = vlaneseq
      %v4673 = vshrl.u32 %v4672, 7
      %v4674 = vsub.s32 %v4671, %v4673
      %v4675 = vrot.slane %v4667, %v4674
      %v4677 = vunpack.c.l.s4 1966171168
      %v4678 = vunpack.c.0.s8 %v4677
      %v4679 = vlaneseq
      %v4680 = vshrl.u32 %v4679, 7
      %v4681 = vsub.s32 %v4678, %v4680
      %v4682 = vrot.slane %v4668, %v4681
      %v4683 = vcombine.low %v4675, %v4682
      %v4684 = vcombine.low %v3646, %v3650
      %v4685 = vcombine.low %v3654, %v3658
      %v4686 = vcombine.low %v3662, %v3666
      %v4687 = vcombine.low %v3670, %v3674
      %v4689 = vunpack.c.l.s4 1966171168
      %v4690 = vunpack.c.0.s8 %v4689
      %v4691 = vlaneseq
      %v4692 = vshrl.u32 %v4691, 7
      %v4693 = vsub.s32 %v4690, %v4692
      %v4694 = vrot.slane %v4684, %v4693
      %v4696 = vunpack.c.l.s4 1966171168
      %v4697 = vunpack.c.0.s8 %v4696
      %v4698 = vlaneseq
      %v4699 = vshrl.u32 %v4698, 7
      %v4700 = vsub.s32 %v4697, %v4699
      %v4701 = vrot.slane %v4685, %v4700
      %v4703 = vunpack.c.l.s4 1966171168
      %v4704 = vunpack.c.0.s8 %v4703
      %v4705 = vlaneseq
      %v4706 = vshrl.u32 %v4705, 7
      %v4707 = vsub.s32 %v4704, %v4706
      %v4708 = vrot.slane %v4686, %v4707
      %v4710 = vunpack.c.l.s4 1966171168
      %v4711 = vunpack.c.0.s8 %v4710
      %v4712 = vlaneseq
      %v4713 = vshrl.u32 %v4712, 7
      %v4714 = vsub.s32 %v4711, %v4713
      %v4715 = vrot.slane %v4687, %v4714
      %v4716 = vcombine.low %v4694, %v4701
      %v4717 = vcombine.low %v4708, %v4715
      %v4719 = vunpack.c.l.s4 1966171168
      %v4720 = vunpack.c.0.s8 %v4719
      %v4721 = vlaneseq
      %v4722 = vshrl.u32 %v4721, 7
      %v4723 = vsub.s32 %v4720, %v4722
      %v4724 = vrot.slane %v4716, %v4723
      %v4726 = vunpack.c.l.s4 1966171168
      %v4727 = vunpack.c.0.s8 %v4726
      %v4728 = vlaneseq
      %v4729 = vshrl.u32 %v4728, 7
      %v4730 = vsub.s32 %v4727, %v4729
      %v4731 = vrot.slane %v4717, %v4730
      %v4732 = vcombine.low %v4724, %v4731
      %v4733 = vcombine.low %v3678, %v3682
      %v4734 = vcombine.low %v3686, %v3690
      %v4735 = vcombine.low %v3694, %v3698
      %v4736 = vcombine.low %v3702, %v3706
      %v4738 = vunpack.c.l.s4 1966171168
      %v4739 = vunpack.c.0.s8 %v4738
      %v4740 = vlaneseq
      %v4741 = vshrl.u32 %v4740, 7
      %v4742 = vsub.s32 %v4739, %v4741
      %v4743 = vrot.slane %v4733, %v4742
      %v4745 = vunpack.c.l.s4 1966171168
      %v4746 = vunpack.c.0.s8 %v4745
      %v4747 = vlaneseq
      %v4748 = vshrl.u32 %v4747, 7
      %v4749 = vsub.s32 %v4746, %v4748
      %v4750 = vrot.slane %v4734, %v4749
      %v4752 = vunpack.c.l.s4 1966171168
      %v4753 = vunpack.c.0.s8 %v4752
      %v4754 = vlaneseq
      %v4755 = vshrl.u32 %v4754, 7
      %v4756 = vsub.s32 %v4753, %v4755
      %v4757 = vrot.slane %v4735, %v4756
      %v4759 = vunpack.c.l.s4 1966171168
      %v4760 = vunpack.c.0.s8 %v4759
      %v4761 = vlaneseq
      %v4762 = vshrl.u32 %v4761, 7
      %v4763 = vsub.s32 %v4760, %v4762
      %v4764 = vrot.slane %v4736, %v4763
      %v4765 = vcombine.low %v4743, %v4750
      %v4766 = vcombine.low %v4757, %v4764
      %v4768 = vunpack.c.l.s4 1966171168
      %v4769 = vunpack.c.0.s8 %v4768
      %v4770 = vlaneseq
      %v4771 = vshrl.u32 %v4770, 7
      %v4772 = vsub.s32 %v4769, %v4771
      %v4773 = vrot.slane %v4765, %v4772
      %v4775 = vunpack.c.l.s4 1966171168
      %v4776 = vunpack.c.0.s8 %v4775
      %v4777 = vlaneseq
      %v4778 = vshrl.u32 %v4777, 7
      %v4779 = vsub.s32 %v4776, %v4778
      %v4780 = vrot.slane %v4766, %v4779
      %v4781 = vcombine.low %v4773, %v4780
      %v4782 = vcombine.low %v3710, %v3714
      %v4783 = vcombine.low %v3718, %v3722
      %v4784 = vcombine.low %v3726, %v3730
      %v4785 = vcombine.low %v3734, %v3738
      %v4787 = vunpack.c.l.s4 1966171168
      %v4788 = vunpack.c.0.s8 %v4787
      %v4789 = vlaneseq
      %v4790 = vshrl.u32 %v4789, 7
      %v4791 = vsub.s32 %v4788, %v4790
      %v4792 = vrot.slane %v4782, %v4791
      %v4794 = vunpack.c.l.s4 1966171168
      %v4795 = vunpack.c.0.s8 %v4794
      %v4796 = vlaneseq
      %v4797 = vshrl.u32 %v4796, 7
      %v4798 = vsub.s32 %v4795, %v4797
      %v4799 = vrot.slane %v4783, %v4798
      %v4801 = vunpack.c.l.s4 1966171168
      %v4802 = vunpack.c.0.s8 %v4801
      %v4803 = vlaneseq
      %v4804 = vshrl.u32 %v4803, 7
      %v4805 = vsub.s32 %v4802, %v4804
      %v4806 = vrot.slane %v4784, %v4805
      %v4808 = vunpack.c.l.s4 1966171168
      %v4809 = vunpack.c.0.s8 %v4808
      %v4810 = vlaneseq
      %v4811 = vshrl.u32 %v4810, 7
      %v4812 = vsub.s32 %v4809, %v4811
      %v4813 = vrot.slane %v4785, %v4812
      %v4814 = vcombine.low %v4792, %v4799
      %v4815 = vcombine.low %v4806, %v4813
      %v4817 = vunpack.c.l.s4 1966171168
      %v4818 = vunpack.c.0.s8 %v4817
      %v4819 = vlaneseq
      %v4820 = vshrl.u32 %v4819, 7
      %v4821 = vsub.s32 %v4818, %v4820
      %v4822 = vrot.slane %v4814, %v4821
      %v4824 = vunpack.c.l.s4 1966171168
      %v4825 = vunpack.c.0.s8 %v4824
      %v4826 = vlaneseq
      %v4827 = vshrl.u32 %v4826, 7
      %v4828 = vsub.s32 %v4825, %v4827
      %v4829 = vrot.slane %v4815, %v4828
      %v4830 = vcombine.low %v4822, %v4829
      %v4831 = vcombine.low %v3742, %v3746
      %v4832 = vcombine.low %v3750, %v3754
      %v4833 = vcombine.low %v3758, %v3762
      %v4834 = vcombine.low %v3766, %v3770
      %v4836 = vunpack.c.l.s4 1966171168
      %v4837 = vunpack.c.0.s8 %v4836
      %v4838 = vlaneseq
      %v4839 = vshrl.u32 %v4838, 7
      %v4840 = vsub.s32 %v4837, %v4839
      %v4841 = vrot.slane %v4831, %v4840
      %v4843 = vunpack.c.l.s4 1966171168
      %v4844 = vunpack.c.0.s8 %v4843
      %v4845 = vlaneseq
      %v4846 = vshrl.u32 %v4845, 7
      %v4847 = vsub.s32 %v4844, %v4846
      %v4848 = vrot.slane %v4832, %v4847
      %v4850 = vunpack.c.l.s4 1966171168
      %v4851 = vunpack.c.0.s8 %v4850
      %v4852 = vlaneseq
      %v4853 = vshrl.u32 %v4852, 7
      %v4854 = vsub.s32 %v4851, %v4853
      %v4855 = vrot.slane %v4833, %v4854
      %v4857 = vunpack.c.l.s4 1966171168
      %v4858 = vunpack.c.0.s8 %v4857
      %v4859 = vlaneseq
      %v4860 = vshrl.u32 %v4859, 7
      %v4861 = vsub.s32 %v4858, %v4860
      %v4862 = vrot.slane %v4834, %v4861
      %v4863 = vcombine.low %v4841, %v4848
      %v4864 = vcombine.low %v4855, %v4862
      %v4866 = vunpack.c.l.s4 1966171168
      %v4867 = vunpack.c.0.s8 %v4866
      %v4868 = vlaneseq
      %v4869 = vshrl.u32 %v4868, 7
      %v4870 = vsub.s32 %v4867, %v4869
      %v4871 = vrot.slane %v4863, %v4870
      %v4873 = vunpack.c.l.s4 1966171168
      %v4874 = vunpack.c.0.s8 %v4873
      %v4875 = vlaneseq
      %v4876 = vshrl.u32 %v4875, 7
      %v4877 = vsub.s32 %v4874, %v4876
      %v4878 = vrot.slane %v4864, %v4877
      %v4879 = vcombine.low %v4871, %v4878
      %v4880 = vcombine.low %v3774, %v3778
      %v4881 = vcombine.low %v3782, %v3786
      %v4882 = vcombine.low %v3790, %v3794
      %v4883 = vcombine.low %v3798, %v3802
      %v4885 = vunpack.c.l.s4 1966171168
      %v4886 = vunpack.c.0.s8 %v4885
      %v4887 = vlaneseq
      %v4888 = vshrl.u32 %v4887, 7
      %v4889 = vsub.s32 %v4886, %v4888
      %v4890 = vrot.slane %v4880, %v4889
      %v4892 = vunpack.c.l.s4 1966171168
      %v4893 = vunpack.c.0.s8 %v4892
      %v4894 = vlaneseq
      %v4895 = vshrl.u32 %v4894, 7
      %v4896 = vsub.s32 %v4893, %v4895
      %v4897 = vrot.slane %v4881, %v4896
      %v4899 = vunpack.c.l.s4 1966171168
      %v4900 = vunpack.c.0.s8 %v4899
      %v4901 = vlaneseq
      %v4902 = vshrl.u32 %v4901, 7
      %v4903 = vsub.s32 %v4900, %v4902
      %v4904 = vrot.slane %v4882, %v4903
      %v4906 = vunpack.c.l.s4 1966171168
      %v4907 = vunpack.c.0.s8 %v4906
      %v4908 = vlaneseq
      %v4909 = vshrl.u32 %v4908, 7
      %v4910 = vsub.s32 %v4907, %v4909
      %v4911 = vrot.slane %v4883, %v4910
      %v4912 = vcombine.low %v4890, %v4897
      %v4913 = vcombine.low %v4904, %v4911
      %v4915 = vunpack.c.l.s4 1966171168
      %v4916 = vunpack.c.0.s8 %v4915
      %v4917 = vlaneseq
      %v4918 = vshrl.u32 %v4917, 7
      %v4919 = vsub.s32 %v4916, %v4918
      %v4920 = vrot.slane %v4912, %v4919
      %v4922 = vunpack.c.l.s4 1966171168
      %v4923 = vunpack.c.0.s8 %v4922
      %v4924 = vlaneseq
      %v4925 = vshrl.u32 %v4924, 7
      %v4926 = vsub.s32 %v4923, %v4925
      %v4927 = vrot.slane %v4913, %v4926
      %v4928 = vcombine.low %v4920, %v4927
      %v4929 = vcombine.low %v3806, %v3810
      %v4930 = vcombine.low %v3814, %v3818
      %v4931 = vcombine.low %v3822, %v3826
      %v4932 = vcombine.low %v3830, %v3834
      %v4934 = vunpack.c.l.s4 1966171168
      %v4935 = vunpack.c.0.s8 %v4934
      %v4936 = vlaneseq
      %v4937 = vshrl.u32 %v4936, 7
      %v4938 = vsub.s32 %v4935, %v4937
      %v4939 = vrot.slane %v4929, %v4938
      %v4941 = vunpack.c.l.s4 1966171168
      %v4942 = vunpack.c.0.s8 %v4941
      %v4943 = vlaneseq
      %v4944 = vshrl.u32 %v4943, 7
      %v4945 = vsub.s32 %v4942, %v4944
      %v4946 = vrot.slane %v4930, %v4945
      %v4948 = vunpack.c.l.s4 1966171168
      %v4949 = vunpack.c.0.s8 %v4948
      %v4950 = vlaneseq
      %v4951 = vshrl.u32 %v4950, 7
      %v4952 = vsub.s32 %v4949, %v4951
      %v4953 = vrot.slane %v4931, %v4952
      %v4955 = vunpack.c.l.s4 1966171168
      %v4956 = vunpack.c.0.s8 %v4955
      %v4957 = vlaneseq
      %v4958 = vshrl.u32 %v4957, 7
      %v4959 = vsub.s32 %v4956, %v4958
      %v4960 = vrot.slane %v4932, %v4959
      %v4961 = vcombine.low %v4939, %v4946
      %v4962 = vcombine.low %v4953, %v4960
      %v4964 = vunpack.c.l.s4 1966171168
      %v4965 = vunpack.c.0.s8 %v4964
      %v4966 = vlaneseq
      %v4967 = vshrl.u32 %v4966, 7
      %v4968 = vsub.s32 %v4965, %v4967
      %v4969 = vrot.slane %v4961, %v4968
      %v4971 = vunpack.c.l.s4 1966171168
      %v4972 = vunpack.c.0.s8 %v4971
      %v4973 = vlaneseq
      %v4974 = vshrl.u32 %v4973, 7
      %v4975 = vsub.s32 %v4972, %v4974
      %v4976 = vrot.slane %v4962, %v4975
      %v4977 = vcombine.low %v4969, %v4976
      %v4978 = vcombine.low %v3838, %v3842
      %v4979 = vcombine.low %v3846, %v3850
      %v4980 = vcombine.low %v3854, %v3858
      %v4981 = vcombine.low %v3862, %v3866
      %v4983 = vunpack.c.l.s4 1966171168
      %v4984 = vunpack.c.0.s8 %v4983
      %v4985 = vlaneseq
      %v4986 = vshrl.u32 %v4985, 7
      %v4987 = vsub.s32 %v4984, %v4986
      %v4988 = vrot.slane %v4978, %v4987
      %v4990 = vunpack.c.l.s4 1966171168
      %v4991 = vunpack.c.0.s8 %v4990
      %v4992 = vlaneseq
      %v4993 = vshrl.u32 %v4992, 7
      %v4994 = vsub.s32 %v4991, %v4993
      %v4995 = vrot.slane %v4979, %v4994
      %v4997 = vunpack.c.l.s4 1966171168
      %v4998 = vunpack.c.0.s8 %v4997
      %v4999 = vlaneseq
      %v5000 = vshrl.u32 %v4999, 7
      %v5001 = vsub.s32 %v4998, %v5000
      %v5002 = vrot.slane %v4980, %v5001
      %v5004 = vunpack.c.l.s4 1966171168
      %v5005 = vunpack.c.0.s8 %v5004
      %v5006 = vlaneseq
      %v5007 = vshrl.u32 %v5006, 7
      %v5008 = vsub.s32 %v5005, %v5007
      %v5009 = vrot.slane %v4981, %v5008
      %v5010 = vcombine.low %v4988, %v4995
      %v5011 = vcombine.low %v5002, %v5009
      %v5013 = vunpack.c.l.s4 1966171168
      %v5014 = vunpack.c.0.s8 %v5013
      %v5015 = vlaneseq
      %v5016 = vshrl.u32 %v5015, 7
      %v5017 = vsub.s32 %v5014, %v5016
      %v5018 = vrot.slane %v5010, %v5017
      %v5020 = vunpack.c.l.s4 1966171168
      %v5021 = vunpack.c.0.s8 %v5020
      %v5022 = vlaneseq
      %v5023 = vshrl.u32 %v5022, 7
      %v5024 = vsub.s32 %v5021, %v5023
      %v5025 = vrot.slane %v5011, %v5024
      %v5026 = vcombine.low %v5018, %v5025
      %v5027 = vcombine.low %v3870, %v3874
      %v5028 = vcombine.low %v3878, %v3882
      %v5029 = vcombine.low %v3886, %v3890
      %v5030 = vcombine.low %v3894, %v3898
      %v5032 = vunpack.c.l.s4 1966171168
      %v5033 = vunpack.c.0.s8 %v5032
      %v5034 = vlaneseq
      %v5035 = vshrl.u32 %v5034, 7
      %v5036 = vsub.s32 %v5033, %v5035
      %v5037 = vrot.slane %v5027, %v5036
      %v5039 = vunpack.c.l.s4 1966171168
      %v5040 = vunpack.c.0.s8 %v5039
      %v5041 = vlaneseq
      %v5042 = vshrl.u32 %v5041, 7
      %v5043 = vsub.s32 %v5040, %v5042
      %v5044 = vrot.slane %v5028, %v5043
      %v5046 = vunpack.c.l.s4 1966171168
      %v5047 = vunpack.c.0.s8 %v5046
      %v5048 = vlaneseq
      %v5049 = vshrl.u32 %v5048, 7
      %v5050 = vsub.s32 %v5047, %v5049
      %v5051 = vrot.slane %v5029, %v5050
      %v5053 = vunpack.c.l.s4 1966171168
      %v5054 = vunpack.c.0.s8 %v5053
      %v5055 = vlaneseq
      %v5056 = vshrl.u32 %v5055, 7
      %v5057 = vsub.s32 %v5054, %v5056
      %v5058 = vrot.slane %v5030, %v5057
      %v5059 = vcombine.low %v5037, %v5044
      %v5060 = vcombine.low %v5051, %v5058
      %v5062 = vunpack.c.l.s4 1966171168
      %v5063 = vunpack.c.0.s8 %v5062
      %v5064 = vlaneseq
      %v5065 = vshrl.u32 %v5064, 7
      %v5066 = vsub.s32 %v5063, %v5065
      %v5067 = vrot.slane %v5059, %v5066
      %v5069 = vunpack.c.l.s4 1966171168
      %v5070 = vunpack.c.0.s8 %v5069
      %v5071 = vlaneseq
      %v5072 = vshrl.u32 %v5071, 7
      %v5073 = vsub.s32 %v5070, %v5072
      %v5074 = vrot.slane %v5060, %v5073
      %v5075 = vcombine.low %v5067, %v5074
      %v5076 = vcombine.low %v3902, %v3906
      %v5077 = vcombine.low %v3910, %v3914
      %v5078 = vcombine.low %v3918, %v3922
      %v5079 = vcombine.low %v3926, %v3930
      %v5081 = vunpack.c.l.s4 1966171168
      %v5082 = vunpack.c.0.s8 %v5081
      %v5083 = vlaneseq
      %v5084 = vshrl.u32 %v5083, 7
      %v5085 = vsub.s32 %v5082, %v5084
      %v5086 = vrot.slane %v5076, %v5085
      %v5088 = vunpack.c.l.s4 1966171168
      %v5089 = vunpack.c.0.s8 %v5088
      %v5090 = vlaneseq
      %v5091 = vshrl.u32 %v5090, 7
      %v5092 = vsub.s32 %v5089, %v5091
      %v5093 = vrot.slane %v5077, %v5092
      %v5095 = vunpack.c.l.s4 1966171168
      %v5096 = vunpack.c.0.s8 %v5095
      %v5097 = vlaneseq
      %v5098 = vshrl.u32 %v5097, 7
      %v5099 = vsub.s32 %v5096, %v5098
      %v5100 = vrot.slane %v5078, %v5099
      %v5102 = vunpack.c.l.s4 1966171168
      %v5103 = vunpack.c.0.s8 %v5102
      %v5104 = vlaneseq
      %v5105 = vshrl.u32 %v5104, 7
      %v5106 = vsub.s32 %v5103, %v5105
      %v5107 = vrot.slane %v5079, %v5106
      %v5108 = vcombine.low %v5086, %v5093
      %v5109 = vcombine.low %v5100, %v5107
      %v5111 = vunpack.c.l.s4 1966171168
      %v5112 = vunpack.c.0.s8 %v5111
      %v5113 = vlaneseq
      %v5114 = vshrl.u32 %v5113, 7
      %v5115 = vsub.s32 %v5112, %v5114
      %v5116 = vrot.slane %v5108, %v5115
      %v5118 = vunpack.c.l.s4 1966171168
      %v5119 = vunpack.c.0.s8 %v5118
      %v5120 = vlaneseq
      %v5121 = vshrl.u32 %v5120, 7
      %v5122 = vsub.s32 %v5119, %v5121
      %v5123 = vrot.slane %v5109, %v5122
      %v5124 = vcombine.low %v5116, %v5123
      %v5125 = vcombine.low %v3934, %v3938
      %v5126 = vcombine.low %v3942, %v3946
      %v5127 = vcombine.low %v3950, %v3954
      %v5128 = vcombine.low %v3958, %v3962
      %v5130 = vunpack.c.l.s4 1966171168
      %v5131 = vunpack.c.0.s8 %v5130
      %v5132 = vlaneseq
      %v5133 = vshrl.u32 %v5132, 7
      %v5134 = vsub.s32 %v5131, %v5133
      %v5135 = vrot.slane %v5125, %v5134
      %v5137 = vunpack.c.l.s4 1966171168
      %v5138 = vunpack.c.0.s8 %v5137
      %v5139 = vlaneseq
      %v5140 = vshrl.u32 %v5139, 7
      %v5141 = vsub.s32 %v5138, %v5140
      %v5142 = vrot.slane %v5126, %v5141
      %v5144 = vunpack.c.l.s4 1966171168
      %v5145 = vunpack.c.0.s8 %v5144
      %v5146 = vlaneseq
      %v5147 = vshrl.u32 %v5146, 7
      %v5148 = vsub.s32 %v5145, %v5147
      %v5149 = vrot.slane %v5127, %v5148
      %v5151 = vunpack.c.l.s4 1966171168
      %v5152 = vunpack.c.0.s8 %v5151
      %v5153 = vlaneseq
      %v5154 = vshrl.u32 %v5153, 7
      %v5155 = vsub.s32 %v5152, %v5154
      %v5156 = vrot.slane %v5128, %v5155
      %v5157 = vcombine.low %v5135, %v5142
      %v5158 = vcombine.low %v5149, %v5156
      %v5160 = vunpack.c.l.s4 1966171168
      %v5161 = vunpack.c.0.s8 %v5160
      %v5162 = vlaneseq
      %v5163 = vshrl.u32 %v5162, 7
      %v5164 = vsub.s32 %v5161, %v5163
      %v5165 = vrot.slane %v5157, %v5164
      %v5167 = vunpack.c.l.s4 1966171168
      %v5168 = vunpack.c.0.s8 %v5167
      %v5169 = vlaneseq
      %v5170 = vshrl.u32 %v5169, 7
      %v5171 = vsub.s32 %v5168, %v5170
      %v5172 = vrot.slane %v5158, %v5171
      %v5173 = vcombine.low %v5165, %v5172
      %v5174 = vcombine.low %v3966, %v3970
      %v5175 = vcombine.low %v3974, %v3978
      %v5176 = vcombine.low %v3982, %v3986
      %v5177 = vcombine.low %v3990, %v3994
      %v5179 = vunpack.c.l.s4 1966171168
      %v5180 = vunpack.c.0.s8 %v5179
      %v5181 = vlaneseq
      %v5182 = vshrl.u32 %v5181, 7
      %v5183 = vsub.s32 %v5180, %v5182
      %v5184 = vrot.slane %v5174, %v5183
      %v5186 = vunpack.c.l.s4 1966171168
      %v5187 = vunpack.c.0.s8 %v5186
      %v5188 = vlaneseq
      %v5189 = vshrl.u32 %v5188, 7
      %v5190 = vsub.s32 %v5187, %v5189
      %v5191 = vrot.slane %v5175, %v5190
      %v5193 = vunpack.c.l.s4 1966171168
      %v5194 = vunpack.c.0.s8 %v5193
      %v5195 = vlaneseq
      %v5196 = vshrl.u32 %v5195, 7
      %v5197 = vsub.s32 %v5194, %v5196
      %v5198 = vrot.slane %v5176, %v5197
      %v5200 = vunpack.c.l.s4 1966171168
      %v5201 = vunpack.c.0.s8 %v5200
      %v5202 = vlaneseq
      %v5203 = vshrl.u32 %v5202, 7
      %v5204 = vsub.s32 %v5201, %v5203
      %v5205 = vrot.slane %v5177, %v5204
      %v5206 = vcombine.low %v5184, %v5191
      %v5207 = vcombine.low %v5198, %v5205
      %v5209 = vunpack.c.l.s4 1966171168
      %v5210 = vunpack.c.0.s8 %v5209
      %v5211 = vlaneseq
      %v5212 = vshrl.u32 %v5211, 7
      %v5213 = vsub.s32 %v5210, %v5212
      %v5214 = vrot.slane %v5206, %v5213
      %v5216 = vunpack.c.l.s4 1966171168
      %v5217 = vunpack.c.0.s8 %v5216
      %v5218 = vlaneseq
      %v5219 = vshrl.u32 %v5218, 7
      %v5220 = vsub.s32 %v5217, %v5219
      %v5221 = vrot.slane %v5207, %v5220
      %v5222 = vcombine.low %v5214, %v5221
      %v5223 = vcombine.low %v3998, %v4002
      %v5224 = vcombine.low %v4006, %v4010
      %v5225 = vcombine.low %v4014, %v4018
      %v5226 = vcombine.low %v4022, %v4026
      %v5228 = vunpack.c.l.s4 1966171168
      %v5229 = vunpack.c.0.s8 %v5228
      %v5230 = vlaneseq
      %v5231 = vshrl.u32 %v5230, 7
      %v5232 = vsub.s32 %v5229, %v5231
      %v5233 = vrot.slane %v5223, %v5232
      %v5235 = vunpack.c.l.s4 1966171168
      %v5236 = vunpack.c.0.s8 %v5235
      %v5237 = vlaneseq
      %v5238 = vshrl.u32 %v5237, 7
      %v5239 = vsub.s32 %v5236, %v5238
      %v5240 = vrot.slane %v5224, %v5239
      %v5242 = vunpack.c.l.s4 1966171168
      %v5243 = vunpack.c.0.s8 %v5242
      %v5244 = vlaneseq
      %v5245 = vshrl.u32 %v5244, 7
      %v5246 = vsub.s32 %v5243, %v5245
      %v5247 = vrot.slane %v5225, %v5246
      %v5249 = vunpack.c.l.s4 1966171168
      %v5250 = vunpack.c.0.s8 %v5249
      %v5251 = vlaneseq
      %v5252 = vshrl.u32 %v5251, 7
      %v5253 = vsub.s32 %v5250, %v5252
      %v5254 = vrot.slane %v5226, %v5253
      %v5255 = vcombine.low %v5233, %v5240
      %v5256 = vcombine.low %v5247, %v5254
      %v5258 = vunpack.c.l.s4 1966171168
      %v5259 = vunpack.c.0.s8 %v5258
      %v5260 = vlaneseq
      %v5261 = vshrl.u32 %v5260, 7
      %v5262 = vsub.s32 %v5259, %v5261
      %v5263 = vrot.slane %v5255, %v5262
      %v5265 = vunpack.c.l.s4 1966171168
      %v5266 = vunpack.c.0.s8 %v5265
      %v5267 = vlaneseq
      %v5268 = vshrl.u32 %v5267, 7
      %v5269 = vsub.s32 %v5266, %v5268
      %v5270 = vrot.slane %v5256, %v5269
      %v5271 = vcombine.low %v5263, %v5270
      %v5272 = vcombine.low %v4030, %v4034
      %v5273 = vcombine.low %v4038, %v4042
      %v5274 = vcombine.low %v4046, %v4050
      %v5275 = vcombine.low %v4054, %v4058
      %v5277 = vunpack.c.l.s4 1966171168
      %v5278 = vunpack.c.0.s8 %v5277
      %v5279 = vlaneseq
      %v5280 = vshrl.u32 %v5279, 7
      %v5281 = vsub.s32 %v5278, %v5280
      %v5282 = vrot.slane %v5272, %v5281
      %v5284 = vunpack.c.l.s4 1966171168
      %v5285 = vunpack.c.0.s8 %v5284
      %v5286 = vlaneseq
      %v5287 = vshrl.u32 %v5286, 7
      %v5288 = vsub.s32 %v5285, %v5287
      %v5289 = vrot.slane %v5273, %v5288
      %v5291 = vunpack.c.l.s4 1966171168
      %v5292 = vunpack.c.0.s8 %v5291
      %v5293 = vlaneseq
      %v5294 = vshrl.u32 %v5293, 7
      %v5295 = vsub.s32 %v5292, %v5294
      %v5296 = vrot.slane %v5274, %v5295
      %v5298 = vunpack.c.l.s4 1966171168
      %v5299 = vunpack.c.0.s8 %v5298
      %v5300 = vlaneseq
      %v5301 = vshrl.u32 %v5300, 7
      %v5302 = vsub.s32 %v5299, %v5301
      %v5303 = vrot.slane %v5275, %v5302
      %v5304 = vcombine.low %v5282, %v5289
      %v5305 = vcombine.low %v5296, %v5303
      %v5307 = vunpack.c.l.s4 1966171168
      %v5308 = vunpack.c.0.s8 %v5307
      %v5309 = vlaneseq
      %v5310 = vshrl.u32 %v5309, 7
      %v5311 = vsub.s32 %v5308, %v5310
      %v5312 = vrot.slane %v5304, %v5311
      %v5314 = vunpack.c.l.s4 1966171168
      %v5315 = vunpack.c.0.s8 %v5314
      %v5316 = vlaneseq
      %v5317 = vshrl.u32 %v5316, 7
      %v5318 = vsub.s32 %v5315, %v5317
      %v5319 = vrot.slane %v5305, %v5318
      %v5320 = vcombine.low %v5312, %v5319
      %v5321 = vcombine.low %v4062, %v4066
      %v5322 = vcombine.low %v4070, %v4074
      %v5323 = vcombine.low %v4078, %v4082
      %v5324 = vcombine.low %v4086, %v4090
      %v5326 = vunpack.c.l.s4 1966171168
      %v5327 = vunpack.c.0.s8 %v5326
      %v5328 = vlaneseq
      %v5329 = vshrl.u32 %v5328, 7
      %v5330 = vsub.s32 %v5327, %v5329
      %v5331 = vrot.slane %v5321, %v5330
      %v5333 = vunpack.c.l.s4 1966171168
      %v5334 = vunpack.c.0.s8 %v5333
      %v5335 = vlaneseq
      %v5336 = vshrl.u32 %v5335, 7
      %v5337 = vsub.s32 %v5334, %v5336
      %v5338 = vrot.slane %v5322, %v5337
      %v5340 = vunpack.c.l.s4 1966171168
      %v5341 = vunpack.c.0.s8 %v5340
      %v5342 = vlaneseq
      %v5343 = vshrl.u32 %v5342, 7
      %v5344 = vsub.s32 %v5341, %v5343
      %v5345 = vrot.slane %v5323, %v5344
      %v5347 = vunpack.c.l.s4 1966171168
      %v5348 = vunpack.c.0.s8 %v5347
      %v5349 = vlaneseq
      %v5350 = vshrl.u32 %v5349, 7
      %v5351 = vsub.s32 %v5348, %v5350
      %v5352 = vrot.slane %v5324, %v5351
      %v5353 = vcombine.low %v5331, %v5338
      %v5354 = vcombine.low %v5345, %v5352
      %v5356 = vunpack.c.l.s4 1966171168
      %v5357 = vunpack.c.0.s8 %v5356
      %v5358 = vlaneseq
      %v5359 = vshrl.u32 %v5358, 7
      %v5360 = vsub.s32 %v5357, %v5359
      %v5361 = vrot.slane %v5353, %v5360
      %v5363 = vunpack.c.l.s4 1966171168
      %v5364 = vunpack.c.0.s8 %v5363
      %v5365 = vlaneseq
      %v5366 = vshrl.u32 %v5365, 7
      %v5367 = vsub.s32 %v5364, %v5366
      %v5368 = vrot.slane %v5354, %v5367
      %v5369 = vcombine.low %v5361, %v5368
      %v5370 = vcombine.low %v4094, %v4098
      %v5371 = vcombine.low %v4102, %v4106
      %v5372 = vcombine.low %v4110, %v4114
      %v5373 = vcombine.low %v4118, %v4122
      %v5375 = vunpack.c.l.s4 1966171168
      %v5376 = vunpack.c.0.s8 %v5375
      %v5377 = vlaneseq
      %v5378 = vshrl.u32 %v5377, 7
      %v5379 = vsub.s32 %v5376, %v5378
      %v5380 = vrot.slane %v5370, %v5379
      %v5382 = vunpack.c.l.s4 1966171168
      %v5383 = vunpack.c.0.s8 %v5382
      %v5384 = vlaneseq
      %v5385 = vshrl.u32 %v5384, 7
      %v5386 = vsub.s32 %v5383, %v5385
      %v5387 = vrot.slane %v5371, %v5386
      %v5389 = vunpack.c.l.s4 1966171168
      %v5390 = vunpack.c.0.s8 %v5389
      %v5391 = vlaneseq
      %v5392 = vshrl.u32 %v5391, 7
      %v5393 = vsub.s32 %v5390, %v5392
      %v5394 = vrot.slane %v5372, %v5393
      %v5396 = vunpack.c.l.s4 1966171168
      %v5397 = vunpack.c.0.s8 %v5396
      %v5398 = vlaneseq
      %v5399 = vshrl.u32 %v5398, 7
      %v5400 = vsub.s32 %v5397, %v5399
      %v5401 = vrot.slane %v5373, %v5400
      %v5402 = vcombine.low %v5380, %v5387
      %v5403 = vcombine.low %v5394, %v5401
      %v5405 = vunpack.c.l.s4 1966171168
      %v5406 = vunpack.c.0.s8 %v5405
      %v5407 = vlaneseq
      %v5408 = vshrl.u32 %v5407, 7
      %v5409 = vsub.s32 %v5406, %v5408
      %v5410 = vrot.slane %v5402, %v5409
      %v5412 = vunpack.c.l.s4 1966171168
      %v5413 = vunpack.c.0.s8 %v5412
      %v5414 = vlaneseq
      %v5415 = vshrl.u32 %v5414, 7
      %v5416 = vsub.s32 %v5413, %v5415
      %v5417 = vrot.slane %v5403, %v5416
      %v5418 = vcombine.low %v5410, %v5417
      %v5419 = vcombine.low %v4126, %v4130
      %v5420 = vcombine.low %v4134, %v4138
      %v5421 = vcombine.low %v4142, %v4146
      %v5422 = vcombine.low %v4150, %v4154
      %v5424 = vunpack.c.l.s4 1966171168
      %v5425 = vunpack.c.0.s8 %v5424
      %v5426 = vlaneseq
      %v5427 = vshrl.u32 %v5426, 7
      %v5428 = vsub.s32 %v5425, %v5427
      %v5429 = vrot.slane %v5419, %v5428
      %v5431 = vunpack.c.l.s4 1966171168
      %v5432 = vunpack.c.0.s8 %v5431
      %v5433 = vlaneseq
      %v5434 = vshrl.u32 %v5433, 7
      %v5435 = vsub.s32 %v5432, %v5434
      %v5436 = vrot.slane %v5420, %v5435
      %v5438 = vunpack.c.l.s4 1966171168
      %v5439 = vunpack.c.0.s8 %v5438
      %v5440 = vlaneseq
      %v5441 = vshrl.u32 %v5440, 7
      %v5442 = vsub.s32 %v5439, %v5441
      %v5443 = vrot.slane %v5421, %v5442
      %v5445 = vunpack.c.l.s4 1966171168
      %v5446 = vunpack.c.0.s8 %v5445
      %v5447 = vlaneseq
      %v5448 = vshrl.u32 %v5447, 7
      %v5449 = vsub.s32 %v5446, %v5448
      %v5450 = vrot.slane %v5422, %v5449
      %v5451 = vcombine.low %v5429, %v5436
      %v5452 = vcombine.low %v5443, %v5450
      %v5454 = vunpack.c.l.s4 1966171168
      %v5455 = vunpack.c.0.s8 %v5454
      %v5456 = vlaneseq
      %v5457 = vshrl.u32 %v5456, 7
      %v5458 = vsub.s32 %v5455, %v5457
      %v5459 = vrot.slane %v5451, %v5458
      %v5461 = vunpack.c.l.s4 1966171168
      %v5462 = vunpack.c.0.s8 %v5461
      %v5463 = vlaneseq
      %v5464 = vshrl.u32 %v5463, 7
      %v5465 = vsub.s32 %v5462, %v5464
      %v5466 = vrot.slane %v5452, %v5465
      %v5467 = vcombine.low %v5459, %v5466
      %v5468 = vcombine.low %v4158, %v4162
      %v5469 = vcombine.low %v4166, %v4170
      %v5470 = vcombine.low %v4174, %v4178
      %v5471 = vcombine.low %v4182, %v4186
      %v5473 = vunpack.c.l.s4 1966171168
      %v5474 = vunpack.c.0.s8 %v5473
      %v5475 = vlaneseq
      %v5476 = vshrl.u32 %v5475, 7
      %v5477 = vsub.s32 %v5474, %v5476
      %v5478 = vrot.slane %v5468, %v5477
      %v5480 = vunpack.c.l.s4 1966171168
      %v5481 = vunpack.c.0.s8 %v5480
      %v5482 = vlaneseq
      %v5483 = vshrl.u32 %v5482, 7
      %v5484 = vsub.s32 %v5481, %v5483
      %v5485 = vrot.slane %v5469, %v5484
      %v5487 = vunpack.c.l.s4 1966171168
      %v5488 = vunpack.c.0.s8 %v5487
      %v5489 = vlaneseq
      %v5490 = vshrl.u32 %v5489, 7
      %v5491 = vsub.s32 %v5488, %v5490
      %v5492 = vrot.slane %v5470, %v5491
      %v5494 = vunpack.c.l.s4 1966171168
      %v5495 = vunpack.c.0.s8 %v5494
      %v5496 = vlaneseq
      %v5497 = vshrl.u32 %v5496, 7
      %v5498 = vsub.s32 %v5495, %v5497
      %v5499 = vrot.slane %v5471, %v5498
      %v5500 = vcombine.low %v5478, %v5485
      %v5501 = vcombine.low %v5492, %v5499
      %v5503 = vunpack.c.l.s4 1966171168
      %v5504 = vunpack.c.0.s8 %v5503
      %v5505 = vlaneseq
      %v5506 = vshrl.u32 %v5505, 7
      %v5507 = vsub.s32 %v5504, %v5506
      %v5508 = vrot.slane %v5500, %v5507
      %v5510 = vunpack.c.l.s4 1966171168
      %v5511 = vunpack.c.0.s8 %v5510
      %v5512 = vlaneseq
      %v5513 = vshrl.u32 %v5512, 7
      %v5514 = vsub.s32 %v5511, %v5513
      %v5515 = vrot.slane %v5501, %v5514
      %v5516 = vcombine.low %v5508, %v5515
      %v5517 = vcombine.low %v4190, %v4194
      %v5518 = vcombine.low %v4198, %v4202
      %v5519 = vcombine.low %v4206, %v4210
      %v5520 = vcombine.low %v4214, %v4218
      %v5522 = vunpack.c.l.s4 1966171168
      %v5523 = vunpack.c.0.s8 %v5522
      %v5524 = vlaneseq
      %v5525 = vshrl.u32 %v5524, 7
      %v5526 = vsub.s32 %v5523, %v5525
      %v5527 = vrot.slane %v5517, %v5526
      %v5529 = vunpack.c.l.s4 1966171168
      %v5530 = vunpack.c.0.s8 %v5529
      %v5531 = vlaneseq
      %v5532 = vshrl.u32 %v5531, 7
      %v5533 = vsub.s32 %v5530, %v5532
      %v5534 = vrot.slane %v5518, %v5533
      %v5536 = vunpack.c.l.s4 1966171168
      %v5537 = vunpack.c.0.s8 %v5536
      %v5538 = vlaneseq
      %v5539 = vshrl.u32 %v5538, 7
      %v5540 = vsub.s32 %v5537, %v5539
      %v5541 = vrot.slane %v5519, %v5540
      %v5543 = vunpack.c.l.s4 1966171168
      %v5544 = vunpack.c.0.s8 %v5543
      %v5545 = vlaneseq
      %v5546 = vshrl.u32 %v5545, 7
      %v5547 = vsub.s32 %v5544, %v5546
      %v5548 = vrot.slane %v5520, %v5547
      %v5549 = vcombine.low %v5527, %v5534
      %v5550 = vcombine.low %v5541, %v5548
      %v5552 = vunpack.c.l.s4 1966171168
      %v5553 = vunpack.c.0.s8 %v5552
      %v5554 = vlaneseq
      %v5555 = vshrl.u32 %v5554, 7
      %v5556 = vsub.s32 %v5553, %v5555
      %v5557 = vrot.slane %v5549, %v5556
      %v5559 = vunpack.c.l.s4 1966171168
      %v5560 = vunpack.c.0.s8 %v5559
      %v5561 = vlaneseq
      %v5562 = vshrl.u32 %v5561, 7
      %v5563 = vsub.s32 %v5560, %v5562
      %v5564 = vrot.slane %v5550, %v5563
      %v5565 = vcombine.low %v5557, %v5564
      %v5566 = vcombine.low %v4222, %v4226
      %v5567 = vcombine.low %v4230, %v4234
      %v5568 = vcombine.low %v4238, %v4242
      %v5569 = vcombine.low %v4246, %v4250
      %v5571 = vunpack.c.l.s4 1966171168
      %v5572 = vunpack.c.0.s8 %v5571
      %v5573 = vlaneseq
      %v5574 = vshrl.u32 %v5573, 7
      %v5575 = vsub.s32 %v5572, %v5574
      %v5576 = vrot.slane %v5566, %v5575
      %v5578 = vunpack.c.l.s4 1966171168
      %v5579 = vunpack.c.0.s8 %v5578
      %v5580 = vlaneseq
      %v5581 = vshrl.u32 %v5580, 7
      %v5582 = vsub.s32 %v5579, %v5581
      %v5583 = vrot.slane %v5567, %v5582
      %v5585 = vunpack.c.l.s4 1966171168
      %v5586 = vunpack.c.0.s8 %v5585
      %v5587 = vlaneseq
      %v5588 = vshrl.u32 %v5587, 7
      %v5589 = vsub.s32 %v5586, %v5588
      %v5590 = vrot.slane %v5568, %v5589
      %v5592 = vunpack.c.l.s4 1966171168
      %v5593 = vunpack.c.0.s8 %v5592
      %v5594 = vlaneseq
      %v5595 = vshrl.u32 %v5594, 7
      %v5596 = vsub.s32 %v5593, %v5595
      %v5597 = vrot.slane %v5569, %v5596
      %v5598 = vcombine.low %v5576, %v5583
      %v5599 = vcombine.low %v5590, %v5597
      %v5601 = vunpack.c.l.s4 1966171168
      %v5602 = vunpack.c.0.s8 %v5601
      %v5603 = vlaneseq
      %v5604 = vshrl.u32 %v5603, 7
      %v5605 = vsub.s32 %v5602, %v5604
      %v5606 = vrot.slane %v5598, %v5605
      %v5608 = vunpack.c.l.s4 1966171168
      %v5609 = vunpack.c.0.s8 %v5608
      %v5610 = vlaneseq
      %v5611 = vshrl.u32 %v5610, 7
      %v5612 = vsub.s32 %v5609, %v5611
      %v5613 = vrot.slane %v5599, %v5612
      %v5614 = vcombine.low %v5606, %v5613
      %v5615 = vcombine.low %v4254, %v4258
      %v5616 = vcombine.low %v4262, %v4266
      %v5617 = vcombine.low %v4270, %v4274
      %v5618 = vcombine.low %v4278, %v4282
      %v5620 = vunpack.c.l.s4 1966171168
      %v5621 = vunpack.c.0.s8 %v5620
      %v5622 = vlaneseq
      %v5623 = vshrl.u32 %v5622, 7
      %v5624 = vsub.s32 %v5621, %v5623
      %v5625 = vrot.slane %v5615, %v5624
      %v5627 = vunpack.c.l.s4 1966171168
      %v5628 = vunpack.c.0.s8 %v5627
      %v5629 = vlaneseq
      %v5630 = vshrl.u32 %v5629, 7
      %v5631 = vsub.s32 %v5628, %v5630
      %v5632 = vrot.slane %v5616, %v5631
      %v5634 = vunpack.c.l.s4 1966171168
      %v5635 = vunpack.c.0.s8 %v5634
      %v5636 = vlaneseq
      %v5637 = vshrl.u32 %v5636, 7
      %v5638 = vsub.s32 %v5635, %v5637
      %v5639 = vrot.slane %v5617, %v5638
      %v5641 = vunpack.c.l.s4 1966171168
      %v5642 = vunpack.c.0.s8 %v5641
      %v5643 = vlaneseq
      %v5644 = vshrl.u32 %v5643, 7
      %v5645 = vsub.s32 %v5642, %v5644
      %v5646 = vrot.slane %v5618, %v5645
      %v5647 = vcombine.low %v5625, %v5632
      %v5648 = vcombine.low %v5639, %v5646
      %v5650 = vunpack.c.l.s4 1966171168
      %v5651 = vunpack.c.0.s8 %v5650
      %v5652 = vlaneseq
      %v5653 = vshrl.u32 %v5652, 7
      %v5654 = vsub.s32 %v5651, %v5653
      %v5655 = vrot.slane %v5647, %v5654
      %v5657 = vunpack.c.l.s4 1966171168
      %v5658 = vunpack.c.0.s8 %v5657
      %v5659 = vlaneseq
      %v5660 = vshrl.u32 %v5659, 7
      %v5661 = vsub.s32 %v5658, %v5660
      %v5662 = vrot.slane %v5648, %v5661
      %v5663 = vcombine.low %v5655, %v5662
      %v5664 = vcombine.low %v4286, %v4290
      %v5665 = vcombine.low %v4294, %v4298
      %v5666 = vcombine.low %v4302, %v4306
      %v5667 = vcombine.low %v4310, %v4314
      %v5669 = vunpack.c.l.s4 1966171168
      %v5670 = vunpack.c.0.s8 %v5669
      %v5671 = vlaneseq
      %v5672 = vshrl.u32 %v5671, 7
      %v5673 = vsub.s32 %v5670, %v5672
      %v5674 = vrot.slane %v5664, %v5673
      %v5676 = vunpack.c.l.s4 1966171168
      %v5677 = vunpack.c.0.s8 %v5676
      %v5678 = vlaneseq
      %v5679 = vshrl.u32 %v5678, 7
      %v5680 = vsub.s32 %v5677, %v5679
      %v5681 = vrot.slane %v5665, %v5680
      %v5683 = vunpack.c.l.s4 1966171168
      %v5684 = vunpack.c.0.s8 %v5683
      %v5685 = vlaneseq
      %v5686 = vshrl.u32 %v5685, 7
      %v5687 = vsub.s32 %v5684, %v5686
      %v5688 = vrot.slane %v5666, %v5687
      %v5690 = vunpack.c.l.s4 1966171168
      %v5691 = vunpack.c.0.s8 %v5690
      %v5692 = vlaneseq
      %v5693 = vshrl.u32 %v5692, 7
      %v5694 = vsub.s32 %v5691, %v5693
      %v5695 = vrot.slane %v5667, %v5694
      %v5696 = vcombine.low %v5674, %v5681
      %v5697 = vcombine.low %v5688, %v5695
      %v5699 = vunpack.c.l.s4 1966171168
      %v5700 = vunpack.c.0.s8 %v5699
      %v5701 = vlaneseq
      %v5702 = vshrl.u32 %v5701, 7
      %v5703 = vsub.s32 %v5700, %v5702
      %v5704 = vrot.slane %v5696, %v5703
      %v5706 = vunpack.c.l.s4 1966171168
      %v5707 = vunpack.c.0.s8 %v5706
      %v5708 = vlaneseq
      %v5709 = vshrl.u32 %v5708, 7
      %v5710 = vsub.s32 %v5707, %v5709
      %v5711 = vrot.slane %v5697, %v5710
      %v5712 = vcombine.low %v5704, %v5711
      %v5713 = vcombine.low %v4318, %v4322
      %v5714 = vcombine.low %v4326, %v4330
      %v5715 = vcombine.low %v4334, %v4338
      %v5716 = vcombine.low %v4342, %v4346
      %v5718 = vunpack.c.l.s4 1966171168
      %v5719 = vunpack.c.0.s8 %v5718
      %v5720 = vlaneseq
      %v5721 = vshrl.u32 %v5720, 7
      %v5722 = vsub.s32 %v5719, %v5721
      %v5723 = vrot.slane %v5713, %v5722
      %v5725 = vunpack.c.l.s4 1966171168
      %v5726 = vunpack.c.0.s8 %v5725
      %v5727 = vlaneseq
      %v5728 = vshrl.u32 %v5727, 7
      %v5729 = vsub.s32 %v5726, %v5728
      %v5730 = vrot.slane %v5714, %v5729
      %v5732 = vunpack.c.l.s4 1966171168
      %v5733 = vunpack.c.0.s8 %v5732
      %v5734 = vlaneseq
      %v5735 = vshrl.u32 %v5734, 7
      %v5736 = vsub.s32 %v5733, %v5735
      %v5737 = vrot.slane %v5715, %v5736
      %v5739 = vunpack.c.l.s4 1966171168
      %v5740 = vunpack.c.0.s8 %v5739
      %v5741 = vlaneseq
      %v5742 = vshrl.u32 %v5741, 7
      %v5743 = vsub.s32 %v5740, %v5742
      %v5744 = vrot.slane %v5716, %v5743
      %v5745 = vcombine.low %v5723, %v5730
      %v5746 = vcombine.low %v5737, %v5744
      %v5748 = vunpack.c.l.s4 1966171168
      %v5749 = vunpack.c.0.s8 %v5748
      %v5750 = vlaneseq
      %v5751 = vshrl.u32 %v5750, 7
      %v5752 = vsub.s32 %v5749, %v5751
      %v5753 = vrot.slane %v5745, %v5752
      %v5755 = vunpack.c.l.s4 1966171168
      %v5756 = vunpack.c.0.s8 %v5755
      %v5757 = vlaneseq
      %v5758 = vshrl.u32 %v5757, 7
      %v5759 = vsub.s32 %v5756, %v5758
      %v5760 = vrot.slane %v5746, %v5759
      %v5761 = vcombine.low %v5753, %v5760
      %v5762 = vcombine.low %v4350, %v4354
      %v5763 = vcombine.low %v4358, %v4362
      %v5764 = vcombine.low %v4366, %v4370
      %v5765 = vcombine.low %v4374, %v4378
      %v5767 = vunpack.c.l.s4 1966171168
      %v5768 = vunpack.c.0.s8 %v5767
      %v5769 = vlaneseq
      %v5770 = vshrl.u32 %v5769, 7
      %v5771 = vsub.s32 %v5768, %v5770
      %v5772 = vrot.slane %v5762, %v5771
      %v5774 = vunpack.c.l.s4 1966171168
      %v5775 = vunpack.c.0.s8 %v5774
      %v5776 = vlaneseq
      %v5777 = vshrl.u32 %v5776, 7
      %v5778 = vsub.s32 %v5775, %v5777
      %v5779 = vrot.slane %v5763, %v5778
      %v5781 = vunpack.c.l.s4 1966171168
      %v5782 = vunpack.c.0.s8 %v5781
      %v5783 = vlaneseq
      %v5784 = vshrl.u32 %v5783, 7
      %v5785 = vsub.s32 %v5782, %v5784
      %v5786 = vrot.slane %v5764, %v5785
      %v5788 = vunpack.c.l.s4 1966171168
      %v5789 = vunpack.c.0.s8 %v5788
      %v5790 = vlaneseq
      %v5791 = vshrl.u32 %v5790, 7
      %v5792 = vsub.s32 %v5789, %v5791
      %v5793 = vrot.slane %v5765, %v5792
      %v5794 = vcombine.low %v5772, %v5779
      %v5795 = vcombine.low %v5786, %v5793
      %v5797 = vunpack.c.l.s4 1966171168
      %v5798 = vunpack.c.0.s8 %v5797
      %v5799 = vlaneseq
      %v5800 = vshrl.u32 %v5799, 7
      %v5801 = vsub.s32 %v5798, %v5800
      %v5802 = vrot.slane %v5794, %v5801
      %v5804 = vunpack.c.l.s4 1966171168
      %v5805 = vunpack.c.0.s8 %v5804
      %v5806 = vlaneseq
      %v5807 = vshrl.u32 %v5806, 7
      %v5808 = vsub.s32 %v5805, %v5807
      %v5809 = vrot.slane %v5795, %v5808
      %v5810 = vcombine.low %v5802, %v5809
      %v5811 = vcombine.low %v4382, %v4386
      %v5812 = vcombine.low %v4390, %v4394
      %v5813 = vcombine.low %v4398, %v4402
      %v5814 = vcombine.low %v4406, %v4410
      %v5816 = vunpack.c.l.s4 1966171168
      %v5817 = vunpack.c.0.s8 %v5816
      %v5818 = vlaneseq
      %v5819 = vshrl.u32 %v5818, 7
      %v5820 = vsub.s32 %v5817, %v5819
      %v5821 = vrot.slane %v5811, %v5820
      %v5823 = vunpack.c.l.s4 1966171168
      %v5824 = vunpack.c.0.s8 %v5823
      %v5825 = vlaneseq
      %v5826 = vshrl.u32 %v5825, 7
      %v5827 = vsub.s32 %v5824, %v5826
      %v5828 = vrot.slane %v5812, %v5827
      %v5830 = vunpack.c.l.s4 1966171168
      %v5831 = vunpack.c.0.s8 %v5830
      %v5832 = vlaneseq
      %v5833 = vshrl.u32 %v5832, 7
      %v5834 = vsub.s32 %v5831, %v5833
      %v5835 = vrot.slane %v5813, %v5834
      %v5837 = vunpack.c.l.s4 1966171168
      %v5838 = vunpack.c.0.s8 %v5837
      %v5839 = vlaneseq
      %v5840 = vshrl.u32 %v5839, 7
      %v5841 = vsub.s32 %v5838, %v5840
      %v5842 = vrot.slane %v5814, %v5841
      %v5843 = vcombine.low %v5821, %v5828
      %v5844 = vcombine.low %v5835, %v5842
      %v5846 = vunpack.c.l.s4 1966171168
      %v5847 = vunpack.c.0.s8 %v5846
      %v5848 = vlaneseq
      %v5849 = vshrl.u32 %v5848, 7
      %v5850 = vsub.s32 %v5847, %v5849
      %v5851 = vrot.slane %v5843, %v5850
      %v5853 = vunpack.c.l.s4 1966171168
      %v5854 = vunpack.c.0.s8 %v5853
      %v5855 = vlaneseq
      %v5856 = vshrl.u32 %v5855, 7
      %v5857 = vsub.s32 %v5854, %v5856
      %v5858 = vrot.slane %v5844, %v5857
      %v5859 = vcombine.low %v5851, %v5858
      %v5860 = vcombine.low %v4414, %v4418
      %v5861 = vcombine.low %v4422, %v4426
      %v5862 = vcombine.low %v4430, %v4434
      %v5863 = vcombine.low %v4438, %v4442
      %v5865 = vunpack.c.l.s4 1966171168
      %v5866 = vunpack.c.0.s8 %v5865
      %v5867 = vlaneseq
      %v5868 = vshrl.u32 %v5867, 7
      %v5869 = vsub.s32 %v5866, %v5868
      %v5870 = vrot.slane %v5860, %v5869
      %v5872 = vunpack.c.l.s4 1966171168
      %v5873 = vunpack.c.0.s8 %v5872
      %v5874 = vlaneseq
      %v5875 = vshrl.u32 %v5874, 7
      %v5876 = vsub.s32 %v5873, %v5875
      %v5877 = vrot.slane %v5861, %v5876
      %v5879 = vunpack.c.l.s4 1966171168
      %v5880 = vunpack.c.0.s8 %v5879
      %v5881 = vlaneseq
      %v5882 = vshrl.u32 %v5881, 7
      %v5883 = vsub.s32 %v5880, %v5882
      %v5884 = vrot.slane %v5862, %v5883
      %v5886 = vunpack.c.l.s4 1966171168
      %v5887 = vunpack.c.0.s8 %v5886
      %v5888 = vlaneseq
      %v5889 = vshrl.u32 %v5888, 7
      %v5890 = vsub.s32 %v5887, %v5889
      %v5891 = vrot.slane %v5863, %v5890
      %v5892 = vcombine.low %v5870, %v5877
      %v5893 = vcombine.low %v5884, %v5891
      %v5895 = vunpack.c.l.s4 1966171168
      %v5896 = vunpack.c.0.s8 %v5895
      %v5897 = vlaneseq
      %v5898 = vshrl.u32 %v5897, 7
      %v5899 = vsub.s32 %v5896, %v5898
      %v5900 = vrot.slane %v5892, %v5899
      %v5902 = vunpack.c.l.s4 1966171168
      %v5903 = vunpack.c.0.s8 %v5902
      %v5904 = vlaneseq
      %v5905 = vshrl.u32 %v5904, 7
      %v5906 = vsub.s32 %v5903, %v5905
      %v5907 = vrot.slane %v5893, %v5906
      %v5908 = vcombine.low %v5900, %v5907
      %v5909 = vcombine.low %v4446, %v4450
      %v5910 = vcombine.low %v4454, %v4458
      %v5911 = vcombine.low %v4462, %v4466
      %v5912 = vcombine.low %v4470, %v4474
      %v5914 = vunpack.c.l.s4 1966171168
      %v5915 = vunpack.c.0.s8 %v5914
      %v5916 = vlaneseq
      %v5917 = vshrl.u32 %v5916, 7
      %v5918 = vsub.s32 %v5915, %v5917
      %v5919 = vrot.slane %v5909, %v5918
      %v5921 = vunpack.c.l.s4 1966171168
      %v5922 = vunpack.c.0.s8 %v5921
      %v5923 = vlaneseq
      %v5924 = vshrl.u32 %v5923, 7
      %v5925 = vsub.s32 %v5922, %v5924
      %v5926 = vrot.slane %v5910, %v5925
      %v5928 = vunpack.c.l.s4 1966171168
      %v5929 = vunpack.c.0.s8 %v5928
      %v5930 = vlaneseq
      %v5931 = vshrl.u32 %v5930, 7
      %v5932 = vsub.s32 %v5929, %v5931
      %v5933 = vrot.slane %v5911, %v5932
      %v5935 = vunpack.c.l.s4 1966171168
      %v5936 = vunpack.c.0.s8 %v5935
      %v5937 = vlaneseq
      %v5938 = vshrl.u32 %v5937, 7
      %v5939 = vsub.s32 %v5936, %v5938
      %v5940 = vrot.slane %v5912, %v5939
      %v5941 = vcombine.low %v5919, %v5926
      %v5942 = vcombine.low %v5933, %v5940
      %v5944 = vunpack.c.l.s4 1966171168
      %v5945 = vunpack.c.0.s8 %v5944
      %v5946 = vlaneseq
      %v5947 = vshrl.u32 %v5946, 7
      %v5948 = vsub.s32 %v5945, %v5947
      %v5949 = vrot.slane %v5941, %v5948
      %v5951 = vunpack.c.l.s4 1966171168
      %v5952 = vunpack.c.0.s8 %v5951
      %v5953 = vlaneseq
      %v5954 = vshrl.u32 %v5953, 7
      %v5955 = vsub.s32 %v5952, %v5954
      %v5956 = vrot.slane %v5942, %v5955
      %v5957 = vcombine.low %v5949, %v5956
      %v5958 = vcombine.low %v4478, %v4482
      %v5959 = vcombine.low %v4486, %v4490
      %v5960 = vcombine.low %v4494, %v4498
      %v5961 = vcombine.low %v4502, %v4506
      %v5963 = vunpack.c.l.s4 1966171168
      %v5964 = vunpack.c.0.s8 %v5963
      %v5965 = vlaneseq
      %v5966 = vshrl.u32 %v5965, 7
      %v5967 = vsub.s32 %v5964, %v5966
      %v5968 = vrot.slane %v5958, %v5967
      %v5970 = vunpack.c.l.s4 1966171168
      %v5971 = vunpack.c.0.s8 %v5970
      %v5972 = vlaneseq
      %v5973 = vshrl.u32 %v5972, 7
      %v5974 = vsub.s32 %v5971, %v5973
      %v5975 = vrot.slane %v5959, %v5974
      %v5977 = vunpack.c.l.s4 1966171168
      %v5978 = vunpack.c.0.s8 %v5977
      %v5979 = vlaneseq
      %v5980 = vshrl.u32 %v5979, 7
      %v5981 = vsub.s32 %v5978, %v5980
      %v5982 = vrot.slane %v5960, %v5981
      %v5984 = vunpack.c.l.s4 1966171168
      %v5985 = vunpack.c.0.s8 %v5984
      %v5986 = vlaneseq
      %v5987 = vshrl.u32 %v5986, 7
      %v5988 = vsub.s32 %v5985, %v5987
      %v5989 = vrot.slane %v5961, %v5988
      %v5990 = vcombine.low %v5968, %v5975
      %v5991 = vcombine.low %v5982, %v5989
      %v5993 = vunpack.c.l.s4 1966171168
      %v5994 = vunpack.c.0.s8 %v5993
      %v5995 = vlaneseq
      %v5996 = vshrl.u32 %v5995, 7
      %v5997 = vsub.s32 %v5994, %v5996
      %v5998 = vrot.slane %v5990, %v5997
      %v6000 = vunpack.c.l.s4 1966171168
      %v6001 = vunpack.c.0.s8 %v6000
      %v6002 = vlaneseq
      %v6003 = vshrl.u32 %v6002, 7
      %v6004 = vsub.s32 %v6001, %v6003
      %v6005 = vrot.slane %v5991, %v6004
      %v6006 = vcombine.low %v5998, %v6005
      %v6007 = vcombine.low %v4510, %v4514
      %v6008 = vcombine.low %v4518, %v4522
      %v6009 = vcombine.low %v4526, %v4530
      %v6010 = vcombine.low %v4534, %v4538
      %v6012 = vunpack.c.l.s4 1966171168
      %v6013 = vunpack.c.0.s8 %v6012
      %v6014 = vlaneseq
      %v6015 = vshrl.u32 %v6014, 7
      %v6016 = vsub.s32 %v6013, %v6015
      %v6017 = vrot.slane %v6007, %v6016
      %v6019 = vunpack.c.l.s4 1966171168
      %v6020 = vunpack.c.0.s8 %v6019
      %v6021 = vlaneseq
      %v6022 = vshrl.u32 %v6021, 7
      %v6023 = vsub.s32 %v6020, %v6022
      %v6024 = vrot.slane %v6008, %v6023
      %v6026 = vunpack.c.l.s4 1966171168
      %v6027 = vunpack.c.0.s8 %v6026
      %v6028 = vlaneseq
      %v6029 = vshrl.u32 %v6028, 7
      %v6030 = vsub.s32 %v6027, %v6029
      %v6031 = vrot.slane %v6009, %v6030
      %v6033 = vunpack.c.l.s4 1966171168
      %v6034 = vunpack.c.0.s8 %v6033
      %v6035 = vlaneseq
      %v6036 = vshrl.u32 %v6035, 7
      %v6037 = vsub.s32 %v6034, %v6036
      %v6038 = vrot.slane %v6010, %v6037
      %v6039 = vcombine.low %v6017, %v6024
      %v6040 = vcombine.low %v6031, %v6038
      %v6042 = vunpack.c.l.s4 1966171168
      %v6043 = vunpack.c.0.s8 %v6042
      %v6044 = vlaneseq
      %v6045 = vshrl.u32 %v6044, 7
      %v6046 = vsub.s32 %v6043, %v6045
      %v6047 = vrot.slane %v6039, %v6046
      %v6049 = vunpack.c.l.s4 1966171168
      %v6050 = vunpack.c.0.s8 %v6049
      %v6051 = vlaneseq
      %v6052 = vshrl.u32 %v6051, 7
      %v6053 = vsub.s32 %v6050, %v6052
      %v6054 = vrot.slane %v6040, %v6053
      %v6055 = vcombine.low %v6047, %v6054
      %v6056 = vcombine.low %v4542, %v4546
      %v6057 = vcombine.low %v4550, %v4554
      %v6058 = vcombine.low %v4558, %v4562
      %v6059 = vcombine.low %v4566, %v4570
      %v6061 = vunpack.c.l.s4 1966171168
      %v6062 = vunpack.c.0.s8 %v6061
      %v6063 = vlaneseq
      %v6064 = vshrl.u32 %v6063, 7
      %v6065 = vsub.s32 %v6062, %v6064
      %v6066 = vrot.slane %v6056, %v6065
      %v6068 = vunpack.c.l.s4 1966171168
      %v6069 = vunpack.c.0.s8 %v6068
      %v6070 = vlaneseq
      %v6071 = vshrl.u32 %v6070, 7
      %v6072 = vsub.s32 %v6069, %v6071
      %v6073 = vrot.slane %v6057, %v6072
      %v6075 = vunpack.c.l.s4 1966171168
      %v6076 = vunpack.c.0.s8 %v6075
      %v6077 = vlaneseq
      %v6078 = vshrl.u32 %v6077, 7
      %v6079 = vsub.s32 %v6076, %v6078
      %v6080 = vrot.slane %v6058, %v6079
      %v6082 = vunpack.c.l.s4 1966171168
      %v6083 = vunpack.c.0.s8 %v6082
      %v6084 = vlaneseq
      %v6085 = vshrl.u32 %v6084, 7
      %v6086 = vsub.s32 %v6083, %v6085
      %v6087 = vrot.slane %v6059, %v6086
      %v6088 = vcombine.low %v6066, %v6073
      %v6089 = vcombine.low %v6080, %v6087
      %v6091 = vunpack.c.l.s4 1966171168
      %v6092 = vunpack.c.0.s8 %v6091
      %v6093 = vlaneseq
      %v6094 = vshrl.u32 %v6093, 7
      %v6095 = vsub.s32 %v6092, %v6094
      %v6096 = vrot.slane %v6088, %v6095
      %v6098 = vunpack.c.l.s4 1966171168
      %v6099 = vunpack.c.0.s8 %v6098
      %v6100 = vlaneseq
      %v6101 = vshrl.u32 %v6100, 7
      %v6102 = vsub.s32 %v6099, %v6101
      %v6103 = vrot.slane %v6089, %v6102
      %v6104 = vcombine.low %v6096, %v6103
      %v6105 = vcombine.low %v4574, %v4578
      %v6106 = vcombine.low %v4582, %v4586
      %v6107 = vcombine.low %v4590, %v4594
      %v6108 = vcombine.low %v4598, %v4602
      %v6110 = vunpack.c.l.s4 1966171168
      %v6111 = vunpack.c.0.s8 %v6110
      %v6112 = vlaneseq
      %v6113 = vshrl.u32 %v6112, 7
      %v6114 = vsub.s32 %v6111, %v6113
      %v6115 = vrot.slane %v6105, %v6114
      %v6117 = vunpack.c.l.s4 1966171168
      %v6118 = vunpack.c.0.s8 %v6117
      %v6119 = vlaneseq
      %v6120 = vshrl.u32 %v6119, 7
      %v6121 = vsub.s32 %v6118, %v6120
      %v6122 = vrot.slane %v6106, %v6121
      %v6124 = vunpack.c.l.s4 1966171168
      %v6125 = vunpack.c.0.s8 %v6124
      %v6126 = vlaneseq
      %v6127 = vshrl.u32 %v6126, 7
      %v6128 = vsub.s32 %v6125, %v6127
      %v6129 = vrot.slane %v6107, %v6128
      %v6131 = vunpack.c.l.s4 1966171168
      %v6132 = vunpack.c.0.s8 %v6131
      %v6133 = vlaneseq
      %v6134 = vshrl.u32 %v6133, 7
      %v6135 = vsub.s32 %v6132, %v6134
      %v6136 = vrot.slane %v6108, %v6135
      %v6137 = vcombine.low %v6115, %v6122
      %v6138 = vcombine.low %v6129, %v6136
      %v6140 = vunpack.c.l.s4 1966171168
      %v6141 = vunpack.c.0.s8 %v6140
      %v6142 = vlaneseq
      %v6143 = vshrl.u32 %v6142, 7
      %v6144 = vsub.s32 %v6141, %v6143
      %v6145 = vrot.slane %v6137, %v6144
      %v6147 = vunpack.c.l.s4 1966171168
      %v6148 = vunpack.c.0.s8 %v6147
      %v6149 = vlaneseq
      %v6150 = vshrl.u32 %v6149, 7
      %v6151 = vsub.s32 %v6148, %v6150
      %v6152 = vrot.slane %v6138, %v6151
      %v6153 = vcombine.low %v6145, %v6152
      %v6154 = vcombine.low %v4606, %v4610
      %v6155 = vcombine.low %v4614, %v4618
      %v6156 = vcombine.low %v4622, %v4626
      %v6157 = vcombine.low %v4630, %v4634
      %v6159 = vunpack.c.l.s4 1966171168
      %v6160 = vunpack.c.0.s8 %v6159
      %v6161 = vlaneseq
      %v6162 = vshrl.u32 %v6161, 7
      %v6163 = vsub.s32 %v6160, %v6162
      %v6164 = vrot.slane %v6154, %v6163
      %v6166 = vunpack.c.l.s4 1966171168
      %v6167 = vunpack.c.0.s8 %v6166
      %v6168 = vlaneseq
      %v6169 = vshrl.u32 %v6168, 7
      %v6170 = vsub.s32 %v6167, %v6169
      %v6171 = vrot.slane %v6155, %v6170
      %v6173 = vunpack.c.l.s4 1966171168
      %v6174 = vunpack.c.0.s8 %v6173
      %v6175 = vlaneseq
      %v6176 = vshrl.u32 %v6175, 7
      %v6177 = vsub.s32 %v6174, %v6176
      %v6178 = vrot.slane %v6156, %v6177
      %v6180 = vunpack.c.l.s4 1966171168
      %v6181 = vunpack.c.0.s8 %v6180
      %v6182 = vlaneseq
      %v6183 = vshrl.u32 %v6182, 7
      %v6184 = vsub.s32 %v6181, %v6183
      %v6185 = vrot.slane %v6157, %v6184
      %v6186 = vcombine.low %v6164, %v6171
      %v6187 = vcombine.low %v6178, %v6185
      %v6189 = vunpack.c.l.s4 1966171168
      %v6190 = vunpack.c.0.s8 %v6189
      %v6191 = vlaneseq
      %v6192 = vshrl.u32 %v6191, 7
      %v6193 = vsub.s32 %v6190, %v6192
      %v6194 = vrot.slane %v6186, %v6193
      %v6196 = vunpack.c.l.s4 1966171168
      %v6197 = vunpack.c.0.s8 %v6196
      %v6198 = vlaneseq
      %v6199 = vshrl.u32 %v6198, 7
      %v6200 = vsub.s32 %v6197, %v6199
      %v6201 = vrot.slane %v6187, %v6200
      %v6202 = vcombine.low %v6194, %v6201
      %6203 = vset.pattern.permute.xlu0 0
      %6204 = vperm.xlu0 %6203, %v4683
      %v6205 = vpop.permute.xlu0 %6204
      %6206 = vset.pattern.permute.xlu0 0
      %6207 = vperm.xlu0 %6206, %v4732
      %v6208 = vpop.permute.xlu0 %6207
      %6209 = vset.pattern.permute.xlu0 0
      %6210 = vperm.xlu0 %6209, %v4781
      %v6211 = vpop.permute.xlu0 %6210
      %6212 = vset.pattern.permute.xlu0 0
      %6213 = vperm.xlu0 %6212, %v4830
      %v6214 = vpop.permute.xlu0 %6213
      %6215 = vset.pattern.permute.xlu0 0
      %6216 = vperm.xlu0 %6215, %v4879
      %v6217 = vpop.permute.xlu0 %6216
      %6218 = vset.pattern.permute.xlu0 0
      %6219 = vperm.xlu0 %6218, %v4928
      %v6220 = vpop.permute.xlu0 %6219
      %6221 = vset.pattern.permute.xlu0 0
      %6222 = vperm.xlu0 %6221, %v4977
      %v6223 = vpop.permute.xlu0 %6222
      %6224 = vset.pattern.permute.xlu0 0
      %6225 = vperm.xlu0 %6224, %v5026
      %v6226 = vpop.permute.xlu0 %6225
      %6227 = vset.pattern.permute.xlu0 0
      %6228 = vperm.xlu0 %6227, %v5075
      %v6229 = vpop.permute.xlu0 %6228
      %6230 = vset.pattern.permute.xlu0 0
      %6231 = vperm.xlu0 %6230, %v5124
      %v6232 = vpop.permute.xlu0 %6231
      %6233 = vset.pattern.permute.xlu0 0
      %6234 = vperm.xlu0 %6233, %v5173
      %v6235 = vpop.permute.xlu0 %6234
      %6236 = vset.pattern.permute.xlu0 0
      %6237 = vperm.xlu0 %6236, %v5222
      %v6238 = vpop.permute.xlu0 %6237
      %6239 = vset.pattern.permute.xlu0 0
      %6240 = vperm.xlu0 %6239, %v5271
      %v6241 = vpop.permute.xlu0 %6240
      %6242 = vset.pattern.permute.xlu0 0
      %6243 = vperm.xlu0 %6242, %v5320
      %v6244 = vpop.permute.xlu0 %6243
      %6245 = vset.pattern.permute.xlu0 0
      %6246 = vperm.xlu0 %6245, %v5369
      %v6247 = vpop.permute.xlu0 %6246
      %6248 = vset.pattern.permute.xlu0 0
      %6249 = vperm.xlu0 %6248, %v5418
      %v6250 = vpop.permute.xlu0 %6249
      %6251 = vset.pattern.permute.xlu0 0
      %6252 = vperm.xlu0 %6251, %v5467
      %v6253 = vpop.permute.xlu0 %6252
      %6254 = vset.pattern.permute.xlu0 0
      %6255 = vperm.xlu0 %6254, %v5516
      %v6256 = vpop.permute.xlu0 %6255
      %6257 = vset.pattern.permute.xlu0 0
      %6258 = vperm.xlu0 %6257, %v5565
      %v6259 = vpop.permute.xlu0 %6258
      %6260 = vset.pattern.permute.xlu0 0
      %6261 = vperm.xlu0 %6260, %v5614
      %v6262 = vpop.permute.xlu0 %6261
      %6263 = vset.pattern.permute.xlu0 0
      %6264 = vperm.xlu0 %6263, %v5663
      %v6265 = vpop.permute.xlu0 %6264
      %6266 = vset.pattern.permute.xlu0 0
      %6267 = vperm.xlu0 %6266, %v5712
      %v6268 = vpop.permute.xlu0 %6267
      %6269 = vset.pattern.permute.xlu0 0
      %6270 = vperm.xlu0 %6269, %v5761
      %v6271 = vpop.permute.xlu0 %6270
      %6272 = vset.pattern.permute.xlu0 0
      %6273 = vperm.xlu0 %6272, %v5810
      %v6274 = vpop.permute.xlu0 %6273
      %6275 = vset.pattern.permute.xlu0 0
      %6276 = vperm.xlu0 %6275, %v5859
      %v6277 = vpop.permute.xlu0 %6276
      %6278 = vset.pattern.permute.xlu0 0
      %6279 = vperm.xlu0 %6278, %v5908
      %v6280 = vpop.permute.xlu0 %6279
      %6281 = vset.pattern.permute.xlu0 0
      %6282 = vperm.xlu0 %6281, %v5957
      %v6283 = vpop.permute.xlu0 %6282
      %6284 = vset.pattern.permute.xlu0 0
      %6285 = vperm.xlu0 %6284, %v6006
      %v6286 = vpop.permute.xlu0 %6285
      %6287 = vset.pattern.permute.xlu0 0
      %6288 = vperm.xlu0 %6287, %v6055
      %v6289 = vpop.permute.xlu0 %6288
      %6290 = vset.pattern.permute.xlu0 0
      %6291 = vperm.xlu0 %6290, %v6104
      %v6292 = vpop.permute.xlu0 %6291
      %6293 = vset.pattern.permute.xlu0 0
      %6294 = vperm.xlu0 %6293, %v6153
      %v6295 = vpop.permute.xlu0 %6294
      %6296 = vset.pattern.permute.xlu0 0
      %6297 = vperm.xlu0 %6296, %v6202
      %v6298 = vpop.permute.xlu0 %6297
      %v6299 = vlaneseq
      %v6300 = vand.u32 %v6299, 127
      %v6301 = vlaneseq
      %v6302 = vshrl.u32 %v6301, 7
      %v6303 = vsub.s32 %v6300, %v6302
      %v6304 = vrot.slane %v6205, %v6303
      %v6305 = vadd.s32 %v6300, 4294967288
      %v6306 = vlaneseq
      %v6307 = vshrl.u32 %v6306, 7
      %v6308 = vsub.s32 %v6305, %v6307
      %v6309 = vrot.slane %v6208, %v6308
      %vm6310 = vcmask 130112
      %v6311 = vsel %vm6310, %v6309, %v6304
      %v6312 = vadd.s32 %v6300, 4294967280
      %v6313 = vlaneseq
      %v6314 = vshrl.u32 %v6313, 7
      %v6315 = vsub.s32 %v6312, %v6314
      %v6316 = vrot.slane %v6211, %v6315
      %vm6317 = vcmask 195712
      %v6318 = vsel %vm6317, %v6316, %v6311
      %v6319 = vadd.s32 %v6300, 4294967272
      %v6320 = vlaneseq
      %v6321 = vshrl.u32 %v6320, 7
      %v6322 = vsub.s32 %v6319, %v6321
      %v6323 = vrot.slane %v6214, %v6322
      %vm6324 = vcmask 261312
      %v6325 = vsel %vm6324, %v6323, %v6318
      %v6326 = vadd.s32 %v6300, 4294967264
      %v6327 = vlaneseq
      %v6328 = vshrl.u32 %v6327, 7
      %v6329 = vsub.s32 %v6326, %v6328
      %v6330 = vrot.slane %v6217, %v6329
      %vm6331 = vcmask 326912
      %v6332 = vsel %vm6331, %v6330, %v6325
      %v6333 = vadd.s32 %v6300, 4294967256
      %v6334 = vlaneseq
      %v6335 = vshrl.u32 %v6334, 7
      %v6336 = vsub.s32 %v6333, %v6335
      %v6337 = vrot.slane %v6220, %v6336
      %vm6338 = vcmask 392512
      %v6339 = vsel %vm6338, %v6337, %v6332
      %v6340 = vadd.s32 %v6300, 4294967248
      %v6341 = vlaneseq
      %v6342 = vshrl.u32 %v6341, 7
      %v6343 = vsub.s32 %v6340, %v6342
      %v6344 = vrot.slane %v6223, %v6343
      %vm6345 = vcmask 458112
      %v6346 = vsel %vm6345, %v6344, %v6339
      %v6347 = vadd.s32 %v6300, 4294967240
      %v6348 = vlaneseq
      %v6349 = vshrl.u32 %v6348, 7
      %v6350 = vsub.s32 %v6347, %v6349
      %v6351 = vrot.slane %v6226, %v6350
      %vm6352 = vcmask 523712
      %v6353 = vsel %vm6352, %v6351, %v6346
      %v6354 = vadd.s32 %v6300, 4294967232
      %v6355 = vlaneseq
      %v6356 = vshrl.u32 %v6355, 7
      %v6357 = vsub.s32 %v6354, %v6356
      %v6358 = vrot.slane %v6229, %v6357
      %vm6359 = vcmask 589312
      %v6360 = vsel %vm6359, %v6358, %v6353
      %v6361 = vadd.s32 %v6300, 4294967224
      %v6362 = vlaneseq
      %v6363 = vshrl.u32 %v6362, 7
      %v6364 = vsub.s32 %v6361, %v6363
      %v6365 = vrot.slane %v6232, %v6364
      %vm6366 = vcmask 654912
      %v6367 = vsel %vm6366, %v6365, %v6360
      %v6368 = vadd.s32 %v6300, 4294967216
      %v6369 = vlaneseq
      %v6370 = vshrl.u32 %v6369, 7
      %v6371 = vsub.s32 %v6368, %v6370
      %v6372 = vrot.slane %v6235, %v6371
      %vm6373 = vcmask 720512
      %v6374 = vsel %vm6373, %v6372, %v6367
      %v6375 = vadd.s32 %v6300, 4294967208
      %v6376 = vlaneseq
      %v6377 = vshrl.u32 %v6376, 7
      %v6378 = vsub.s32 %v6375, %v6377
      %v6379 = vrot.slane %v6238, %v6378
      %vm6380 = vcmask 786112
      %v6381 = vsel %vm6380, %v6379, %v6374
      %v6382 = vadd.s32 %v6300, 4294967200
      %v6383 = vlaneseq
      %v6384 = vshrl.u32 %v6383, 7
      %v6385 = vsub.s32 %v6382, %v6384
      %v6386 = vrot.slane %v6241, %v6385
      %vm6387 = vcmask 851712
      %v6388 = vsel %vm6387, %v6386, %v6381
      %v6389 = vadd.s32 %v6300, 4294967192
      %v6390 = vlaneseq
      %v6391 = vshrl.u32 %v6390, 7
      %v6392 = vsub.s32 %v6389, %v6391
      %v6393 = vrot.slane %v6244, %v6392
      %vm6394 = vcmask 917312
      %v6395 = vsel %vm6394, %v6393, %v6388
      %v6396 = vadd.s32 %v6300, 4294967184
      %v6397 = vlaneseq
      %v6398 = vshrl.u32 %v6397, 7
      %v6399 = vsub.s32 %v6396, %v6398
      %v6400 = vrot.slane %v6247, %v6399
      %vm6401 = vcmask 982912
      %v6402 = vsel %vm6401, %v6400, %v6395
      %v6403 = vadd.s32 %v6300, 4294967176
      %v6404 = vlaneseq
      %v6405 = vshrl.u32 %v6404, 7
      %v6406 = vsub.s32 %v6403, %v6405
      %v6407 = vrot.slane %v6250, %v6406
      %vm6408 = vcmask 1048512
      %v6409 = vsel %vm6408, %v6407, %v6402
      %v6410 = vlaneseq
      %v6411 = vshrl.u32 %v6410, 7
      %v6412 = vsub.s32 %v6300, %v6411
      %v6413 = vrot.slane %v6253, %v6412
      %v6414 = vlaneseq
      %v6415 = vshrl.u32 %v6414, 7
      %v6416 = vsub.s32 %v6305, %v6415
      %v6417 = vrot.slane %v6256, %v6416
      %v6418 = vsel %vm6310, %v6417, %v6413
      %v6419 = vlaneseq
      %v6420 = vshrl.u32 %v6419, 7
      %v6421 = vsub.s32 %v6312, %v6420
      %v6422 = vrot.slane %v6259, %v6421
      %v6423 = vsel %vm6317, %v6422, %v6418
      %v6424 = vlaneseq
      %v6425 = vshrl.u32 %v6424, 7
      %v6426 = vsub.s32 %v6319, %v6425
      %v6427 = vrot.slane %v6262, %v6426
      %v6428 = vsel %vm6324, %v6427, %v6423
      %v6429 = vlaneseq
      %v6430 = vshrl.u32 %v6429, 7
      %v6431 = vsub.s32 %v6326, %v6430
      %v6432 = vrot.slane %v6265, %v6431
      %v6433 = vsel %vm6331, %v6432, %v6428
      %v6434 = vlaneseq
      %v6435 = vshrl.u32 %v6434, 7
      %v6436 = vsub.s32 %v6333, %v6435
      %v6437 = vrot.slane %v6268, %v6436
      %v6438 = vsel %vm6338, %v6437, %v6433
      %v6439 = vlaneseq
      %v6440 = vshrl.u32 %v6439, 7
      %v6441 = vsub.s32 %v6340, %v6440
      %v6442 = vrot.slane %v6271, %v6441
      %v6443 = vsel %vm6345, %v6442, %v6438
      %v6444 = vlaneseq
      %v6445 = vshrl.u32 %v6444, 7
      %v6446 = vsub.s32 %v6347, %v6445
      %v6447 = vrot.slane %v6274, %v6446
      %v6448 = vsel %vm6352, %v6447, %v6443
      %v6449 = vlaneseq
      %v6450 = vshrl.u32 %v6449, 7
      %v6451 = vsub.s32 %v6354, %v6450
      %v6452 = vrot.slane %v6277, %v6451
      %v6453 = vsel %vm6359, %v6452, %v6448
      %v6454 = vlaneseq
      %v6455 = vshrl.u32 %v6454, 7
      %v6456 = vsub.s32 %v6361, %v6455
      %v6457 = vrot.slane %v6280, %v6456
      %v6458 = vsel %vm6366, %v6457, %v6453
      %v6459 = vlaneseq
      %v6460 = vshrl.u32 %v6459, 7
      %v6461 = vsub.s32 %v6368, %v6460
      %v6462 = vrot.slane %v6283, %v6461
      %v6463 = vsel %vm6373, %v6462, %v6458
      %v6464 = vlaneseq
      %v6465 = vshrl.u32 %v6464, 7
      %v6466 = vsub.s32 %v6375, %v6465
      %v6467 = vrot.slane %v6286, %v6466
      %v6468 = vsel %vm6380, %v6467, %v6463
      %v6469 = vlaneseq
      %v6470 = vshrl.u32 %v6469, 7
      %v6471 = vsub.s32 %v6382, %v6470
      %v6472 = vrot.slane %v6289, %v6471
      %v6473 = vsel %vm6387, %v6472, %v6468
      %v6474 = vlaneseq
      %v6475 = vshrl.u32 %v6474, 7
      %v6476 = vsub.s32 %v6389, %v6475
      %v6477 = vrot.slane %v6292, %v6476
      %v6478 = vsel %vm6394, %v6477, %v6473
      %v6479 = vlaneseq
      %v6480 = vshrl.u32 %v6479, 7
      %v6481 = vsub.s32 %v6396, %v6480
      %v6482 = vrot.slane %v6295, %v6481
      %v6483 = vsel %vm6401, %v6482, %v6478
      %v6484 = vlaneseq
      %v6485 = vshrl.u32 %v6484, 7
      %v6486 = vsub.s32 %v6403, %v6485
      %v6487 = vrot.slane %v6298, %v6486
      %v6488 = vsel %vm6408, %v6487, %v6483
      %v6489 = vcombine.low %v6409, %v6488
      %v6491 = vunpack.c.l.s4 1966171168
      %v6492 = vunpack.c.0.s8 %v6491
      %v6493 = vlaneseq
      %v6494 = vshrl.u32 %v6493, 7
      %v6495 = vsub.s32 %v6492, %v6494
      %v6496 = vrot.slane %v6489, %v6495
      %v6498 = vunpack.c.l.s4 1966171168
      %v6499 = vunpack.c.0.s8 %v6498
      %v6500 = vlaneseq
      %v6501 = vshrl.u32 %v6500, 7
      %v6502 = vsub.s32 %v6499, %v6501
      %v6503 = vrot.slane %v6496, %v6502
      %v6505 = vlaneseq
      %vm6506 = vcmp.ge.s32.totalorder %v6505, 0
      %vm6507 = vcmp.lt.s32.totalorder %v6505, 256
      %vm6508 = vmand %vm6506, %vm6507
      %6509 = vst.msk [vmem:[%s367] sm:$0x3] %vm6508, %v6503
      %p6510 = scmp.lt.s32.totalorder %s19, 1
      %s6511 = scalar_select %p6510, %s19, 1
      %s6512 = smul.addr %s6511, 2
      %s6513 = scalar_lea.vmem %s8, %s6512
      // Predicated region
      $region53: #{gail_discrim_forward.1} parent=51 // pred_check
        %p6514 = pneg %p215
      $region54: #{gail_discrim_forward.1} parent=51 // pred_check_branch
        %6516 = sbr.rel (%p6514) target = $region56
      $region55: #{gail_discrim_forward.1} parent=51 // pred_region
        _
      $region56: #{gail_discrim_forward.1} parent=51 // pred_fallthru
        _
    $region52: #{gail_discrim_forward.1} parent=5 // pred_fallthru
      _
    %p6517 = scmp.le.s32.totalorder 2, %s14
    // Predicated region
    $region57: #{gail_discrim_forward.1} parent=5 // pred_check
      %p6518 = pneg %p6517
    $region58: #{gail_discrim_forward.1} parent=5 // pred_check_branch
      %6520 = sbr.rel (%p6518) target = $region60
    $region59: #{gail_discrim_forward.1} parent=5 // pred_region
      %s6521 = ssub.s32 %s14, 2
      // Predicated region
      $region61: #{gail_discrim_forward.1} parent=59 // pred_check
        %p6522 = pneg %p221
      $region62: #{gail_discrim_forward.1} parent=59 // pred_check_branch
        %6524 = sbr.rel (%p6522) target = $region64
      $region63: #{gail_discrim_forward.1} parent=59 // pred_region
        %p6525 = scmp.lt.s32.totalorder %s20, 1
        %s6526 = scalar_select %p6525, %s20, 1
        %s6527 = smul.addr %s6526, 2
        %s6528 = scalar_lea.vmem %s8, %s6527
      $region64: #{gail_discrim_forward.1} parent=59 // pred_fallthru
        _
    $region60: #{gail_discrim_forward.1} parent=5 // pred_fallthru
      _
  $region6: #{gail_discrim_forward.1} parent=0 // loop_footer
    %s18 = sadd.s32 1, %s14
  $region7: #{gail_discrim_forward.1} parent=0 // loop_footer_branch
    %13 = sbr.rel target = $region3
  $region8: #{gail_discrim_forward.1} parent=0 // loop_exit
    _

</llo_original>
